<compile_context>
chip_gen: v5e
topology: v5e:2x2
jax: 0.10.0
libtpu: 0.0.40
codegen_flags: <defaults>
</compile_context>

<pallas_src>
import functools

import jax
import jax.numpy as jnp
from jax import lax
from jax.experimental import pallas as pl
from jax.experimental.pallas import tpu as pltpu


def _sepconv_kernel(x_ref, dw1_ref, pw1_ref, b1_ref, dw2_ref, pw2_ref, b2_ref,
                    o_ref, zpad_ref,
                    *, k, stride, padding, ho, wo, ho2, wo2, c_in, c_out):
    s, p = stride, padding
    f32 = jnp.float32

    # ---- Stage 1: ReLU + depthwise conv #1 (stride handled via phases) ----
    # x_ref block: (1, s*s, Hq, Wq, C_in) zero-padded input split into stride
    # phases by the wrapper, so every tap is a unit-stride slice.
    dw1 = dw1_ref[...]                                   # (k*k, 1, 1, C_in)
    phases = [jnp.maximum(x_ref[0, ph], 0.0) for ph in range(s * s)]

    acc = jnp.zeros((ho, wo, c_in), f32)
    for kh in range(k):
        for kw in range(k):
            ph = (kh % s) * s + (kw % s)
            qh, qw = kh // s, kw // s
            patch = phases[ph][qh:qh + ho, qw:qw + wo, :]
            acc = acc + patch * dw1[kh * k + kw]

    # ---- Stage 2: pointwise conv #1 (bf16 MXU) + folded BN1 bias + ReLU ----
    z = jnp.dot(acc.reshape(ho * wo, c_in).astype(jnp.bfloat16),
                pw1_ref[...],                            # bf16, BN1 scale folded
                preferred_element_type=f32)
    z = jnp.maximum(z + b1_ref[...], 0.0)                # (Ho*Wo, C_in)+(1, C_in)
    z3 = z.reshape(ho, wo, c_in)

    # ---- Stage 3: depthwise conv #2 (stride 1) ------------------------------
    # Zero-pad via a small VMEM scratch: only the p-wide halo strips are
    # zeroed (every step, so it is correct under megacore grid splitting),
    # then the interior is stored once and the padded slab read back.
    hp2, wp2 = ho + 2 * p, wo + 2 * p
    if p > 0:
        zpad_ref[0:p, :, :] = jnp.zeros((p, wp2, c_in), f32)
        zpad_ref[hp2 - p:hp2, :, :] = jnp.zeros((p, wp2, c_in), f32)
        zpad_ref[:, 0:p, :] = jnp.zeros((hp2, p, c_in), f32)
        zpad_ref[:, wp2 - p:wp2, :] = jnp.zeros((hp2, p, c_in), f32)
    zpad_ref[p:p + ho, p:p + wo, :] = z3
    zpad = zpad_ref[...]

    dw2 = dw2_ref[...]                                   # (k*k, 1, 1, C_in)
    acc2 = jnp.zeros((ho2, wo2, c_in), f32)
    for kh in range(k):
        for kw in range(k):
            acc2 = acc2 + zpad[kh:kh + ho2, kw:kw + wo2, :] * dw2[kh * k + kw]

    # ---- Stage 4: pointwise conv #2 (bf16 MXU, transposed rhs) + BN2 bias ---
    # Contract C_in of pw2 (C_out, C_in) with the minor dim of the flattened
    # accumulator -> (C_out, Ho2*Wo2): lane-dense, already NCHW-flattened.
    acc2_m = acc2.reshape(ho2 * wo2, c_in).astype(jnp.bfloat16)
    z2 = lax.dot_general(pw2_ref[...], acc2_m,
                         dimension_numbers=(((1,), (1,)), ((), ())),
                         preferred_element_type=f32)     # (C_out, Ho2*Wo2)
    o_ref[0] = (z2 + b2_ref[...]).astype(o_ref.dtype)    # bias: (C_out, 1)


def sep_conv_forward(x, params, *, kernel_size, stride, padding, eps=1e-5):
    """SepConv forward. x is NCHW (PyTorch layout); returns NCHW."""
    n, c_in, h, w = x.shape
    k, s, p = kernel_size, stride, padding
    c_out = params["pw2_w"].shape[0]

    ho = (h + 2 * p - k) // s + 1
    wo = (w + 2 * p - k) // s + 1
    ho2 = ho + 2 * p - k + 1
    wo2 = wo + 2 * p - k + 1

    # NCHW -> NHWC once, ONE fused zero-pad (conv halo + stride round-up),
    # stride-phase split only when s > 1 so the kernel only needs unit-stride
    # slices.  (ReLU commutes with zero padding.)
    hp, wp = h + 2 * p, w + 2 * p
    hq, wq = -(-hp // s), -(-wp // s)
    x_nhwc = jnp.transpose(x, (0, 2, 3, 1)).astype(jnp.float32)
    xp = jnp.pad(x_nhwc, ((0, 0), (p, hq * s - h - p), (p, wq * s - w - p),
                          (0, 0)))
    if s == 1:
        xps = xp.reshape(n, 1, hq, wq, c_in)
    else:
        xps = xp.reshape(n, hq, s, wq, s, c_in).transpose(0, 2, 4, 1, 3, 5)
        xps = xps.reshape(n, s * s, hq, wq, c_in)

    # Torch-layout weights -> kernel layout.  Eval-mode BN is folded:
    # the scale goes into the 1x1 weights, only the bias stays in-kernel.
    dw1 = params["dw1_w"][:, 0].transpose(1, 2, 0).reshape(k * k, 1, 1, c_in)
    dw2 = params["dw2_w"][:, 0].transpose(1, 2, 0).reshape(k * k, 1, 1, c_in)
    dw1 = dw1.astype(jnp.float32)
    dw2 = dw2.astype(jnp.float32)

    g1, be1, m1, v1 = params["bn1"]
    a1 = g1 / jnp.sqrt(v1 + eps)                                 # (C_in,)
    b1 = (be1 - m1 * a1).reshape(1, c_in).astype(jnp.float32)
    pw1 = ((params["pw1_w"][:, :, 0, 0] * a1[:, None]).T
           ).astype(jnp.bfloat16)                                # (C_in, C_in)

    g2, be2, m2, v2 = params["bn2"]
    a2 = g2 / jnp.sqrt(v2 + eps)                                 # (C_out,)
    b2 = (be2 - m2 * a2).reshape(c_out, 1).astype(jnp.float32)
    pw2 = (params["pw2_w"][:, :, 0, 0] * a2[:, None]
           ).astype(jnp.bfloat16)                                # (C_out, C_in)

    kernel = functools.partial(
        _sepconv_kernel, k=k, stride=s, padding=p,
        ho=ho, wo=wo, ho2=ho2, wo2=wo2, c_in=c_in, c_out=c_out)

    # Working-set estimate (double-buffered blocks + weights + scratch).
    bytes_needed = 4 * (2 * (s * s * hq * wq * c_in)
                        + 2 * (ho2 * wo2 * c_out)
                        + (ho + 2 * p) * (wo + 2 * p) * c_in
                        + 2 * 2 * k * k * c_in
                        + 2 * (c_in + c_out))
    bytes_needed += 2 * 2 * (c_in * c_in + c_out * c_in)         # bf16 weights
    if bytes_needed > 40 * 1024 * 1024:
        # TODO(synk): add a row-tiled grid axis (with halo) for huge images.
        raise NotImplementedError(
            "SepConv block too large for the single-image VMEM kernel.")
    vmem_limit = int(min(48 * 1024 * 1024,
                         max(2 * bytes_needed, 4 * 1024 * 1024)))

    out = pl.pallas_call(
        kernel,
        out_shape=jax.ShapeDtypeStruct((n, c_out, ho2 * wo2), jnp.float32),
        grid_spec=pltpu.PrefetchScalarGridSpec(
            num_scalar_prefetch=0,
            grid=(n,),
            in_specs=[
                pl.BlockSpec((1, s * s, hq, wq, c_in),
                             lambda i: (i, 0, 0, 0, 0)),
                pl.BlockSpec((k * k, 1, 1, c_in), lambda i: (0, 0, 0, 0)),
                pl.BlockSpec((c_in, c_in), lambda i: (0, 0)),
                pl.BlockSpec((1, c_in), lambda i: (0, 0)),
                pl.BlockSpec((k * k, 1, 1, c_in), lambda i: (0, 0, 0, 0)),
                pl.BlockSpec((c_out, c_in), lambda i: (0, 0)),
                pl.BlockSpec((c_out, 1), lambda i: (0, 0)),
            ],
            out_specs=pl.BlockSpec((1, c_out, ho2 * wo2),
                                   lambda i: (i, 0, 0)),
            scratch_shapes=[
                pltpu.VMEM((ho + 2 * p, wo + 2 * p, c_in), jnp.float32),
            ],
        ),
        compiler_params=pltpu.CompilerParams(
            dimension_semantics=("parallel",),
            vmem_limit_bytes=vmem_limit,
        ),
    )(xps, dw1, pw1, b1, dw2, pw2, b2)

    # (N, C_out, Ho2*Wo2) is already NCHW-flattened: reshape only, no transpose.
    return out.reshape(n, c_out, ho2, wo2)


def sep_conv_reference(x, params, *, kernel_size, stride, padding, eps=1e-5):
    """Pure-JAX (XLA) reference, NCHW, eval-mode BN."""
    k, s, p = kernel_size, stride, padding
    c_in = x.shape[1]
    dn = ("NCHW", "OIHW", "NCHW")
    prec = lax.Precision.HIGHEST

    def bn(y, g, b, m, v):
        inv = 1.0 / jnp.sqrt(v + eps)
        return ((y - m[None, :, None, None]) * inv[None, :, None, None]
                * g[None, :, None, None] + b[None, :, None, None])

    y = jnp.maximum(x, 0.0)
    y = lax.conv_general_dilated(y, params["dw1_w"], (s, s), [(p, p), (p, p)],
                                 dimension_numbers=dn,
                                 feature_group_count=c_in, precision=prec)
    y = lax.conv_general_dilated(y, params["pw1_w"], (1, 1), [(0, 0), (0, 0)],
                                 dimension_numbers=dn, precision=prec)
    y = bn(y, *params["bn1"])
    y = jnp.maximum(y, 0.0)
    y = lax.conv_general_dilated(y, params["dw2_w"], (1, 1), [(p, p), (p, p)],
                                 dimension_numbers=dn,
                                 feature_group_count=c_in, precision=prec)
    y = lax.conv_general_dilated(y, params["pw2_w"], (1, 1), [(0, 0), (0, 0)],
                                 dimension_numbers=dn, precision=prec)
    y = bn(y, *params["bn2"])
    return y


if __name__ == "__main__":
    n, c_in, c_out, h, w = 2, 4, 8, 16, 16
    k, p = 3, 1

    keys = jax.random.split(jax.random.PRNGKey(0), 13)
    params = {
        "dw1_w": 0.3 * jax.random.normal(keys[0], (c_in, 1, k, k), jnp.float32),
        "pw1_w": 0.3 * jax.random.normal(keys[1], (c_in, c_in, 1, 1), jnp.float32),
        "bn1": (1.0 + 0.1 * jax.random.normal(keys[2], (c_in,), jnp.float32),
                0.1 * jax.random.normal(keys[3], (c_in,), jnp.float32),
                0.1 * jax.random.normal(keys[4], (c_in,), jnp.float32),
                0.5 + jnp.abs(jax.random.normal(keys[5], (c_in,), jnp.float32))),
        "dw2_w": 0.3 * jax.random.normal(keys[6], (c_in, 1, k, k), jnp.float32),
        "pw2_w": 0.3 * jax.random.normal(keys[7], (c_out, c_in, 1, 1), jnp.float32),
        "bn2": (1.0 + 0.1 * jax.random.normal(keys[8], (c_out,), jnp.float32),
                0.1 * jax.random.normal(keys[9], (c_out,), jnp.float32),
                0.1 * jax.random.normal(keys[10], (c_out,), jnp.float32),
                0.5 + jnp.abs(jax.random.normal(keys[11], (c_out,), jnp.float32))),
    }
    x = jax.random.normal(keys[12], (n, c_in, h, w), jnp.float32)

    for stride in (1, 2):
        out = sep_conv_forward(x, params, kernel_size=k, stride=stride, padding=p)
        out = jax.block_until_ready(out)
        ref = sep_conv_reference(x, params, kernel_size=k, stride=stride, padding=p)
        assert out.shape == ref.shape, (out.shape, ref.shape)
        max_diff = float(jnp.max(jnp.abs(out - ref)))
        assert bool(jnp.allclose(out, ref, rtol=2e-2, atol=2e-2)), max_diff

    print("KERNEL_OK")
</pallas_src>

<mosaic_0001>
module attributes {stable_mosaic.version = 11 : i64} {
  func.func @_sepconv_kernel(%arg0: i32, %arg1: memref<1x1x18x18x4xf32, #tpu.memory_space<vmem>>, %arg2: memref<9x1x1x4xf32, #tpu.memory_space<vmem>>, %arg3: memref<4x4xbf16, #tpu.memory_space<vmem>>, %arg4: memref<1x4xf32, #tpu.memory_space<vmem>>, %arg5: memref<9x1x1x4xf32, #tpu.memory_space<vmem>>, %arg6: memref<8x4xbf16, #tpu.memory_space<vmem>>, %arg7: memref<8x1xf32, #tpu.memory_space<vmem>>, %arg8: memref<1x8x256xf32, #tpu.memory_space<vmem>>, %arg9: memref<18x18x4xf32, #tpu.memory_space<vmem>>) attributes {dimension_semantics = [#tpu.dimension_semantics<parallel>], iteration_bounds = array<i64: 2>, scalar_prefetch = 0 : i64, scratch_operands = 1 : i64, tpu.core_type = #tpu.core_type<tc>, window_params = [{transform_indices = @transform_0, window_bounds = array<i64: 1, 1, 18, 18, 4>}, {pipeline_mode = #tpu.pipeline_mode<synchronous>, transform_indices = @transform_1, window_bounds = array<i64: 9, 1, 1, 4>}, {pipeline_mode = #tpu.pipeline_mode<synchronous>, transform_indices = @transform_2, window_bounds = array<i64: 4, 4>}, {pipeline_mode = #tpu.pipeline_mode<synchronous>, transform_indices = @transform_3, window_bounds = array<i64: 1, 4>}, {pipeline_mode = #tpu.pipeline_mode<synchronous>, transform_indices = @transform_4, window_bounds = array<i64: 9, 1, 1, 4>}, {pipeline_mode = #tpu.pipeline_mode<synchronous>, transform_indices = @transform_5, window_bounds = array<i64: 8, 4>}, {pipeline_mode = #tpu.pipeline_mode<synchronous>, transform_indices = @transform_6, window_bounds = array<i64: 8, 1>}, {transform_indices = @transform_7, window_bounds = array<i64: 1, 8, 256>}]} {
    %c0 = arith.constant 0 : index
    %c0_0 = arith.constant 0 : index
    %c0_1 = arith.constant 0 : index
    %c0_2 = arith.constant 0 : index
    %0 = vector.load %arg2[%c0, %c0_0, %c0_1, %c0_2] : memref<9x1x1x4xf32, #tpu.memory_space<vmem>>, vector<9x1x1x4xf32>
    %c0_3 = arith.constant 0 : index
    %c0_4 = arith.constant 0 : index
    %c0_5 = arith.constant 0 : index
    %c0_6 = arith.constant 0 : index
    %c0_7 = arith.constant 0 : index
    %1 = vector.load %arg1[%c0_3, %c0_4, %c0_5, %c0_6, %c0_7] : memref<1x1x18x18x4xf32, #tpu.memory_space<vmem>>, vector<1x1x18x18x4xf32>
    %2 = vector.shape_cast %1 : vector<1x1x18x18x4xf32> to vector<18x18x4xf32>
    %cst = arith.constant 0.000000e+00 : f32
    %3 = vector.broadcast %cst : f32 to vector<18x18x4xf32>
    %4 = arith.maximumf %2, %3 : vector<18x18x4xf32>
    %cst_8 = arith.constant 0.000000e+00 : f32
    %5 = vector.broadcast %cst_8 : f32 to vector<16x16x4xf32>
    %6 = vector.extract_strided_slice %4 {offsets = [0, 0, 0], sizes = [16, 16, 4], strides = [1, 1, 1]} : vector<18x18x4xf32> to vector<16x16x4xf32>
    %7 = vector.extract_strided_slice %0 {offsets = [0, 0, 0, 0], sizes = [1, 1, 1, 4], strides = [1, 1, 1, 1]} : vector<9x1x1x4xf32> to vector<1x1x1x4xf32>
    %8 = vector.shape_cast %7 : vector<1x1x1x4xf32> to vector<1x1x4xf32>
    %9 = vector.broadcast %8 : vector<1x1x4xf32> to vector<16x16x4xf32>
    %10 = arith.mulf %6, %9 : vector<16x16x4xf32>
    %11 = arith.addf %5, %10 : vector<16x16x4xf32>
    %12 = vector.extract_strided_slice %4 {offsets = [0, 1, 0], sizes = [16, 16, 4], strides = [1, 1, 1]} : vector<18x18x4xf32> to vector<16x16x4xf32>
    %13 = vector.extract_strided_slice %0 {offsets = [1, 0, 0, 0], sizes = [1, 1, 1, 4], strides = [1, 1, 1, 1]} : vector<9x1x1x4xf32> to vector<1x1x1x4xf32>
    %14 = vector.shape_cast %13 : vector<1x1x1x4xf32> to vector<1x1x4xf32>
    %15 = vector.broadcast %14 : vector<1x1x4xf32> to vector<16x16x4xf32>
    %16 = arith.mulf %12, %15 : vector<16x16x4xf32>
    %17 = arith.addf %11, %16 : vector<16x16x4xf32>
    %18 = vector.extract_strided_slice %4 {offsets = [0, 2, 0], sizes = [16, 16, 4], strides = [1, 1, 1]} : vector<18x18x4xf32> to vector<16x16x4xf32>
    %19 = vector.extract_strided_slice %0 {offsets = [2, 0, 0, 0], sizes = [1, 1, 1, 4], strides = [1, 1, 1, 1]} : vector<9x1x1x4xf32> to vector<1x1x1x4xf32>
    %20 = vector.shape_cast %19 : vector<1x1x1x4xf32> to vector<1x1x4xf32>
    %21 = vector.broadcast %20 : vector<1x1x4xf32> to vector<16x16x4xf32>
    %22 = arith.mulf %18, %21 : vector<16x16x4xf32>
    %23 = arith.addf %17, %22 : vector<16x16x4xf32>
    %24 = vector.extract_strided_slice %4 {offsets = [1, 0, 0], sizes = [16, 16, 4], strides = [1, 1, 1]} : vector<18x18x4xf32> to vector<16x16x4xf32>
    %25 = vector.extract_strided_slice %0 {offsets = [3, 0, 0, 0], sizes = [1, 1, 1, 4], strides = [1, 1, 1, 1]} : vector<9x1x1x4xf32> to vector<1x1x1x4xf32>
    %26 = vector.shape_cast %25 : vector<1x1x1x4xf32> to vector<1x1x4xf32>
    %27 = vector.broadcast %26 : vector<1x1x4xf32> to vector<16x16x4xf32>
    %28 = arith.mulf %24, %27 : vector<16x16x4xf32>
    %29 = arith.addf %23, %28 : vector<16x16x4xf32>
    %30 = vector.extract_strided_slice %4 {offsets = [1, 1, 0], sizes = [16, 16, 4], strides = [1, 1, 1]} : vector<18x18x4xf32> to vector<16x16x4xf32>
    %31 = vector.extract_strided_slice %0 {offsets = [4, 0, 0, 0], sizes = [1, 1, 1, 4], strides = [1, 1, 1, 1]} : vector<9x1x1x4xf32> to vector<1x1x1x4xf32>
    %32 = vector.shape_cast %31 : vector<1x1x1x4xf32> to vector<1x1x4xf32>
    %33 = vector.broadcast %32 : vector<1x1x4xf32> to vector<16x16x4xf32>
    %34 = arith.mulf %30, %33 : vector<16x16x4xf32>
    %35 = arith.addf %29, %34 : vector<16x16x4xf32>
    %36 = vector.extract_strided_slice %4 {offsets = [1, 2, 0], sizes = [16, 16, 4], strides = [1, 1, 1]} : vector<18x18x4xf32> to vector<16x16x4xf32>
    %37 = vector.extract_strided_slice %0 {offsets = [5, 0, 0, 0], sizes = [1, 1, 1, 4], strides = [1, 1, 1, 1]} : vector<9x1x1x4xf32> to vector<1x1x1x4xf32>
    %38 = vector.shape_cast %37 : vector<1x1x1x4xf32> to vector<1x1x4xf32>
    %39 = vector.broadcast %38 : vector<1x1x4xf32> to vector<16x16x4xf32>
    %40 = arith.mulf %36, %39 : vector<16x16x4xf32>
    %41 = arith.addf %35, %40 : vector<16x16x4xf32>
    %42 = vector.extract_strided_slice %4 {offsets = [2, 0, 0], sizes = [16, 16, 4], strides = [1, 1, 1]} : vector<18x18x4xf32> to vector<16x16x4xf32>
    %43 = vector.extract_strided_slice %0 {offsets = [6, 0, 0, 0], sizes = [1, 1, 1, 4], strides = [1, 1, 1, 1]} : vector<9x1x1x4xf32> to vector<1x1x1x4xf32>
    %44 = vector.shape_cast %43 : vector<1x1x1x4xf32> to vector<1x1x4xf32>
    %45 = vector.broadcast %44 : vector<1x1x4xf32> to vector<16x16x4xf32>
    %46 = arith.mulf %42, %45 : vector<16x16x4xf32>
    %47 = arith.addf %41, %46 : vector<16x16x4xf32>
    %48 = vector.extract_strided_slice %4 {offsets = [2, 1, 0], sizes = [16, 16, 4], strides = [1, 1, 1]} : vector<18x18x4xf32> to vector<16x16x4xf32>
    %49 = vector.extract_strided_slice %0 {offsets = [7, 0, 0, 0], sizes = [1, 1, 1, 4], strides = [1, 1, 1, 1]} : vector<9x1x1x4xf32> to vector<1x1x1x4xf32>
    %50 = vector.shape_cast %49 : vector<1x1x1x4xf32> to vector<1x1x4xf32>
    %51 = vector.broadcast %50 : vector<1x1x4xf32> to vector<16x16x4xf32>
    %52 = arith.mulf %48, %51 : vector<16x16x4xf32>
    %53 = arith.addf %47, %52 : vector<16x16x4xf32>
    %54 = vector.extract_strided_slice %4 {offsets = [2, 2, 0], sizes = [16, 16, 4], strides = [1, 1, 1]} : vector<18x18x4xf32> to vector<16x16x4xf32>
    %55 = vector.extract_strided_slice %0 {offsets = [8, 0, 0, 0], sizes = [1, 1, 1, 4], strides = [1, 1, 1, 1]} : vector<9x1x1x4xf32> to vector<1x1x1x4xf32>
    %56 = vector.shape_cast %55 : vector<1x1x1x4xf32> to vector<1x1x4xf32>
    %57 = vector.broadcast %56 : vector<1x1x4xf32> to vector<16x16x4xf32>
    %58 = arith.mulf %54, %57 : vector<16x16x4xf32>
    %59 = arith.addf %53, %58 : vector<16x16x4xf32>
    %60 = vector.shape_cast %59 : vector<16x16x4xf32> to vector<256x4xf32>
    %61 = arith.truncf %60 : vector<256x4xf32> to vector<256x4xbf16>
    %c0_9 = arith.constant 0 : index
    %c0_10 = arith.constant 0 : index
    %62 = vector.load %arg3[%c0_9, %c0_10] : memref<4x4xbf16, #tpu.memory_space<vmem>>, vector<4x4xbf16>
    %cst_11 = arith.constant dense<0.000000e+00> : vector<256x4xf32>
    %63 = tpu.matmul %61, %62, %cst_11 {dimension_numbers = #tpu.dot_dimension_numbers<[1], [0], [0], [1], [0, 0, 1, 1], [], []>} : vector<256x4xbf16>, vector<4x4xbf16>, vector<256x4xf32> -> vector<256x4xf32>
    %c0_12 = arith.constant 0 : index
    %c0_13 = arith.constant 0 : index
    %64 = vector.load %arg4[%c0_12, %c0_13] : memref<1x4xf32, #tpu.memory_space<vmem>>, vector<1x4xf32>
    %65 = vector.broadcast %64 : vector<1x4xf32> to vector<256x4xf32>
    %66 = arith.addf %63, %65 : vector<256x4xf32>
    %cst_14 = arith.constant 0.000000e+00 : f32
    %67 = vector.broadcast %cst_14 : f32 to vector<256x4xf32>
    %68 = arith.maximumf %66, %67 : vector<256x4xf32>
    %69 = vector.shape_cast %68 : vector<256x4xf32> to vector<16x16x4xf32>
    %cst_15 = arith.constant 0.000000e+00 : f32
    %70 = vector.broadcast %cst_15 : f32 to vector<1x18x4xf32>
    %c0_16 = arith.constant 0 : index
    %c0_17 = arith.constant 0 : index
    %c0_18 = arith.constant 0 : index
    %71 = vector.load %arg9[%c0_16, %c0_17, %c0_18] : memref<18x18x4xf32, #tpu.memory_space<vmem>>, vector<1x18x4xf32>
    tpu.vector_store %arg9[%c0_16, %c0_17, %c0_18], %70 {strides = array<i32>} : memref<18x18x4xf32, #tpu.memory_space<vmem>>, vector<1x18x4xf32>,
    %cst_19 = arith.constant 0.000000e+00 : f32
    %72 = vector.broadcast %cst_19 : f32 to vector<1x18x4xf32>
    %c17 = arith.constant 17 : index
    %c0_20 = arith.constant 0 : index
    %c0_21 = arith.constant 0 : index
    %73 = vector.load %arg9[%c17, %c0_20, %c0_21] : memref<18x18x4xf32, #tpu.memory_space<vmem>>, vector<1x18x4xf32>
    tpu.vector_store %arg9[%c17, %c0_20, %c0_21], %72 {strides = array<i32>} : memref<18x18x4xf32, #tpu.memory_space<vmem>>, vector<1x18x4xf32>,
    %cst_22 = arith.constant 0.000000e+00 : f32
    %74 = vector.broadcast %cst_22 : f32 to vector<18x1x4xf32>
    %c0_23 = arith.constant 0 : index
    %c0_24 = arith.constant 0 : index
    %c0_25 = arith.constant 0 : index
    %75 = vector.load %arg9[%c0_23, %c0_24, %c0_25] : memref<18x18x4xf32, #tpu.memory_space<vmem>>, vector<18x1x4xf32>
    tpu.vector_store %arg9[%c0_23, %c0_24, %c0_25], %74 {strides = array<i32>} : memref<18x18x4xf32, #tpu.memory_space<vmem>>, vector<18x1x4xf32>,
    %cst_26 = arith.constant 0.000000e+00 : f32
    %76 = vector.broadcast %cst_26 : f32 to vector<18x1x4xf32>
    %c0_27 = arith.constant 0 : index
    %c17_28 = arith.constant 17 : index
    %c0_29 = arith.constant 0 : index
    %77 = vector.load %arg9[%c0_27, %c17_28, %c0_29] : memref<18x18x4xf32, #tpu.memory_space<vmem>>, vector<18x1x4xf32>
    tpu.vector_store %arg9[%c0_27, %c17_28, %c0_29], %76 {strides = array<i32>} : memref<18x18x4xf32, #tpu.memory_space<vmem>>, vector<18x1x4xf32>,
    %c1 = arith.constant 1 : index
    %c1_30 = arith.constant 1 : index
    %c0_31 = arith.constant 0 : index
    %78 = vector.load %arg9[%c1, %c1_30, %c0_31] : memref<18x18x4xf32, #tpu.memory_space<vmem>>, vector<16x16x4xf32>
    tpu.vector_store %arg9[%c1, %c1_30, %c0_31], %69 {strides = array<i32>} : memref<18x18x4xf32, #tpu.memory_space<vmem>>, vector<16x16x4xf32>,
    %c0_32 = arith.constant 0 : index
    %c0_33 = arith.constant 0 : index
    %c0_34 = arith.constant 0 : index
    %79 = vector.load %arg9[%c0_32, %c0_33, %c0_34] : memref<18x18x4xf32, #tpu.memory_space<vmem>>, vector<18x18x4xf32>
    %c0_35 = arith.constant 0 : index
    %c0_36 = arith.constant 0 : index
    %c0_37 = arith.constant 0 : index
    %c0_38 = arith.constant 0 : index
    %80 = vector.load %arg5[%c0_35, %c0_36, %c0_37, %c0_38] : memref<9x1x1x4xf32, #tpu.memory_space<vmem>>, vector<9x1x1x4xf32>
    %cst_39 = arith.constant 0.000000e+00 : f32
    %81 = vector.broadcast %cst_39 : f32 to vector<16x16x4xf32>
    %82 = vector.extract_strided_slice %79 {offsets = [0, 0, 0], sizes = [16, 16, 4], strides = [1, 1, 1]} : vector<18x18x4xf32> to vector<16x16x4xf32>
    %83 = vector.extract_strided_slice %80 {offsets = [0, 0, 0, 0], sizes = [1, 1, 1, 4], strides = [1, 1, 1, 1]} : vector<9x1x1x4xf32> to vector<1x1x1x4xf32>
    %84 = vector.shape_cast %83 : vector<1x1x1x4xf32> to vector<1x1x4xf32>
    %85 = vector.broadcast %84 : vector<1x1x4xf32> to vector<16x16x4xf32>
    %86 = arith.mulf %82, %85 : vector<16x16x4xf32>
    %87 = arith.addf %81, %86 : vector<16x16x4xf32>
    %88 = vector.extract_strided_slice %79 {offsets = [0, 1, 0], sizes = [16, 16, 4], strides = [1, 1, 1]} : vector<18x18x4xf32> to vector<16x16x4xf32>
    %89 = vector.extract_strided_slice %80 {offsets = [1, 0, 0, 0], sizes = [1, 1, 1, 4], strides = [1, 1, 1, 1]} : vector<9x1x1x4xf32> to vector<1x1x1x4xf32>
    %90 = vector.shape_cast %89 : vector<1x1x1x4xf32> to vector<1x1x4xf32>
    %91 = vector.broadcast %90 : vector<1x1x4xf32> to vector<16x16x4xf32>
    %92 = arith.mulf %88, %91 : vector<16x16x4xf32>
    %93 = arith.addf %87, %92 : vector<16x16x4xf32>
    %94 = vector.extract_strided_slice %79 {offsets = [0, 2, 0], sizes = [16, 16, 4], strides = [1, 1, 1]} : vector<18x18x4xf32> to vector<16x16x4xf32>
    %95 = vector.extract_strided_slice %80 {offsets = [2, 0, 0, 0], sizes = [1, 1, 1, 4], strides = [1, 1, 1, 1]} : vector<9x1x1x4xf32> to vector<1x1x1x4xf32>
    %96 = vector.shape_cast %95 : vector<1x1x1x4xf32> to vector<1x1x4xf32>
    %97 = vector.broadcast %96 : vector<1x1x4xf32> to vector<16x16x4xf32>
    %98 = arith.mulf %94, %97 : vector<16x16x4xf32>
    %99 = arith.addf %93, %98 : vector<16x16x4xf32>
    %100 = vector.extract_strided_slice %79 {offsets = [1, 0, 0], sizes = [16, 16, 4], strides = [1, 1, 1]} : vector<18x18x4xf32> to vector<16x16x4xf32>
    %101 = vector.extract_strided_slice %80 {offsets = [3, 0, 0, 0], sizes = [1, 1, 1, 4], strides = [1, 1, 1, 1]} : vector<9x1x1x4xf32> to vector<1x1x1x4xf32>
    %102 = vector.shape_cast %101 : vector<1x1x1x4xf32> to vector<1x1x4xf32>
    %103 = vector.broadcast %102 : vector<1x1x4xf32> to vector<16x16x4xf32>
    %104 = arith.mulf %100, %103 : vector<16x16x4xf32>
    %105 = arith.addf %99, %104 : vector<16x16x4xf32>
    %106 = vector.extract_strided_slice %79 {offsets = [1, 1, 0], sizes = [16, 16, 4], strides = [1, 1, 1]} : vector<18x18x4xf32> to vector<16x16x4xf32>
    %107 = vector.extract_strided_slice %80 {offsets = [4, 0, 0, 0], sizes = [1, 1, 1, 4], strides = [1, 1, 1, 1]} : vector<9x1x1x4xf32> to vector<1x1x1x4xf32>
    %108 = vector.shape_cast %107 : vector<1x1x1x4xf32> to vector<1x1x4xf32>
    %109 = vector.broadcast %108 : vector<1x1x4xf32> to vector<16x16x4xf32>
    %110 = arith.mulf %106, %109 : vector<16x16x4xf32>
    %111 = arith.addf %105, %110 : vector<16x16x4xf32>
    %112 = vector.extract_strided_slice %79 {offsets = [1, 2, 0], sizes = [16, 16, 4], strides = [1, 1, 1]} : vector<18x18x4xf32> to vector<16x16x4xf32>
    %113 = vector.extract_strided_slice %80 {offsets = [5, 0, 0, 0], sizes = [1, 1, 1, 4], strides = [1, 1, 1, 1]} : vector<9x1x1x4xf32> to vector<1x1x1x4xf32>
    %114 = vector.shape_cast %113 : vector<1x1x1x4xf32> to vector<1x1x4xf32>
    %115 = vector.broadcast %114 : vector<1x1x4xf32> to vector<16x16x4xf32>
    %116 = arith.mulf %112, %115 : vector<16x16x4xf32>
    %117 = arith.addf %111, %116 : vector<16x16x4xf32>
    %118 = vector.extract_strided_slice %79 {offsets = [2, 0, 0], sizes = [16, 16, 4], strides = [1, 1, 1]} : vector<18x18x4xf32> to vector<16x16x4xf32>
    %119 = vector.extract_strided_slice %80 {offsets = [6, 0, 0, 0], sizes = [1, 1, 1, 4], strides = [1, 1, 1, 1]} : vector<9x1x1x4xf32> to vector<1x1x1x4xf32>
    %120 = vector.shape_cast %119 : vector<1x1x1x4xf32> to vector<1x1x4xf32>
    %121 = vector.broadcast %120 : vector<1x1x4xf32> to vector<16x16x4xf32>
    %122 = arith.mulf %118, %121 : vector<16x16x4xf32>
    %123 = arith.addf %117, %122 : vector<16x16x4xf32>
    %124 = vector.extract_strided_slice %79 {offsets = [2, 1, 0], sizes = [16, 16, 4], strides = [1, 1, 1]} : vector<18x18x4xf32> to vector<16x16x4xf32>
    %125 = vector.extract_strided_slice %80 {offsets = [7, 0, 0, 0], sizes = [1, 1, 1, 4], strides = [1, 1, 1, 1]} : vector<9x1x1x4xf32> to vector<1x1x1x4xf32>
    %126 = vector.shape_cast %125 : vector<1x1x1x4xf32> to vector<1x1x4xf32>
    %127 = vector.broadcast %126 : vector<1x1x4xf32> to vector<16x16x4xf32>
    %128 = arith.mulf %124, %127 : vector<16x16x4xf32>
    %129 = arith.addf %123, %128 : vector<16x16x4xf32>
    %130 = vector.extract_strided_slice %79 {offsets = [2, 2, 0], sizes = [16, 16, 4], strides = [1, 1, 1]} : vector<18x18x4xf32> to vector<16x16x4xf32>
    %131 = vector.extract_strided_slice %80 {offsets = [8, 0, 0, 0], sizes = [1, 1, 1, 4], strides = [1, 1, 1, 1]} : vector<9x1x1x4xf32> to vector<1x1x1x4xf32>
    %132 = vector.shape_cast %131 : vector<1x1x1x4xf32> to vector<1x1x4xf32>
    %133 = vector.broadcast %132 : vector<1x1x4xf32> to vector<16x16x4xf32>
    %134 = arith.mulf %130, %133 : vector<16x16x4xf32>
    %135 = arith.addf %129, %134 : vector<16x16x4xf32>
    %136 = vector.shape_cast %135 : vector<16x16x4xf32> to vector<256x4xf32>
    %137 = arith.truncf %136 : vector<256x4xf32> to vector<256x4xbf16>
    %c0_40 = arith.constant 0 : index
    %c0_41 = arith.constant 0 : index
    %138 = vector.load %arg6[%c0_40, %c0_41] : memref<8x4xbf16, #tpu.memory_space<vmem>>, vector<8x4xbf16>
    %cst_42 = arith.constant dense<0.000000e+00> : vector<8x256xf32>
    %139 = tpu.matmul %138, %137, %cst_42 {dimension_numbers = #tpu.dot_dimension_numbers<[1], [1], [0], [0], [0, 0, 1, 0], [], []>} : vector<8x4xbf16>, vector<256x4xbf16>, vector<8x256xf32> -> vector<8x256xf32>
    %c0_43 = arith.constant 0 : index
    %c0_44 = arith.constant 0 : index
    %140 = vector.load %arg7[%c0_43, %c0_44] : memref<8x1xf32, #tpu.memory_space<vmem>>, vector<8x1xf32>
    %141 = vector.broadcast %140 : vector<8x1xf32> to vector<8x256xf32>
    %142 = arith.addf %139, %141 : vector<8x256xf32>
    %c0_45 = arith.constant 0 : index
    %c0_46 = arith.constant 0 : index
    %c0_47 = arith.constant 0 : index
    %143 = vector.load %arg8[%c0_45, %c0_46, %c0_47] : memref<1x8x256xf32, #tpu.memory_space<vmem>>, vector<1x8x256xf32>
    %144 = vector.shape_cast %143 : vector<1x8x256xf32> to vector<8x256xf32>
    %145 = vector.shape_cast %142 : vector<8x256xf32> to vector<1x8x256xf32>
    tpu.vector_store %arg8[%c0_45, %c0_46, %c0_47], %145 {strides = array<i32>} : memref<1x8x256xf32, #tpu.memory_space<vmem>>, vector<1x8x256xf32>,
    return
  }
  func.func @transform_0(%arg0: i32) -> (i32, i32, i32, i32, i32) {
    %c0_i32 = arith.constant 0 : i32
    %c0_i32_0 = arith.constant 0 : i32
    %c0_i32_1 = arith.constant 0 : i32
    %c0_i32_2 = arith.constant 0 : i32
    %c0_i32_3 = arith.constant 0 : i32
    return %arg0, %c0_i32, %c0_i32_0, %c0_i32_1, %c0_i32_2 : i32, i32, i32, i32, i32
  }
  func.func @transform_1(%arg0: i32) -> (i32, i32, i32, i32) {
    %c0_i32 = arith.constant 0 : i32
    %c0_i32_0 = arith.constant 0 : i32
    %c0_i32_1 = arith.constant 0 : i32
    %c0_i32_2 = arith.constant 0 : i32
    %c0_i32_3 = arith.constant 0 : i32
    return %c0_i32, %c0_i32_0, %c0_i32_1, %c0_i32_2 : i32, i32, i32, i32
  }
  func.func @transform_2(%arg0: i32) -> (i32, i32) {
    %c0_i32 = arith.constant 0 : i32
    %c0_i32_0 = arith.constant 0 : i32
    %c0_i32_1 = arith.constant 0 : i32
    return %c0_i32, %c0_i32_0 : i32, i32
  }
  func.func @transform_3(%arg0: i32) -> (i32, i32) {
    %c0_i32 = arith.constant 0 : i32
    %c0_i32_0 = arith.constant 0 : i32
    %c0_i32_1 = arith.constant 0 : i32
    return %c0_i32, %c0_i32_0 : i32, i32
  }
  func.func @transform_4(%arg0: i32) -> (i32, i32, i32, i32) {
    %c0_i32 = arith.constant 0 : i32
    %c0_i32_0 = arith.constant 0 : i32
    %c0_i32_1 = arith.constant 0 : i32
    %c0_i32_2 = arith.constant 0 : i32
    %c0_i32_3 = arith.constant 0 : i32
    return %c0_i32, %c0_i32_0, %c0_i32_1, %c0_i32_2 : i32, i32, i32, i32
  }
  func.func @transform_5(%arg0: i32) -> (i32, i32) {
    %c0_i32 = arith.constant 0 : i32
    %c0_i32_0 = arith.constant 0 : i32
    %c0_i32_1 = arith.constant 0 : i32
    return %c0_i32, %c0_i32_0 : i32, i32
  }
  func.func @transform_6(%arg0: i32) -> (i32, i32) {
    %c0_i32 = arith.constant 0 : i32
    %c0_i32_0 = arith.constant 0 : i32
    %c0_i32_1 = arith.constant 0 : i32
    return %c0_i32, %c0_i32_0 : i32, i32
  }
  func.func @transform_7(%arg0: i32) -> (i32, i32, i32) {
    %c0_i32 = arith.constant 0 : i32
    %c0_i32_0 = arith.constant 0 : i32
    %c0_i32_1 = arith.constant 0 : i32
    return %arg0, %c0_i32, %c0_i32_0 : i32, i32, i32
  }
}

</mosaic_0001>

<llo_original>
// kernel: tpu_custom_call.1
$region0: #{tpu_custom_call.1}
  #allocation0 [shape = 'u32[]', space=smem, size = 0x4, offset = 0x4, fixed_abs, tag = 'smem constant byte address 0x4 - core index']
  #allocation1 [shape = 'u32[72,128]{1,0:T(1,128)}', space=vmem, size = 0x9000, scoped, tag = 'internal scratch']
  #allocation2 [shape = 'f32[18,18,4]{2,1,0:T(8,128)}', space=vmem, size = 0x36000, scoped, tag = 'scratch operand']
  %s0 = inlined_call_operand.vmem [shape: f32[2,1,18,18,4], index: 0, kind: input, shape index: {}]
  %s1 = inlined_call_operand.vmem [shape: f32[9,1,1,4], index: 1, kind: input, shape index: {}]
  %s2 = inlined_call_operand.vmem [shape: bf16[4,4], index: 2, kind: input, shape index: {}]
  %s3 = inlined_call_operand.vmem [shape: f32[1,4], index: 3, kind: input, shape index: {}]
  %s4 = inlined_call_operand.vmem [shape: f32[9,1,1,4], index: 4, kind: input, shape index: {}]
  %s5 = inlined_call_operand.vmem [shape: bf16[8,4], index: 5, kind: input, shape index: {}]
  %s6 = inlined_call_operand.vmem [shape: f32[8,1], index: 6, kind: input, shape index: {}]
  %s7 = inlined_call_operand.hbm [shape: f32[2,8,256], index: 7, kind: output, shape index: {}]
  %s8 = sld [smem:[#allocation0]]
  $region61: #{tpu_custom_call.1} parent=0
    _
  %s10 = ssub.s32 1, %s8
  %s11 = scalar_select 0, %s10, %s8
  $region1: #{tpu_custom_call.1} parent=0
    #allocation3 [shape = 'u8[16384]{0}', space=vmem, size = 0x4000, scoped, tag = 'output window, operand 0']
    #allocation4 [shape = 's32[2]{0}', space=sflag, size = 0x8, scoped, tag = 'scoped memory for tpu_custom_call.1']
    %12 = vsyncpa [#allocation4], 0
    %s13 = scalar_lea.sflag [#allocation4], 1
    %14 = vsyncpa %s13, 0
    loop: start=0, step=1, limit=4
    $region2: #{tpu_custom_call.1} parent=1 // loop_pre_header
      _
    $region3: #{tpu_custom_call.1} parent=1 // loop_header
      %s16 = sphi 0, %s20
      %p17 = scmp.ge.s32.totalorder %s16, 4
      %s26 = sphi 0, %s28
      %s29 = sphi 0, %s26
      %s30 = sphi 0, %s29
      %s46 = sphi 0, %s30
      %s50 = sphi 0, %s50
      %s52 = sphi 0, %s50
      %s53 = sphi 0, %s52
      %s67 = sphi 0, %s53
      %s71 = sphi 0, %s71
      %s73 = sphi 0, %s71
      %s74 = sphi 0, %s73
      %s88 = sphi 0, %s74
      %s92 = sphi 0, %s92
      %s94 = sphi 0, %s92
      %s95 = sphi 0, %s94
      %s109 = sphi 0, %s95
      %s113 = sphi 0, %s113
      %s115 = sphi 0, %s113
      %s116 = sphi 0, %s115
      %s130 = sphi 0, %s116
      %s134 = sphi 0, %s134
      %s136 = sphi 0, %s134
      %s137 = sphi 0, %s136
      %s151 = sphi 0, %s137
      %s155 = sphi 0, %s155
      %s157 = sphi 0, %s155
      %s158 = sphi 0, %s157
      %s172 = sphi 0, %s158
      %s178 = sphi 0, %s180
      %s181 = sphi 0, %s178
      %s182 = sphi 0, %s181
      %s198 = sphi 0, %s182
    $region4: #{tpu_custom_call.1} parent=1 // loop_header_branch
      %19 = sbr.rel (%p17) target = $region8
    $region5: #{tpu_custom_call.1} parent=1 // loop_body
      %s21 = ssub.s32 %s16, 1
      %s22 = ssub.s32 %s16, 2
      %s23 = sadd.s32 %s16, 1
      %s24 = ssub.s32 %s16, %s23
      %p25 = scmp.eq.s32.totalorder %s24, 0
      %s27 = sadd.s32 %s26, 1
      %s28 = scalar_select %p25, %s26, %s27
      %p31 = pneg %p25
      %p32 = scmp.eq.s32.totalorder %s16, 1
      %p33 = por %p31, %p32
      %p34 = scmp.ne.s32.totalorder %s26, %s29
      %p35 = scmp.eq.s32.totalorder %s16, 0
      %p36 = por %p34, %p35
      %p37 = scmp.ne.s32.totalorder %s26, %s29
      %p38 = scmp.eq.s32.totalorder %s21, 1
      %p39 = por %p37, %p38
      %p40 = scmp.ne.s32.totalorder %s29, %s30
      %p41 = scmp.eq.s32.totalorder %s21, 0
      %p42 = por %p40, %p41
      %p43 = scmp.ne.s32.totalorder %s29, %s30
      %p44 = scmp.eq.s32.totalorder %s22, 1
      %p45 = por %p43, %p44
      %p47 = scmp.ne.s32.totalorder %s30, %s46
      %p48 = scmp.eq.s32.totalorder %s22, 0
      %p49 = por %p47, %p48
      %s51 = sadd.s32 %s50, 1
      %p54 = scmp.eq.s32.totalorder %s16, 1
      %p55 = scmp.ne.s32.totalorder %s50, %s52
      %p56 = scmp.eq.s32.totalorder %s16, 0
      %p57 = por %p55, %p56
      %p58 = scmp.ne.s32.totalorder %s50, %s52
      %p59 = scmp.eq.s32.totalorder %s21, 1
      %p60 = por %p58, %p59
      %p61 = scmp.ne.s32.totalorder %s52, %s53
      %p62 = scmp.eq.s32.totalorder %s21, 0
      %p63 = por %p61, %p62
      %p64 = scmp.ne.s32.totalorder %s52, %s53
      %p65 = scmp.eq.s32.totalorder %s22, 1
      %p66 = por %p64, %p65
      %p68 = scmp.ne.s32.totalorder %s53, %s67
      %p69 = scmp.eq.s32.totalorder %s22, 0
      %p70 = por %p68, %p69
      %s72 = sadd.s32 %s71, 1
      %p75 = scmp.eq.s32.totalorder %s16, 1
      %p76 = scmp.ne.s32.totalorder %s71, %s73
      %p77 = scmp.eq.s32.totalorder %s16, 0
      %p78 = por %p76, %p77
      %p79 = scmp.ne.s32.totalorder %s71, %s73
      %p80 = scmp.eq.s32.totalorder %s21, 1
      %p81 = por %p79, %p80
      %p82 = scmp.ne.s32.totalorder %s73, %s74
      %p83 = scmp.eq.s32.totalorder %s21, 0
      %p84 = por %p82, %p83
      %p85 = scmp.ne.s32.totalorder %s73, %s74
      %p86 = scmp.eq.s32.totalorder %s22, 1
      %p87 = por %p85, %p86
      %p89 = scmp.ne.s32.totalorder %s74, %s88
      %p90 = scmp.eq.s32.totalorder %s22, 0
      %p91 = por %p89, %p90
      %s93 = sadd.s32 %s92, 1
      %p96 = scmp.eq.s32.totalorder %s16, 1
      %p97 = scmp.ne.s32.totalorder %s92, %s94
      %p98 = scmp.eq.s32.totalorder %s16, 0
      %p99 = por %p97, %p98
      %p100 = scmp.ne.s32.totalorder %s92, %s94
      %p101 = scmp.eq.s32.totalorder %s21, 1
      %p102 = por %p100, %p101
      %p103 = scmp.ne.s32.totalorder %s94, %s95
      %p104 = scmp.eq.s32.totalorder %s21, 0
      %p105 = por %p103, %p104
      %p106 = scmp.ne.s32.totalorder %s94, %s95
      %p107 = scmp.eq.s32.totalorder %s22, 1
      %p108 = por %p106, %p107
      %p110 = scmp.ne.s32.totalorder %s95, %s109
      %p111 = scmp.eq.s32.totalorder %s22, 0
      %p112 = por %p110, %p111
      %s114 = sadd.s32 %s113, 1
      %p117 = scmp.eq.s32.totalorder %s16, 1
      %p118 = scmp.ne.s32.totalorder %s113, %s115
      %p119 = scmp.eq.s32.totalorder %s16, 0
      %p120 = por %p118, %p119
      %p121 = scmp.ne.s32.totalorder %s113, %s115
      %p122 = scmp.eq.s32.totalorder %s21, 1
      %p123 = por %p121, %p122
      %p124 = scmp.ne.s32.totalorder %s115, %s116
      %p125 = scmp.eq.s32.totalorder %s21, 0
      %p126 = por %p124, %p125
      %p127 = scmp.ne.s32.totalorder %s115, %s116
      %p128 = scmp.eq.s32.totalorder %s22, 1
      %p129 = por %p127, %p128
      %p131 = scmp.ne.s32.totalorder %s116, %s130
      %p132 = scmp.eq.s32.totalorder %s22, 0
      %p133 = por %p131, %p132
      %s135 = sadd.s32 %s134, 1
      %p138 = scmp.eq.s32.totalorder %s16, 1
      %p139 = scmp.ne.s32.totalorder %s134, %s136
      %p140 = scmp.eq.s32.totalorder %s16, 0
      %p141 = por %p139, %p140
      %p142 = scmp.ne.s32.totalorder %s134, %s136
      %p143 = scmp.eq.s32.totalorder %s21, 1
      %p144 = por %p142, %p143
      %p145 = scmp.ne.s32.totalorder %s136, %s137
      %p146 = scmp.eq.s32.totalorder %s21, 0
      %p147 = por %p145, %p146
      %p148 = scmp.ne.s32.totalorder %s136, %s137
      %p149 = scmp.eq.s32.totalorder %s22, 1
      %p150 = por %p148, %p149
      %p152 = scmp.ne.s32.totalorder %s137, %s151
      %p153 = scmp.eq.s32.totalorder %s22, 0
      %p154 = por %p152, %p153
      %s156 = sadd.s32 %s155, 1
      %p159 = scmp.eq.s32.totalorder %s16, 1
      %p160 = scmp.ne.s32.totalorder %s155, %s157
      %p161 = scmp.eq.s32.totalorder %s16, 0
      %p162 = por %p160, %p161
      %p163 = scmp.ne.s32.totalorder %s155, %s157
      %p164 = scmp.eq.s32.totalorder %s21, 1
      %p165 = por %p163, %p164
      %p166 = scmp.ne.s32.totalorder %s157, %s158
      %p167 = scmp.eq.s32.totalorder %s21, 0
      %p168 = por %p166, %p167
      %p169 = scmp.ne.s32.totalorder %s157, %s158
      %p170 = scmp.eq.s32.totalorder %s22, 1
      %p171 = por %p169, %p170
      %p173 = scmp.ne.s32.totalorder %s158, %s172
      %p174 = scmp.eq.s32.totalorder %s22, 0
      %p175 = por %p173, %p174
      %s176 = ssub.s32 %s16, %s23
      %p177 = scmp.eq.s32.totalorder %s176, 0
      %s179 = sadd.s32 %s178, 1
      %s180 = scalar_select %p177, %s178, %s179
      %p183 = pneg %p177
      %p184 = scmp.eq.s32.totalorder %s16, 1
      %p185 = por %p183, %p184
      %p186 = scmp.ne.s32.totalorder %s178, %s181
      %p187 = scmp.eq.s32.totalorder %s16, 0
      %p188 = por %p186, %p187
      %p189 = scmp.ne.s32.totalorder %s178, %s181
      %p190 = scmp.eq.s32.totalorder %s21, 1
      %p191 = por %p189, %p190
      %p192 = scmp.ne.s32.totalorder %s181, %s182
      %p193 = scmp.eq.s32.totalorder %s21, 0
      %p194 = por %p192, %p193
      %p195 = scmp.ne.s32.totalorder %s181, %s182
      %p196 = scmp.eq.s32.totalorder %s22, 1
      %p197 = por %p195, %p196
      %p199 = scmp.ne.s32.totalorder %s182, %s198
      %p200 = scmp.eq.s32.totalorder %s22, 0
      %p201 = por %p199, %p200
      %p202 = scmp.le.s32.totalorder 1, %s16
      %p203 = scmp.lt.s32.totalorder %s16, 3
      %p204 = pnand %p202, %p203
      %p205 = pneg %p204
      // Predicated region
      $region9: #{tpu_custom_call.1} parent=5 // pred_check
        _
      $region10: #{tpu_custom_call.1} parent=5 // pred_check_branch
        %207 = sbr.rel (%p204) target = $region12
      $region11: #{tpu_custom_call.1} parent=5 // pred_region
        %s208 = ssub.s32 %s16, 1
        // Predicated region
        $region13: #{tpu_custom_call.1} parent=11 // pred_check
          %p209 = pneg %p63
        $region14: #{tpu_custom_call.1} parent=11 // pred_check_branch
          %211 = sbr.rel (%p209) target = $region16
        $region15: #{tpu_custom_call.1} parent=11 // pred_region
          _
        $region16: #{tpu_custom_call.1} parent=11 // pred_fallthru
          _
        // Predicated region
        $region17: #{tpu_custom_call.1} parent=11 // pred_check
          %p212 = pneg %p84
        $region18: #{tpu_custom_call.1} parent=11 // pred_check_branch
          %214 = sbr.rel (%p212) target = $region20
        $region19: #{tpu_custom_call.1} parent=11 // pred_region
          _
        $region20: #{tpu_custom_call.1} parent=11 // pred_fallthru
          _
        // Predicated region
        $region21: #{tpu_custom_call.1} parent=11 // pred_check
          %p215 = pneg %p105
        $region22: #{tpu_custom_call.1} parent=11 // pred_check_branch
          %217 = sbr.rel (%p215) target = $region24
        $region23: #{tpu_custom_call.1} parent=11 // pred_region
          _
        $region24: #{tpu_custom_call.1} parent=11 // pred_fallthru
          _
        // Predicated region
        $region25: #{tpu_custom_call.1} parent=11 // pred_check
          %p218 = pneg %p126
        $region26: #{tpu_custom_call.1} parent=11 // pred_check_branch
          %220 = sbr.rel (%p218) target = $region28
        $region27: #{tpu_custom_call.1} parent=11 // pred_region
          _
        $region28: #{tpu_custom_call.1} parent=11 // pred_fallthru
          _
        // Predicated region
        $region29: #{tpu_custom_call.1} parent=11 // pred_check
          %p221 = pneg %p147
        $region30: #{tpu_custom_call.1} parent=11 // pred_check_branch
          %223 = sbr.rel (%p221) target = $region32
        $region31: #{tpu_custom_call.1} parent=11 // pred_region
          _
        $region32: #{tpu_custom_call.1} parent=11 // pred_fallthru
          _
        // Predicated region
        $region33: #{tpu_custom_call.1} parent=11 // pred_check
          %p224 = pneg %p168
        $region34: #{tpu_custom_call.1} parent=11 // pred_check_branch
          %226 = sbr.rel (%p224) target = $region36
        $region35: #{tpu_custom_call.1} parent=11 // pred_region
          _
        $region36: #{tpu_custom_call.1} parent=11 // pred_fallthru
          _
      $region12: #{tpu_custom_call.1} parent=5 // pred_fallthru
        _
      %p227 = scmp.lt.s32.totalorder %s16, 2
      // Predicated region
      $region37: #{tpu_custom_call.1} parent=5 // pred_check
        %p228 = pneg %p227
      $region38: #{tpu_custom_call.1} parent=5 // pred_check_branch
        %230 = sbr.rel (%p228) target = $region40
      $region39: #{tpu_custom_call.1} parent=5 // pred_region
        // Predicated region
        $region41: #{tpu_custom_call.1} parent=39 // pred_check
          %p231 = pneg %p36
        $region42: #{tpu_custom_call.1} parent=39 // pred_check_branch
          %233 = sbr.rel (%p231) target = $region44
        $region43: #{tpu_custom_call.1} parent=39 // pred_region
          %p234 = scmp.lt.s32.totalorder %s16, 1
          %s235 = scalar_select %p234, %s16, 1
          %s236 = smul.addr %s235, 54
          %s237 = smul.addr %s236, 8
          %s238 = scalar_lea.vmem %s0, %s237
        $region44: #{tpu_custom_call.1} parent=39 // pred_fallthru
          _
      $region40: #{tpu_custom_call.1} parent=5 // pred_fallthru
        _
      %p239 = scmp.le.s32.totalorder 1, %s16
      %p240 = scmp.lt.s32.totalorder %s16, 3
      %p241 = pnand %p239, %p240
      %p242 = pneg %p241
      // Predicated region
      $region45: #{tpu_custom_call.1} parent=5 // pred_check
        _
      $region46: #{tpu_custom_call.1} parent=5 // pred_check_branch
        %244 = sbr.rel (%p241) target = $region48
      $region47: #{tpu_custom_call.1} parent=5 // pred_region
        %s245 = ssub.s32 %s16, 1
        %p246 = scmp.lt.s32.totalorder %s21, 1
        %s247 = scalar_select %p246, %s21, 1
        %s248 = smul.addr %s247, 54
        %s249 = smul.addr %s248, 8
        %s250 = scalar_lea.vmem %s0, %s249
        %p251 = pneg %p42
        %p252 = pneg %p39
        %p253 = pneg %p63
        %p254 = pneg %p60
        %p255 = pneg %p84
        %p256 = pneg %p81
        %p257 = pneg %p105
        %p258 = pneg %p102
        %p259 = pneg %p126
        %p260 = pneg %p123
        %p261 = pneg %p147
        %p262 = pneg %p144
        %p263 = pneg %p168
        %p264 = pneg %p165
        %p265 = pneg %p194
        %p266 = pneg %p191
        %s267 = sand.u32 %s181, 1
        %s268 = scalar_lea.sflag [#allocation4], %s267
        %s269 = sand.u32 %s181, 1
        %s270 = smul.addr %s269, 16
        %s271 = scalar_lea.vmem [#allocation3], %s270
        %p272 = scmp.lt.s32.totalorder %s21, 1
        %s273 = scalar_select %p272, %s21, 1
        %s274 = smul.addr %s273, 54
        %s275 = smul.addr %s274, 8
        %s276 = scalar_lea.vmem %s0, %s275
        %v278 = vld [vmem:[%s1] sm:$0x1]
        %v279 = vld [vmem:[%s1 + $0x1] sm:$0x1]
        %v280 = vld [vmem:[%s1 + $0x2] sm:$0x1]
        %v281 = vld [vmem:[%s1 + $0x3] sm:$0x1]
        %v282 = vld [vmem:[%s1 + $0x4] sm:$0x1]
        %v283 = vld [vmem:[%s1 + $0x5] sm:$0x1]
        %v284 = vld [vmem:[%s1 + $0x6] sm:$0x1]
        %v285 = vld [vmem:[%s1 + $0x7] sm:$0x1]
        %v286 = vld [vmem:[%s1 + $0x8] sm:$0x1]
        %v287 = vld [vmem:[%s276] sm:$0xff]
        %v288 = vld [vmem:[%s276 + $0x8] sm:$0xff]
        %v289 = vld [vmem:[%s276 + $0x10] sm:$0x3]
        %v290 = vld [vmem:[%s276 + $0x18] sm:$0xff]
        %v291 = vld [vmem:[%s276 + $0x20] sm:$0xff]
        %v292 = vld [vmem:[%s276 + $0x28] sm:$0x3]
        %v293 = vld [vmem:[%s276 + $0x30] sm:$0xff]
        %v294 = vld [vmem:[%s276 + $0x38] sm:$0xff]
        %v295 = vld [vmem:[%s276 + $0x40] sm:$0x3]
        %v296 = vld [vmem:[%s276 + $0x48] sm:$0xff]
        %v297 = vld [vmem:[%s276 + $0x50] sm:$0xff]
        %v298 = vld [vmem:[%s276 + $0x58] sm:$0x3]
        %v299 = vld [vmem:[%s276 + $0x60] sm:$0xff]
        %v300 = vld [vmem:[%s276 + $0x68] sm:$0xff]
        %v301 = vld [vmem:[%s276 + $0x70] sm:$0x3]
        %v302 = vld [vmem:[%s276 + $0x78] sm:$0xff]
        %v303 = vld [vmem:[%s276 + $0x80] sm:$0xff]
        %v304 = vld [vmem:[%s276 + $0x88] sm:$0x3]
        %v305 = vld [vmem:[%s276 + $0x90] sm:$0xff]
        %v306 = vld [vmem:[%s276 + $0x98] sm:$0xff]
        %v307 = vld [vmem:[%s276 + $0xa0] sm:$0x3]
        %v308 = vld [vmem:[%s276 + $0xa8] sm:$0xff]
        %v309 = vld [vmem:[%s276 + $0xb0] sm:$0xff]
        %v310 = vld [vmem:[%s276 + $0xb8] sm:$0x3]
        %v311 = vld [vmem:[%s276 + $0xc0] sm:$0xff]
        %v312 = vld [vmem:[%s276 + $0xc8] sm:$0xff]
        %v313 = vld [vmem:[%s276 + $0xd0] sm:$0x3]
        %v314 = vld [vmem:[%s276 + $0xd8] sm:$0xff]
        %v315 = vld [vmem:[%s276 + $0xe0] sm:$0xff]
        %v316 = vld [vmem:[%s276 + $0xe8] sm:$0x3]
        %v317 = vld [vmem:[%s276 + $0xf0] sm:$0xff]
        %v318 = vld [vmem:[%s276 + $0xf8] sm:$0xff]
        %v319 = vld [vmem:[%s276 + $0x100] sm:$0x3]
        %v320 = vld [vmem:[%s276 + $0x108] sm:$0xff]
        %v321 = vld [vmem:[%s276 + $0x110] sm:$0xff]
        %v322 = vld [vmem:[%s276 + $0x118] sm:$0x3]
        %v323 = vld [vmem:[%s276 + $0x120] sm:$0xff]
        %v324 = vld [vmem:[%s276 + $0x128] sm:$0xff]
        %v325 = vld [vmem:[%s276 + $0x130] sm:$0x3]
        %v326 = vld [vmem:[%s276 + $0x138] sm:$0xff]
        %v327 = vld [vmem:[%s276 + $0x140] sm:$0xff]
        %v328 = vld [vmem:[%s276 + $0x148] sm:$0x3]
        %v329 = vld [vmem:[%s276 + $0x150] sm:$0xff]
        %v330 = vld [vmem:[%s276 + $0x158] sm:$0xff]
        %v331 = vld [vmem:[%s276 + $0x160] sm:$0x3]
        %v332 = vld [vmem:[%s276 + $0x168] sm:$0xff]
        %v333 = vld [vmem:[%s276 + $0x170] sm:$0xff]
        %v334 = vld [vmem:[%s276 + $0x178] sm:$0x3]
        %v335 = vld [vmem:[%s276 + $0x180] sm:$0xff]
        %v336 = vld [vmem:[%s276 + $0x188] sm:$0xff]
        %v337 = vld [vmem:[%s276 + $0x190] sm:$0x3]
        %v338 = vld [vmem:[%s276 + $0x198] sm:$0xff]
        %v339 = vld [vmem:[%s276 + $0x1a0] sm:$0xff]
        %v340 = vld [vmem:[%s276 + $0x1a8] sm:$0x3]
        %v341 = vmax.f32 %v287, 0.0
        %v342 = vmax.f32 %v288, 0.0
        %v343 = vmax.f32 %v289, 0.0
        %v344 = vmax.f32 %v290, 0.0
        %v345 = vmax.f32 %v291, 0.0
        %v346 = vmax.f32 %v292, 0.0
        %v347 = vmax.f32 %v293, 0.0
        %v348 = vmax.f32 %v294, 0.0
        %v349 = vmax.f32 %v295, 0.0
        %v350 = vmax.f32 %v296, 0.0
        %v351 = vmax.f32 %v297, 0.0
        %v352 = vmax.f32 %v298, 0.0
        %v353 = vmax.f32 %v299, 0.0
        %v354 = vmax.f32 %v300, 0.0
        %v355 = vmax.f32 %v301, 0.0
        %v356 = vmax.f32 %v302, 0.0
        %v357 = vmax.f32 %v303, 0.0
        %v358 = vmax.f32 %v304, 0.0
        %v359 = vmax.f32 %v305, 0.0
        %v360 = vmax.f32 %v306, 0.0
        %v361 = vmax.f32 %v307, 0.0
        %v362 = vmax.f32 %v308, 0.0
        %v363 = vmax.f32 %v309, 0.0
        %v364 = vmax.f32 %v310, 0.0
        %v365 = vmax.f32 %v311, 0.0
        %v366 = vmax.f32 %v312, 0.0
        %v367 = vmax.f32 %v313, 0.0
        %v368 = vmax.f32 %v314, 0.0
        %v369 = vmax.f32 %v315, 0.0
        %v370 = vmax.f32 %v316, 0.0
        %v371 = vmax.f32 %v317, 0.0
        %v372 = vmax.f32 %v318, 0.0
        %v373 = vmax.f32 %v319, 0.0
        %v374 = vmax.f32 %v320, 0.0
        %v375 = vmax.f32 %v321, 0.0
        %v376 = vmax.f32 %v322, 0.0
        %v377 = vmax.f32 %v323, 0.0
        %v378 = vmax.f32 %v324, 0.0
        %v379 = vmax.f32 %v325, 0.0
        %v380 = vmax.f32 %v326, 0.0
        %v381 = vmax.f32 %v327, 0.0
        %v382 = vmax.f32 %v328, 0.0
        %v383 = vmax.f32 %v329, 0.0
        %v384 = vmax.f32 %v330, 0.0
        %v385 = vmax.f32 %v331, 0.0
        %v386 = vmax.f32 %v332, 0.0
        %v387 = vmax.f32 %v333, 0.0
        %v388 = vmax.f32 %v334, 0.0
        %v389 = vmax.f32 %v335, 0.0
        %v390 = vmax.f32 %v336, 0.0
        %v391 = vmax.f32 %v337, 0.0
        %v392 = vmax.f32 %v338, 0.0
        %v393 = vmax.f32 %v339, 0.0
        %v394 = vmax.f32 %v340, 0.0
        %v396 = vperm.slane %v278, 0
        %v398 = vmul.f32 %v341, %v396
        %v399 = vmul.f32 %v342, %v396
        %v400 = vmul.f32 %v344, %v396
        %v401 = vmul.f32 %v345, %v396
        %v402 = vmul.f32 %v347, %v396
        %v403 = vmul.f32 %v348, %v396
        %v404 = vmul.f32 %v350, %v396
        %v405 = vmul.f32 %v351, %v396
        %v406 = vmul.f32 %v353, %v396
        %v407 = vmul.f32 %v354, %v396
        %v408 = vmul.f32 %v356, %v396
        %v409 = vmul.f32 %v357, %v396
        %v410 = vmul.f32 %v359, %v396
        %v411 = vmul.f32 %v360, %v396
        %v412 = vmul.f32 %v362, %v396
        %v413 = vmul.f32 %v363, %v396
        %v414 = vmul.f32 %v365, %v396
        %v415 = vmul.f32 %v366, %v396
        %v416 = vmul.f32 %v368, %v396
        %v417 = vmul.f32 %v369, %v396
        %v418 = vmul.f32 %v371, %v396
        %v419 = vmul.f32 %v372, %v396
        %v420 = vmul.f32 %v374, %v396
        %v421 = vmul.f32 %v375, %v396
        %v422 = vmul.f32 %v377, %v396
        %v423 = vmul.f32 %v378, %v396
        %v424 = vmul.f32 %v380, %v396
        %v425 = vmul.f32 %v381, %v396
        %v426 = vmul.f32 %v383, %v396
        %v427 = vmul.f32 %v384, %v396
        %v428 = vmul.f32 %v386, %v396
        %v429 = vmul.f32 %v387, %v396
        %v430 = vadd.f32 %v398, 0.0
        %v431 = vadd.f32 %v399, 0.0
        %v432 = vadd.f32 %v400, 0.0
        %v433 = vadd.f32 %v401, 0.0
        %v434 = vadd.f32 %v402, 0.0
        %v435 = vadd.f32 %v403, 0.0
        %v436 = vadd.f32 %v404, 0.0
        %v437 = vadd.f32 %v405, 0.0
        %v438 = vadd.f32 %v406, 0.0
        %v439 = vadd.f32 %v407, 0.0
        %v440 = vadd.f32 %v408, 0.0
        %v441 = vadd.f32 %v409, 0.0
        %v442 = vadd.f32 %v410, 0.0
        %v443 = vadd.f32 %v411, 0.0
        %v444 = vadd.f32 %v412, 0.0
        %v445 = vadd.f32 %v413, 0.0
        %v446 = vadd.f32 %v414, 0.0
        %v447 = vadd.f32 %v415, 0.0
        %v448 = vadd.f32 %v416, 0.0
        %v449 = vadd.f32 %v417, 0.0
        %v450 = vadd.f32 %v418, 0.0
        %v451 = vadd.f32 %v419, 0.0
        %v452 = vadd.f32 %v420, 0.0
        %v453 = vadd.f32 %v421, 0.0
        %v454 = vadd.f32 %v422, 0.0
        %v455 = vadd.f32 %v423, 0.0
        %v456 = vadd.f32 %v424, 0.0
        %v457 = vadd.f32 %v425, 0.0
        %v458 = vadd.f32 %v426, 0.0
        %v459 = vadd.f32 %v427, 0.0
        %v460 = vadd.f32 %v428, 0.0
        %v461 = vadd.f32 %v429, 0.0
        %v463 = vperm.slane %v279, 0
        %v465 = vmul.f32 %v341, %v463
        %v466 = vmul.f32 %v342, %v463
        %v467 = vmul.f32 %v343, %v463
        %v468 = vmul.f32 %v344, %v463
        %v469 = vmul.f32 %v345, %v463
        %v470 = vmul.f32 %v346, %v463
        %v471 = vmul.f32 %v347, %v463
        %v472 = vmul.f32 %v348, %v463
        %v473 = vmul.f32 %v349, %v463
        %v474 = vmul.f32 %v350, %v463
        %v475 = vmul.f32 %v351, %v463
        %v476 = vmul.f32 %v352, %v463
        %v477 = vmul.f32 %v353, %v463
        %v478 = vmul.f32 %v354, %v463
        %v479 = vmul.f32 %v355, %v463
        %v480 = vmul.f32 %v356, %v463
        %v481 = vmul.f32 %v357, %v463
        %v482 = vmul.f32 %v358, %v463
        %v483 = vmul.f32 %v359, %v463
        %v484 = vmul.f32 %v360, %v463
        %v485 = vmul.f32 %v361, %v463
        %v486 = vmul.f32 %v362, %v463
        %v487 = vmul.f32 %v363, %v463
        %v488 = vmul.f32 %v364, %v463
        %v489 = vmul.f32 %v365, %v463
        %v490 = vmul.f32 %v366, %v463
        %v491 = vmul.f32 %v367, %v463
        %v492 = vmul.f32 %v368, %v463
        %v493 = vmul.f32 %v369, %v463
        %v494 = vmul.f32 %v370, %v463
        %v495 = vmul.f32 %v371, %v463
        %v496 = vmul.f32 %v372, %v463
        %v497 = vmul.f32 %v373, %v463
        %v498 = vmul.f32 %v374, %v463
        %v499 = vmul.f32 %v375, %v463
        %v500 = vmul.f32 %v376, %v463
        %v501 = vmul.f32 %v377, %v463
        %v502 = vmul.f32 %v378, %v463
        %v503 = vmul.f32 %v379, %v463
        %v504 = vmul.f32 %v380, %v463
        %v505 = vmul.f32 %v381, %v463
        %v506 = vmul.f32 %v382, %v463
        %v507 = vmul.f32 %v383, %v463
        %v508 = vmul.f32 %v384, %v463
        %v509 = vmul.f32 %v385, %v463
        %v510 = vmul.f32 %v386, %v463
        %v511 = vmul.f32 %v387, %v463
        %v512 = vmul.f32 %v388, %v463
        %vm561 = vcmask 1046528
        %v562 = vrot.slane %v465, 1
        %v563 = vrot.slane %v466, 1
        %v564 = vsel %vm561, %v562, %v563
        %v565 = vrot.slane %v467, 1
        %v566 = vsel %vm561, %v563, %v565
        %v567 = vrot.slane %v468, 1
        %v568 = vrot.slane %v469, 1
        %v569 = vsel %vm561, %v567, %v568
        %v570 = vrot.slane %v470, 1
        %v571 = vsel %vm561, %v568, %v570
        %v572 = vrot.slane %v471, 1
        %v573 = vrot.slane %v472, 1
        %v574 = vsel %vm561, %v572, %v573
        %v575 = vrot.slane %v473, 1
        %v576 = vsel %vm561, %v573, %v575
        %v577 = vrot.slane %v474, 1
        %v578 = vrot.slane %v475, 1
        %v579 = vsel %vm561, %v577, %v578
        %v580 = vrot.slane %v476, 1
        %v581 = vsel %vm561, %v578, %v580
        %v582 = vrot.slane %v477, 1
        %v583 = vrot.slane %v478, 1
        %v584 = vsel %vm561, %v582, %v583
        %v585 = vrot.slane %v479, 1
        %v586 = vsel %vm561, %v583, %v585
        %v587 = vrot.slane %v480, 1
        %v588 = vrot.slane %v481, 1
        %v589 = vsel %vm561, %v587, %v588
        %v590 = vrot.slane %v482, 1
        %v591 = vsel %vm561, %v588, %v590
        %v592 = vrot.slane %v483, 1
        %v593 = vrot.slane %v484, 1
        %v594 = vsel %vm561, %v592, %v593
        %v595 = vrot.slane %v485, 1
        %v596 = vsel %vm561, %v593, %v595
        %v597 = vrot.slane %v486, 1
        %v598 = vrot.slane %v487, 1
        %v599 = vsel %vm561, %v597, %v598
        %v600 = vrot.slane %v488, 1
        %v601 = vsel %vm561, %v598, %v600
        %v602 = vrot.slane %v489, 1
        %v603 = vrot.slane %v490, 1
        %v604 = vsel %vm561, %v602, %v603
        %v605 = vrot.slane %v491, 1
        %v606 = vsel %vm561, %v603, %v605
        %v607 = vrot.slane %v492, 1
        %v608 = vrot.slane %v493, 1
        %v609 = vsel %vm561, %v607, %v608
        %v610 = vrot.slane %v494, 1
        %v611 = vsel %vm561, %v608, %v610
        %v612 = vrot.slane %v495, 1
        %v613 = vrot.slane %v496, 1
        %v614 = vsel %vm561, %v612, %v613
        %v615 = vrot.slane %v497, 1
        %v616 = vsel %vm561, %v613, %v615
        %v617 = vrot.slane %v498, 1
        %v618 = vrot.slane %v499, 1
        %v619 = vsel %vm561, %v617, %v618
        %v620 = vrot.slane %v500, 1
        %v621 = vsel %vm561, %v618, %v620
        %v622 = vrot.slane %v501, 1
        %v623 = vrot.slane %v502, 1
        %v624 = vsel %vm561, %v622, %v623
        %v625 = vrot.slane %v503, 1
        %v626 = vsel %vm561, %v623, %v625
        %v627 = vrot.slane %v504, 1
        %v628 = vrot.slane %v505, 1
        %v629 = vsel %vm561, %v627, %v628
        %v630 = vrot.slane %v506, 1
        %v631 = vsel %vm561, %v628, %v630
        %v632 = vrot.slane %v507, 1
        %v633 = vrot.slane %v508, 1
        %v634 = vsel %vm561, %v632, %v633
        %v635 = vrot.slane %v509, 1
        %v636 = vsel %vm561, %v633, %v635
        %v637 = vrot.slane %v510, 1
        %v638 = vrot.slane %v511, 1
        %v639 = vsel %vm561, %v637, %v638
        %v640 = vrot.slane %v512, 1
        %v641 = vsel %vm561, %v638, %v640
        %v674 = vadd.f32 %v430, %v564
        %v675 = vadd.f32 %v431, %v566
        %v676 = vadd.f32 %v432, %v569
        %v677 = vadd.f32 %v433, %v571
        %v678 = vadd.f32 %v434, %v574
        %v679 = vadd.f32 %v435, %v576
        %v680 = vadd.f32 %v436, %v579
        %v681 = vadd.f32 %v437, %v581
        %v682 = vadd.f32 %v438, %v584
        %v683 = vadd.f32 %v439, %v586
        %v684 = vadd.f32 %v440, %v589
        %v685 = vadd.f32 %v441, %v591
        %v686 = vadd.f32 %v442, %v594
        %v687 = vadd.f32 %v443, %v596
        %v688 = vadd.f32 %v444, %v599
        %v689 = vadd.f32 %v445, %v601
        %v690 = vadd.f32 %v446, %v604
        %v691 = vadd.f32 %v447, %v606
        %v692 = vadd.f32 %v448, %v609
        %v693 = vadd.f32 %v449, %v611
        %v694 = vadd.f32 %v450, %v614
        %v695 = vadd.f32 %v451, %v616
        %v696 = vadd.f32 %v452, %v619
        %v697 = vadd.f32 %v453, %v621
        %v698 = vadd.f32 %v454, %v624
        %v699 = vadd.f32 %v455, %v626
        %v700 = vadd.f32 %v456, %v629
        %v701 = vadd.f32 %v457, %v631
        %v702 = vadd.f32 %v458, %v634
        %v703 = vadd.f32 %v459, %v636
        %v704 = vadd.f32 %v460, %v639
        %v705 = vadd.f32 %v461, %v641
        %v707 = vperm.slane %v280, 0
        %v709 = vmul.f32 %v341, %v707
        %v710 = vmul.f32 %v342, %v707
        %v711 = vmul.f32 %v343, %v707
        %v712 = vmul.f32 %v344, %v707
        %v713 = vmul.f32 %v345, %v707
        %v714 = vmul.f32 %v346, %v707
        %v715 = vmul.f32 %v347, %v707
        %v716 = vmul.f32 %v348, %v707
        %v717 = vmul.f32 %v349, %v707
        %v718 = vmul.f32 %v350, %v707
        %v719 = vmul.f32 %v351, %v707
        %v720 = vmul.f32 %v352, %v707
        %v721 = vmul.f32 %v353, %v707
        %v722 = vmul.f32 %v354, %v707
        %v723 = vmul.f32 %v355, %v707
        %v724 = vmul.f32 %v356, %v707
        %v725 = vmul.f32 %v357, %v707
        %v726 = vmul.f32 %v358, %v707
        %v727 = vmul.f32 %v359, %v707
        %v728 = vmul.f32 %v360, %v707
        %v729 = vmul.f32 %v361, %v707
        %v730 = vmul.f32 %v362, %v707
        %v731 = vmul.f32 %v363, %v707
        %v732 = vmul.f32 %v364, %v707
        %v733 = vmul.f32 %v365, %v707
        %v734 = vmul.f32 %v366, %v707
        %v735 = vmul.f32 %v367, %v707
        %v736 = vmul.f32 %v368, %v707
        %v737 = vmul.f32 %v369, %v707
        %v738 = vmul.f32 %v370, %v707
        %v739 = vmul.f32 %v371, %v707
        %v740 = vmul.f32 %v372, %v707
        %v741 = vmul.f32 %v373, %v707
        %v742 = vmul.f32 %v374, %v707
        %v743 = vmul.f32 %v375, %v707
        %v744 = vmul.f32 %v376, %v707
        %v745 = vmul.f32 %v377, %v707
        %v746 = vmul.f32 %v378, %v707
        %v747 = vmul.f32 %v379, %v707
        %v748 = vmul.f32 %v380, %v707
        %v749 = vmul.f32 %v381, %v707
        %v750 = vmul.f32 %v382, %v707
        %v751 = vmul.f32 %v383, %v707
        %v752 = vmul.f32 %v384, %v707
        %v753 = vmul.f32 %v385, %v707
        %v754 = vmul.f32 %v386, %v707
        %v755 = vmul.f32 %v387, %v707
        %v756 = vmul.f32 %v388, %v707
        %vm805 = vcmask 1045504
        %v806 = vrot.slane %v709, 2
        %v807 = vrot.slane %v710, 2
        %v808 = vsel %vm805, %v806, %v807
        %v809 = vrot.slane %v711, 2
        %v810 = vsel %vm805, %v807, %v809
        %v811 = vrot.slane %v712, 2
        %v812 = vrot.slane %v713, 2
        %v813 = vsel %vm805, %v811, %v812
        %v814 = vrot.slane %v714, 2
        %v815 = vsel %vm805, %v812, %v814
        %v816 = vrot.slane %v715, 2
        %v817 = vrot.slane %v716, 2
        %v818 = vsel %vm805, %v816, %v817
        %v819 = vrot.slane %v717, 2
        %v820 = vsel %vm805, %v817, %v819
        %v821 = vrot.slane %v718, 2
        %v822 = vrot.slane %v719, 2
        %v823 = vsel %vm805, %v821, %v822
        %v824 = vrot.slane %v720, 2
        %v825 = vsel %vm805, %v822, %v824
        %v826 = vrot.slane %v721, 2
        %v827 = vrot.slane %v722, 2
        %v828 = vsel %vm805, %v826, %v827
        %v829 = vrot.slane %v723, 2
        %v830 = vsel %vm805, %v827, %v829
        %v831 = vrot.slane %v724, 2
        %v832 = vrot.slane %v725, 2
        %v833 = vsel %vm805, %v831, %v832
        %v834 = vrot.slane %v726, 2
        %v835 = vsel %vm805, %v832, %v834
        %v836 = vrot.slane %v727, 2
        %v837 = vrot.slane %v728, 2
        %v838 = vsel %vm805, %v836, %v837
        %v839 = vrot.slane %v729, 2
        %v840 = vsel %vm805, %v837, %v839
        %v841 = vrot.slane %v730, 2
        %v842 = vrot.slane %v731, 2
        %v843 = vsel %vm805, %v841, %v842
        %v844 = vrot.slane %v732, 2
        %v845 = vsel %vm805, %v842, %v844
        %v846 = vrot.slane %v733, 2
        %v847 = vrot.slane %v734, 2
        %v848 = vsel %vm805, %v846, %v847
        %v849 = vrot.slane %v735, 2
        %v850 = vsel %vm805, %v847, %v849
        %v851 = vrot.slane %v736, 2
        %v852 = vrot.slane %v737, 2
        %v853 = vsel %vm805, %v851, %v852
        %v854 = vrot.slane %v738, 2
        %v855 = vsel %vm805, %v852, %v854
        %v856 = vrot.slane %v739, 2
        %v857 = vrot.slane %v740, 2
        %v858 = vsel %vm805, %v856, %v857
        %v859 = vrot.slane %v741, 2
        %v860 = vsel %vm805, %v857, %v859
        %v861 = vrot.slane %v742, 2
        %v862 = vrot.slane %v743, 2
        %v863 = vsel %vm805, %v861, %v862
        %v864 = vrot.slane %v744, 2
        %v865 = vsel %vm805, %v862, %v864
        %v866 = vrot.slane %v745, 2
        %v867 = vrot.slane %v746, 2
        %v868 = vsel %vm805, %v866, %v867
        %v869 = vrot.slane %v747, 2
        %v870 = vsel %vm805, %v867, %v869
        %v871 = vrot.slane %v748, 2
        %v872 = vrot.slane %v749, 2
        %v873 = vsel %vm805, %v871, %v872
        %v874 = vrot.slane %v750, 2
        %v875 = vsel %vm805, %v872, %v874
        %v876 = vrot.slane %v751, 2
        %v877 = vrot.slane %v752, 2
        %v878 = vsel %vm805, %v876, %v877
        %v879 = vrot.slane %v753, 2
        %v880 = vsel %vm805, %v877, %v879
        %v881 = vrot.slane %v754, 2
        %v882 = vrot.slane %v755, 2
        %v883 = vsel %vm805, %v881, %v882
        %v884 = vrot.slane %v756, 2
        %v885 = vsel %vm805, %v882, %v884
        %v918 = vadd.f32 %v674, %v808
        %v919 = vadd.f32 %v675, %v810
        %v920 = vadd.f32 %v676, %v813
        %v921 = vadd.f32 %v677, %v815
        %v922 = vadd.f32 %v678, %v818
        %v923 = vadd.f32 %v679, %v820
        %v924 = vadd.f32 %v680, %v823
        %v925 = vadd.f32 %v681, %v825
        %v926 = vadd.f32 %v682, %v828
        %v927 = vadd.f32 %v683, %v830
        %v928 = vadd.f32 %v684, %v833
        %v929 = vadd.f32 %v685, %v835
        %v930 = vadd.f32 %v686, %v838
        %v931 = vadd.f32 %v687, %v840
        %v932 = vadd.f32 %v688, %v843
        %v933 = vadd.f32 %v689, %v845
        %v934 = vadd.f32 %v690, %v848
        %v935 = vadd.f32 %v691, %v850
        %v936 = vadd.f32 %v692, %v853
        %v937 = vadd.f32 %v693, %v855
        %v938 = vadd.f32 %v694, %v858
        %v939 = vadd.f32 %v695, %v860
        %v940 = vadd.f32 %v696, %v863
        %v941 = vadd.f32 %v697, %v865
        %v942 = vadd.f32 %v698, %v868
        %v943 = vadd.f32 %v699, %v870
        %v944 = vadd.f32 %v700, %v873
        %v945 = vadd.f32 %v701, %v875
        %v946 = vadd.f32 %v702, %v878
        %v947 = vadd.f32 %v703, %v880
        %v948 = vadd.f32 %v704, %v883
        %v949 = vadd.f32 %v705, %v885
        %v951 = vperm.slane %v281, 0
        %v953 = vmul.f32 %v344, %v951
        %v954 = vmul.f32 %v345, %v951
        %v955 = vmul.f32 %v347, %v951
        %v956 = vmul.f32 %v348, %v951
        %v957 = vmul.f32 %v350, %v951
        %v958 = vmul.f32 %v351, %v951
        %v959 = vmul.f32 %v353, %v951
        %v960 = vmul.f32 %v354, %v951
        %v961 = vmul.f32 %v356, %v951
        %v962 = vmul.f32 %v357, %v951
        %v963 = vmul.f32 %v359, %v951
        %v964 = vmul.f32 %v360, %v951
        %v965 = vmul.f32 %v362, %v951
        %v966 = vmul.f32 %v363, %v951
        %v967 = vmul.f32 %v365, %v951
        %v968 = vmul.f32 %v366, %v951
        %v969 = vmul.f32 %v368, %v951
        %v970 = vmul.f32 %v369, %v951
        %v971 = vmul.f32 %v371, %v951
        %v972 = vmul.f32 %v372, %v951
        %v973 = vmul.f32 %v374, %v951
        %v974 = vmul.f32 %v375, %v951
        %v975 = vmul.f32 %v377, %v951
        %v976 = vmul.f32 %v378, %v951
        %v977 = vmul.f32 %v380, %v951
        %v978 = vmul.f32 %v381, %v951
        %v979 = vmul.f32 %v383, %v951
        %v980 = vmul.f32 %v384, %v951
        %v981 = vmul.f32 %v386, %v951
        %v982 = vmul.f32 %v387, %v951
        %v983 = vmul.f32 %v389, %v951
        %v984 = vmul.f32 %v390, %v951
        %v985 = vadd.f32 %v918, %v953
        %v986 = vadd.f32 %v919, %v954
        %v987 = vadd.f32 %v920, %v955
        %v988 = vadd.f32 %v921, %v956
        %v989 = vadd.f32 %v922, %v957
        %v990 = vadd.f32 %v923, %v958
        %v991 = vadd.f32 %v924, %v959
        %v992 = vadd.f32 %v925, %v960
        %v993 = vadd.f32 %v926, %v961
        %v994 = vadd.f32 %v927, %v962
        %v995 = vadd.f32 %v928, %v963
        %v996 = vadd.f32 %v929, %v964
        %v997 = vadd.f32 %v930, %v965
        %v998 = vadd.f32 %v931, %v966
        %v999 = vadd.f32 %v932, %v967
        %v1000 = vadd.f32 %v933, %v968
        %v1001 = vadd.f32 %v934, %v969
        %v1002 = vadd.f32 %v935, %v970
        %v1003 = vadd.f32 %v936, %v971
        %v1004 = vadd.f32 %v937, %v972
        %v1005 = vadd.f32 %v938, %v973
        %v1006 = vadd.f32 %v939, %v974
        %v1007 = vadd.f32 %v940, %v975
        %v1008 = vadd.f32 %v941, %v976
        %v1009 = vadd.f32 %v942, %v977
        %v1010 = vadd.f32 %v943, %v978
        %v1011 = vadd.f32 %v944, %v979
        %v1012 = vadd.f32 %v945, %v980
        %v1013 = vadd.f32 %v946, %v981
        %v1014 = vadd.f32 %v947, %v982
        %v1015 = vadd.f32 %v948, %v983
        %v1016 = vadd.f32 %v949, %v984
        %v1018 = vperm.slane %v282, 0
        %v1020 = vmul.f32 %v344, %v1018
        %v1021 = vmul.f32 %v345, %v1018
        %v1022 = vmul.f32 %v346, %v1018
        %v1023 = vmul.f32 %v347, %v1018
        %v1024 = vmul.f32 %v348, %v1018
        %v1025 = vmul.f32 %v349, %v1018
        %v1026 = vmul.f32 %v350, %v1018
        %v1027 = vmul.f32 %v351, %v1018
        %v1028 = vmul.f32 %v352, %v1018
        %v1029 = vmul.f32 %v353, %v1018
        %v1030 = vmul.f32 %v354, %v1018
        %v1031 = vmul.f32 %v355, %v1018
        %v1032 = vmul.f32 %v356, %v1018
        %v1033 = vmul.f32 %v357, %v1018
        %v1034 = vmul.f32 %v358, %v1018
        %v1035 = vmul.f32 %v359, %v1018
        %v1036 = vmul.f32 %v360, %v1018
        %v1037 = vmul.f32 %v361, %v1018
        %v1038 = vmul.f32 %v362, %v1018
        %v1039 = vmul.f32 %v363, %v1018
        %v1040 = vmul.f32 %v364, %v1018
        %v1041 = vmul.f32 %v365, %v1018
        %v1042 = vmul.f32 %v366, %v1018
        %v1043 = vmul.f32 %v367, %v1018
        %v1044 = vmul.f32 %v368, %v1018
        %v1045 = vmul.f32 %v369, %v1018
        %v1046 = vmul.f32 %v370, %v1018
        %v1047 = vmul.f32 %v371, %v1018
        %v1048 = vmul.f32 %v372, %v1018
        %v1049 = vmul.f32 %v373, %v1018
        %v1050 = vmul.f32 %v374, %v1018
        %v1051 = vmul.f32 %v375, %v1018
        %v1052 = vmul.f32 %v376, %v1018
        %v1053 = vmul.f32 %v377, %v1018
        %v1054 = vmul.f32 %v378, %v1018
        %v1055 = vmul.f32 %v379, %v1018
        %v1056 = vmul.f32 %v380, %v1018
        %v1057 = vmul.f32 %v381, %v1018
        %v1058 = vmul.f32 %v382, %v1018
        %v1059 = vmul.f32 %v383, %v1018
        %v1060 = vmul.f32 %v384, %v1018
        %v1061 = vmul.f32 %v385, %v1018
        %v1062 = vmul.f32 %v386, %v1018
        %v1063 = vmul.f32 %v387, %v1018
        %v1064 = vmul.f32 %v388, %v1018
        %v1065 = vmul.f32 %v389, %v1018
        %v1066 = vmul.f32 %v390, %v1018
        %v1067 = vmul.f32 %v391, %v1018
        %v1116 = vrot.slane %v1020, 1
        %v1117 = vrot.slane %v1021, 1
        %v1118 = vsel %vm561, %v1116, %v1117
        %v1119 = vrot.slane %v1022, 1
        %v1120 = vsel %vm561, %v1117, %v1119
        %v1121 = vrot.slane %v1023, 1
        %v1122 = vrot.slane %v1024, 1
        %v1123 = vsel %vm561, %v1121, %v1122
        %v1124 = vrot.slane %v1025, 1
        %v1125 = vsel %vm561, %v1122, %v1124
        %v1126 = vrot.slane %v1026, 1
        %v1127 = vrot.slane %v1027, 1
        %v1128 = vsel %vm561, %v1126, %v1127
        %v1129 = vrot.slane %v1028, 1
        %v1130 = vsel %vm561, %v1127, %v1129
        %v1131 = vrot.slane %v1029, 1
        %v1132 = vrot.slane %v1030, 1
        %v1133 = vsel %vm561, %v1131, %v1132
        %v1134 = vrot.slane %v1031, 1
        %v1135 = vsel %vm561, %v1132, %v1134
        %v1136 = vrot.slane %v1032, 1
        %v1137 = vrot.slane %v1033, 1
        %v1138 = vsel %vm561, %v1136, %v1137
        %v1139 = vrot.slane %v1034, 1
        %v1140 = vsel %vm561, %v1137, %v1139
        %v1141 = vrot.slane %v1035, 1
        %v1142 = vrot.slane %v1036, 1
        %v1143 = vsel %vm561, %v1141, %v1142
        %v1144 = vrot.slane %v1037, 1
        %v1145 = vsel %vm561, %v1142, %v1144
        %v1146 = vrot.slane %v1038, 1
        %v1147 = vrot.slane %v1039, 1
        %v1148 = vsel %vm561, %v1146, %v1147
        %v1149 = vrot.slane %v1040, 1
        %v1150 = vsel %vm561, %v1147, %v1149
        %v1151 = vrot.slane %v1041, 1
        %v1152 = vrot.slane %v1042, 1
        %v1153 = vsel %vm561, %v1151, %v1152
        %v1154 = vrot.slane %v1043, 1
        %v1155 = vsel %vm561, %v1152, %v1154
        %v1156 = vrot.slane %v1044, 1
        %v1157 = vrot.slane %v1045, 1
        %v1158 = vsel %vm561, %v1156, %v1157
        %v1159 = vrot.slane %v1046, 1
        %v1160 = vsel %vm561, %v1157, %v1159
        %v1161 = vrot.slane %v1047, 1
        %v1162 = vrot.slane %v1048, 1
        %v1163 = vsel %vm561, %v1161, %v1162
        %v1164 = vrot.slane %v1049, 1
        %v1165 = vsel %vm561, %v1162, %v1164
        %v1166 = vrot.slane %v1050, 1
        %v1167 = vrot.slane %v1051, 1
        %v1168 = vsel %vm561, %v1166, %v1167
        %v1169 = vrot.slane %v1052, 1
        %v1170 = vsel %vm561, %v1167, %v1169
        %v1171 = vrot.slane %v1053, 1
        %v1172 = vrot.slane %v1054, 1
        %v1173 = vsel %vm561, %v1171, %v1172
        %v1174 = vrot.slane %v1055, 1
        %v1175 = vsel %vm561, %v1172, %v1174
        %v1176 = vrot.slane %v1056, 1
        %v1177 = vrot.slane %v1057, 1
        %v1178 = vsel %vm561, %v1176, %v1177
        %v1179 = vrot.slane %v1058, 1
        %v1180 = vsel %vm561, %v1177, %v1179
        %v1181 = vrot.slane %v1059, 1
        %v1182 = vrot.slane %v1060, 1
        %v1183 = vsel %vm561, %v1181, %v1182
        %v1184 = vrot.slane %v1061, 1
        %v1185 = vsel %vm561, %v1182, %v1184
        %v1186 = vrot.slane %v1062, 1
        %v1187 = vrot.slane %v1063, 1
        %v1188 = vsel %vm561, %v1186, %v1187
        %v1189 = vrot.slane %v1064, 1
        %v1190 = vsel %vm561, %v1187, %v1189
        %v1191 = vrot.slane %v1065, 1
        %v1192 = vrot.slane %v1066, 1
        %v1193 = vsel %vm561, %v1191, %v1192
        %v1194 = vrot.slane %v1067, 1
        %v1195 = vsel %vm561, %v1192, %v1194
        %v1228 = vadd.f32 %v985, %v1118
        %v1229 = vadd.f32 %v986, %v1120
        %v1230 = vadd.f32 %v987, %v1123
        %v1231 = vadd.f32 %v988, %v1125
        %v1232 = vadd.f32 %v989, %v1128
        %v1233 = vadd.f32 %v990, %v1130
        %v1234 = vadd.f32 %v991, %v1133
        %v1235 = vadd.f32 %v992, %v1135
        %v1236 = vadd.f32 %v993, %v1138
        %v1237 = vadd.f32 %v994, %v1140
        %v1238 = vadd.f32 %v995, %v1143
        %v1239 = vadd.f32 %v996, %v1145
        %v1240 = vadd.f32 %v997, %v1148
        %v1241 = vadd.f32 %v998, %v1150
        %v1242 = vadd.f32 %v999, %v1153
        %v1243 = vadd.f32 %v1000, %v1155
        %v1244 = vadd.f32 %v1001, %v1158
        %v1245 = vadd.f32 %v1002, %v1160
        %v1246 = vadd.f32 %v1003, %v1163
        %v1247 = vadd.f32 %v1004, %v1165
        %v1248 = vadd.f32 %v1005, %v1168
        %v1249 = vadd.f32 %v1006, %v1170
        %v1250 = vadd.f32 %v1007, %v1173
        %v1251 = vadd.f32 %v1008, %v1175
        %v1252 = vadd.f32 %v1009, %v1178
        %v1253 = vadd.f32 %v1010, %v1180
        %v1254 = vadd.f32 %v1011, %v1183
        %v1255 = vadd.f32 %v1012, %v1185
        %v1256 = vadd.f32 %v1013, %v1188
        %v1257 = vadd.f32 %v1014, %v1190
        %v1258 = vadd.f32 %v1015, %v1193
        %v1259 = vadd.f32 %v1016, %v1195
        %v1261 = vperm.slane %v283, 0
        %v1263 = vmul.f32 %v344, %v1261
        %v1264 = vmul.f32 %v345, %v1261
        %v1265 = vmul.f32 %v346, %v1261
        %v1266 = vmul.f32 %v347, %v1261
        %v1267 = vmul.f32 %v348, %v1261
        %v1268 = vmul.f32 %v349, %v1261
        %v1269 = vmul.f32 %v350, %v1261
        %v1270 = vmul.f32 %v351, %v1261
        %v1271 = vmul.f32 %v352, %v1261
        %v1272 = vmul.f32 %v353, %v1261
        %v1273 = vmul.f32 %v354, %v1261
        %v1274 = vmul.f32 %v355, %v1261
        %v1275 = vmul.f32 %v356, %v1261
        %v1276 = vmul.f32 %v357, %v1261
        %v1277 = vmul.f32 %v358, %v1261
        %v1278 = vmul.f32 %v359, %v1261
        %v1279 = vmul.f32 %v360, %v1261
        %v1280 = vmul.f32 %v361, %v1261
        %v1281 = vmul.f32 %v362, %v1261
        %v1282 = vmul.f32 %v363, %v1261
        %v1283 = vmul.f32 %v364, %v1261
        %v1284 = vmul.f32 %v365, %v1261
        %v1285 = vmul.f32 %v366, %v1261
        %v1286 = vmul.f32 %v367, %v1261
        %v1287 = vmul.f32 %v368, %v1261
        %v1288 = vmul.f32 %v369, %v1261
        %v1289 = vmul.f32 %v370, %v1261
        %v1290 = vmul.f32 %v371, %v1261
        %v1291 = vmul.f32 %v372, %v1261
        %v1292 = vmul.f32 %v373, %v1261
        %v1293 = vmul.f32 %v374, %v1261
        %v1294 = vmul.f32 %v375, %v1261
        %v1295 = vmul.f32 %v376, %v1261
        %v1296 = vmul.f32 %v377, %v1261
        %v1297 = vmul.f32 %v378, %v1261
        %v1298 = vmul.f32 %v379, %v1261
        %v1299 = vmul.f32 %v380, %v1261
        %v1300 = vmul.f32 %v381, %v1261
        %v1301 = vmul.f32 %v382, %v1261
        %v1302 = vmul.f32 %v383, %v1261
        %v1303 = vmul.f32 %v384, %v1261
        %v1304 = vmul.f32 %v385, %v1261
        %v1305 = vmul.f32 %v386, %v1261
        %v1306 = vmul.f32 %v387, %v1261
        %v1307 = vmul.f32 %v388, %v1261
        %v1308 = vmul.f32 %v389, %v1261
        %v1309 = vmul.f32 %v390, %v1261
        %v1310 = vmul.f32 %v391, %v1261
        %v1359 = vrot.slane %v1263, 2
        %v1360 = vrot.slane %v1264, 2
        %v1361 = vsel %vm805, %v1359, %v1360
        %v1362 = vrot.slane %v1265, 2
        %v1363 = vsel %vm805, %v1360, %v1362
        %v1364 = vrot.slane %v1266, 2
        %v1365 = vrot.slane %v1267, 2
        %v1366 = vsel %vm805, %v1364, %v1365
        %v1367 = vrot.slane %v1268, 2
        %v1368 = vsel %vm805, %v1365, %v1367
        %v1369 = vrot.slane %v1269, 2
        %v1370 = vrot.slane %v1270, 2
        %v1371 = vsel %vm805, %v1369, %v1370
        %v1372 = vrot.slane %v1271, 2
        %v1373 = vsel %vm805, %v1370, %v1372
        %v1374 = vrot.slane %v1272, 2
        %v1375 = vrot.slane %v1273, 2
        %v1376 = vsel %vm805, %v1374, %v1375
        %v1377 = vrot.slane %v1274, 2
        %v1378 = vsel %vm805, %v1375, %v1377
        %v1379 = vrot.slane %v1275, 2
        %v1380 = vrot.slane %v1276, 2
        %v1381 = vsel %vm805, %v1379, %v1380
        %v1382 = vrot.slane %v1277, 2
        %v1383 = vsel %vm805, %v1380, %v1382
        %v1384 = vrot.slane %v1278, 2
        %v1385 = vrot.slane %v1279, 2
        %v1386 = vsel %vm805, %v1384, %v1385
        %v1387 = vrot.slane %v1280, 2
        %v1388 = vsel %vm805, %v1385, %v1387
        %v1389 = vrot.slane %v1281, 2
        %v1390 = vrot.slane %v1282, 2
        %v1391 = vsel %vm805, %v1389, %v1390
        %v1392 = vrot.slane %v1283, 2
        %v1393 = vsel %vm805, %v1390, %v1392
        %v1394 = vrot.slane %v1284, 2
        %v1395 = vrot.slane %v1285, 2
        %v1396 = vsel %vm805, %v1394, %v1395
        %v1397 = vrot.slane %v1286, 2
        %v1398 = vsel %vm805, %v1395, %v1397
        %v1399 = vrot.slane %v1287, 2
        %v1400 = vrot.slane %v1288, 2
        %v1401 = vsel %vm805, %v1399, %v1400
        %v1402 = vrot.slane %v1289, 2
        %v1403 = vsel %vm805, %v1400, %v1402
        %v1404 = vrot.slane %v1290, 2
        %v1405 = vrot.slane %v1291, 2
        %v1406 = vsel %vm805, %v1404, %v1405
        %v1407 = vrot.slane %v1292, 2
        %v1408 = vsel %vm805, %v1405, %v1407
        %v1409 = vrot.slane %v1293, 2
        %v1410 = vrot.slane %v1294, 2
        %v1411 = vsel %vm805, %v1409, %v1410
        %v1412 = vrot.slane %v1295, 2
        %v1413 = vsel %vm805, %v1410, %v1412
        %v1414 = vrot.slane %v1296, 2
        %v1415 = vrot.slane %v1297, 2
        %v1416 = vsel %vm805, %v1414, %v1415
        %v1417 = vrot.slane %v1298, 2
        %v1418 = vsel %vm805, %v1415, %v1417
        %v1419 = vrot.slane %v1299, 2
        %v1420 = vrot.slane %v1300, 2
        %v1421 = vsel %vm805, %v1419, %v1420
        %v1422 = vrot.slane %v1301, 2
        %v1423 = vsel %vm805, %v1420, %v1422
        %v1424 = vrot.slane %v1302, 2
        %v1425 = vrot.slane %v1303, 2
        %v1426 = vsel %vm805, %v1424, %v1425
        %v1427 = vrot.slane %v1304, 2
        %v1428 = vsel %vm805, %v1425, %v1427
        %v1429 = vrot.slane %v1305, 2
        %v1430 = vrot.slane %v1306, 2
        %v1431 = vsel %vm805, %v1429, %v1430
        %v1432 = vrot.slane %v1307, 2
        %v1433 = vsel %vm805, %v1430, %v1432
        %v1434 = vrot.slane %v1308, 2
        %v1435 = vrot.slane %v1309, 2
        %v1436 = vsel %vm805, %v1434, %v1435
        %v1437 = vrot.slane %v1310, 2
        %v1438 = vsel %vm805, %v1435, %v1437
        %v1471 = vadd.f32 %v1228, %v1361
        %v1472 = vadd.f32 %v1229, %v1363
        %v1473 = vadd.f32 %v1230, %v1366
        %v1474 = vadd.f32 %v1231, %v1368
        %v1475 = vadd.f32 %v1232, %v1371
        %v1476 = vadd.f32 %v1233, %v1373
        %v1477 = vadd.f32 %v1234, %v1376
        %v1478 = vadd.f32 %v1235, %v1378
        %v1479 = vadd.f32 %v1236, %v1381
        %v1480 = vadd.f32 %v1237, %v1383
        %v1481 = vadd.f32 %v1238, %v1386
        %v1482 = vadd.f32 %v1239, %v1388
        %v1483 = vadd.f32 %v1240, %v1391
        %v1484 = vadd.f32 %v1241, %v1393
        %v1485 = vadd.f32 %v1242, %v1396
        %v1486 = vadd.f32 %v1243, %v1398
        %v1487 = vadd.f32 %v1244, %v1401
        %v1488 = vadd.f32 %v1245, %v1403
        %v1489 = vadd.f32 %v1246, %v1406
        %v1490 = vadd.f32 %v1247, %v1408
        %v1491 = vadd.f32 %v1248, %v1411
        %v1492 = vadd.f32 %v1249, %v1413
        %v1493 = vadd.f32 %v1250, %v1416
        %v1494 = vadd.f32 %v1251, %v1418
        %v1495 = vadd.f32 %v1252, %v1421
        %v1496 = vadd.f32 %v1253, %v1423
        %v1497 = vadd.f32 %v1254, %v1426
        %v1498 = vadd.f32 %v1255, %v1428
        %v1499 = vadd.f32 %v1256, %v1431
        %v1500 = vadd.f32 %v1257, %v1433
        %v1501 = vadd.f32 %v1258, %v1436
        %v1502 = vadd.f32 %v1259, %v1438
        %v1504 = vperm.slane %v284, 0
        %v1506 = vmul.f32 %v347, %v1504
        %v1507 = vmul.f32 %v348, %v1504
        %v1508 = vmul.f32 %v350, %v1504
        %v1509 = vmul.f32 %v351, %v1504
        %v1510 = vmul.f32 %v353, %v1504
        %v1511 = vmul.f32 %v354, %v1504
        %v1512 = vmul.f32 %v356, %v1504
        %v1513 = vmul.f32 %v357, %v1504
        %v1514 = vmul.f32 %v359, %v1504
        %v1515 = vmul.f32 %v360, %v1504
        %v1516 = vmul.f32 %v362, %v1504
        %v1517 = vmul.f32 %v363, %v1504
        %v1518 = vmul.f32 %v365, %v1504
        %v1519 = vmul.f32 %v366, %v1504
        %v1520 = vmul.f32 %v368, %v1504
        %v1521 = vmul.f32 %v369, %v1504
        %v1522 = vmul.f32 %v371, %v1504
        %v1523 = vmul.f32 %v372, %v1504
        %v1524 = vmul.f32 %v374, %v1504
        %v1525 = vmul.f32 %v375, %v1504
        %v1526 = vmul.f32 %v377, %v1504
        %v1527 = vmul.f32 %v378, %v1504
        %v1528 = vmul.f32 %v380, %v1504
        %v1529 = vmul.f32 %v381, %v1504
        %v1530 = vmul.f32 %v383, %v1504
        %v1531 = vmul.f32 %v384, %v1504
        %v1532 = vmul.f32 %v386, %v1504
        %v1533 = vmul.f32 %v387, %v1504
        %v1534 = vmul.f32 %v389, %v1504
        %v1535 = vmul.f32 %v390, %v1504
        %v1536 = vmul.f32 %v392, %v1504
        %v1537 = vmul.f32 %v393, %v1504
        %v1538 = vadd.f32 %v1471, %v1506
        %v1539 = vadd.f32 %v1472, %v1507
        %v1540 = vadd.f32 %v1473, %v1508
        %v1541 = vadd.f32 %v1474, %v1509
        %v1542 = vadd.f32 %v1475, %v1510
        %v1543 = vadd.f32 %v1476, %v1511
        %v1544 = vadd.f32 %v1477, %v1512
        %v1545 = vadd.f32 %v1478, %v1513
        %v1546 = vadd.f32 %v1479, %v1514
        %v1547 = vadd.f32 %v1480, %v1515
        %v1548 = vadd.f32 %v1481, %v1516
        %v1549 = vadd.f32 %v1482, %v1517
        %v1550 = vadd.f32 %v1483, %v1518
        %v1551 = vadd.f32 %v1484, %v1519
        %v1552 = vadd.f32 %v1485, %v1520
        %v1553 = vadd.f32 %v1486, %v1521
        %v1554 = vadd.f32 %v1487, %v1522
        %v1555 = vadd.f32 %v1488, %v1523
        %v1556 = vadd.f32 %v1489, %v1524
        %v1557 = vadd.f32 %v1490, %v1525
        %v1558 = vadd.f32 %v1491, %v1526
        %v1559 = vadd.f32 %v1492, %v1527
        %v1560 = vadd.f32 %v1493, %v1528
        %v1561 = vadd.f32 %v1494, %v1529
        %v1562 = vadd.f32 %v1495, %v1530
        %v1563 = vadd.f32 %v1496, %v1531
        %v1564 = vadd.f32 %v1497, %v1532
        %v1565 = vadd.f32 %v1498, %v1533
        %v1566 = vadd.f32 %v1499, %v1534
        %v1567 = vadd.f32 %v1500, %v1535
        %v1568 = vadd.f32 %v1501, %v1536
        %v1569 = vadd.f32 %v1502, %v1537
        %v1571 = vperm.slane %v285, 0
        %v1573 = vmul.f32 %v347, %v1571
        %v1574 = vmul.f32 %v348, %v1571
        %v1575 = vmul.f32 %v349, %v1571
        %v1576 = vmul.f32 %v350, %v1571
        %v1577 = vmul.f32 %v351, %v1571
        %v1578 = vmul.f32 %v352, %v1571
        %v1579 = vmul.f32 %v353, %v1571
        %v1580 = vmul.f32 %v354, %v1571
        %v1581 = vmul.f32 %v355, %v1571
        %v1582 = vmul.f32 %v356, %v1571
        %v1583 = vmul.f32 %v357, %v1571
        %v1584 = vmul.f32 %v358, %v1571
        %v1585 = vmul.f32 %v359, %v1571
        %v1586 = vmul.f32 %v360, %v1571
        %v1587 = vmul.f32 %v361, %v1571
        %v1588 = vmul.f32 %v362, %v1571
        %v1589 = vmul.f32 %v363, %v1571
        %v1590 = vmul.f32 %v364, %v1571
        %v1591 = vmul.f32 %v365, %v1571
        %v1592 = vmul.f32 %v366, %v1571
        %v1593 = vmul.f32 %v367, %v1571
        %v1594 = vmul.f32 %v368, %v1571
        %v1595 = vmul.f32 %v369, %v1571
        %v1596 = vmul.f32 %v370, %v1571
        %v1597 = vmul.f32 %v371, %v1571
        %v1598 = vmul.f32 %v372, %v1571
        %v1599 = vmul.f32 %v373, %v1571
        %v1600 = vmul.f32 %v374, %v1571
        %v1601 = vmul.f32 %v375, %v1571
        %v1602 = vmul.f32 %v376, %v1571
        %v1603 = vmul.f32 %v377, %v1571
        %v1604 = vmul.f32 %v378, %v1571
        %v1605 = vmul.f32 %v379, %v1571
        %v1606 = vmul.f32 %v380, %v1571
        %v1607 = vmul.f32 %v381, %v1571
        %v1608 = vmul.f32 %v382, %v1571
        %v1609 = vmul.f32 %v383, %v1571
        %v1610 = vmul.f32 %v384, %v1571
        %v1611 = vmul.f32 %v385, %v1571
        %v1612 = vmul.f32 %v386, %v1571
        %v1613 = vmul.f32 %v387, %v1571
        %v1614 = vmul.f32 %v388, %v1571
        %v1615 = vmul.f32 %v389, %v1571
        %v1616 = vmul.f32 %v390, %v1571
        %v1617 = vmul.f32 %v391, %v1571
        %v1618 = vmul.f32 %v392, %v1571
        %v1619 = vmul.f32 %v393, %v1571
        %v1620 = vmul.f32 %v394, %v1571
        %v1669 = vrot.slane %v1573, 1
        %v1670 = vrot.slane %v1574, 1
        %v1671 = vsel %vm561, %v1669, %v1670
        %v1672 = vrot.slane %v1575, 1
        %v1673 = vsel %vm561, %v1670, %v1672
        %v1674 = vrot.slane %v1576, 1
        %v1675 = vrot.slane %v1577, 1
        %v1676 = vsel %vm561, %v1674, %v1675
        %v1677 = vrot.slane %v1578, 1
        %v1678 = vsel %vm561, %v1675, %v1677
        %v1679 = vrot.slane %v1579, 1
        %v1680 = vrot.slane %v1580, 1
        %v1681 = vsel %vm561, %v1679, %v1680
        %v1682 = vrot.slane %v1581, 1
        %v1683 = vsel %vm561, %v1680, %v1682
        %v1684 = vrot.slane %v1582, 1
        %v1685 = vrot.slane %v1583, 1
        %v1686 = vsel %vm561, %v1684, %v1685
        %v1687 = vrot.slane %v1584, 1
        %v1688 = vsel %vm561, %v1685, %v1687
        %v1689 = vrot.slane %v1585, 1
        %v1690 = vrot.slane %v1586, 1
        %v1691 = vsel %vm561, %v1689, %v1690
        %v1692 = vrot.slane %v1587, 1
        %v1693 = vsel %vm561, %v1690, %v1692
        %v1694 = vrot.slane %v1588, 1
        %v1695 = vrot.slane %v1589, 1
        %v1696 = vsel %vm561, %v1694, %v1695
        %v1697 = vrot.slane %v1590, 1
        %v1698 = vsel %vm561, %v1695, %v1697
        %v1699 = vrot.slane %v1591, 1
        %v1700 = vrot.slane %v1592, 1
        %v1701 = vsel %vm561, %v1699, %v1700
        %v1702 = vrot.slane %v1593, 1
        %v1703 = vsel %vm561, %v1700, %v1702
        %v1704 = vrot.slane %v1594, 1
        %v1705 = vrot.slane %v1595, 1
        %v1706 = vsel %vm561, %v1704, %v1705
        %v1707 = vrot.slane %v1596, 1
        %v1708 = vsel %vm561, %v1705, %v1707
        %v1709 = vrot.slane %v1597, 1
        %v1710 = vrot.slane %v1598, 1
        %v1711 = vsel %vm561, %v1709, %v1710
        %v1712 = vrot.slane %v1599, 1
        %v1713 = vsel %vm561, %v1710, %v1712
        %v1714 = vrot.slane %v1600, 1
        %v1715 = vrot.slane %v1601, 1
        %v1716 = vsel %vm561, %v1714, %v1715
        %v1717 = vrot.slane %v1602, 1
        %v1718 = vsel %vm561, %v1715, %v1717
        %v1719 = vrot.slane %v1603, 1
        %v1720 = vrot.slane %v1604, 1
        %v1721 = vsel %vm561, %v1719, %v1720
        %v1722 = vrot.slane %v1605, 1
        %v1723 = vsel %vm561, %v1720, %v1722
        %v1724 = vrot.slane %v1606, 1
        %v1725 = vrot.slane %v1607, 1
        %v1726 = vsel %vm561, %v1724, %v1725
        %v1727 = vrot.slane %v1608, 1
        %v1728 = vsel %vm561, %v1725, %v1727
        %v1729 = vrot.slane %v1609, 1
        %v1730 = vrot.slane %v1610, 1
        %v1731 = vsel %vm561, %v1729, %v1730
        %v1732 = vrot.slane %v1611, 1
        %v1733 = vsel %vm561, %v1730, %v1732
        %v1734 = vrot.slane %v1612, 1
        %v1735 = vrot.slane %v1613, 1
        %v1736 = vsel %vm561, %v1734, %v1735
        %v1737 = vrot.slane %v1614, 1
        %v1738 = vsel %vm561, %v1735, %v1737
        %v1739 = vrot.slane %v1615, 1
        %v1740 = vrot.slane %v1616, 1
        %v1741 = vsel %vm561, %v1739, %v1740
        %v1742 = vrot.slane %v1617, 1
        %v1743 = vsel %vm561, %v1740, %v1742
        %v1744 = vrot.slane %v1618, 1
        %v1745 = vrot.slane %v1619, 1
        %v1746 = vsel %vm561, %v1744, %v1745
        %v1747 = vrot.slane %v1620, 1
        %v1748 = vsel %vm561, %v1745, %v1747
        %v1781 = vadd.f32 %v1538, %v1671
        %v1782 = vadd.f32 %v1539, %v1673
        %v1783 = vadd.f32 %v1540, %v1676
        %v1784 = vadd.f32 %v1541, %v1678
        %v1785 = vadd.f32 %v1542, %v1681
        %v1786 = vadd.f32 %v1543, %v1683
        %v1787 = vadd.f32 %v1544, %v1686
        %v1788 = vadd.f32 %v1545, %v1688
        %v1789 = vadd.f32 %v1546, %v1691
        %v1790 = vadd.f32 %v1547, %v1693
        %v1791 = vadd.f32 %v1548, %v1696
        %v1792 = vadd.f32 %v1549, %v1698
        %v1793 = vadd.f32 %v1550, %v1701
        %v1794 = vadd.f32 %v1551, %v1703
        %v1795 = vadd.f32 %v1552, %v1706
        %v1796 = vadd.f32 %v1553, %v1708
        %v1797 = vadd.f32 %v1554, %v1711
        %v1798 = vadd.f32 %v1555, %v1713
        %v1799 = vadd.f32 %v1556, %v1716
        %v1800 = vadd.f32 %v1557, %v1718
        %v1801 = vadd.f32 %v1558, %v1721
        %v1802 = vadd.f32 %v1559, %v1723
        %v1803 = vadd.f32 %v1560, %v1726
        %v1804 = vadd.f32 %v1561, %v1728
        %v1805 = vadd.f32 %v1562, %v1731
        %v1806 = vadd.f32 %v1563, %v1733
        %v1807 = vadd.f32 %v1564, %v1736
        %v1808 = vadd.f32 %v1565, %v1738
        %v1809 = vadd.f32 %v1566, %v1741
        %v1810 = vadd.f32 %v1567, %v1743
        %v1811 = vadd.f32 %v1568, %v1746
        %v1812 = vadd.f32 %v1569, %v1748
        %v1814 = vperm.slane %v286, 0
        %v1816 = vmul.f32 %v347, %v1814
        %v1817 = vmul.f32 %v348, %v1814
        %v1818 = vmul.f32 %v349, %v1814
        %v1819 = vmul.f32 %v350, %v1814
        %v1820 = vmul.f32 %v351, %v1814
        %v1821 = vmul.f32 %v352, %v1814
        %v1822 = vmul.f32 %v353, %v1814
        %v1823 = vmul.f32 %v354, %v1814
        %v1824 = vmul.f32 %v355, %v1814
        %v1825 = vmul.f32 %v356, %v1814
        %v1826 = vmul.f32 %v357, %v1814
        %v1827 = vmul.f32 %v358, %v1814
        %v1828 = vmul.f32 %v359, %v1814
        %v1829 = vmul.f32 %v360, %v1814
        %v1830 = vmul.f32 %v361, %v1814
        %v1831 = vmul.f32 %v362, %v1814
        %v1832 = vmul.f32 %v363, %v1814
        %v1833 = vmul.f32 %v364, %v1814
        %v1834 = vmul.f32 %v365, %v1814
        %v1835 = vmul.f32 %v366, %v1814
        %v1836 = vmul.f32 %v367, %v1814
        %v1837 = vmul.f32 %v368, %v1814
        %v1838 = vmul.f32 %v369, %v1814
        %v1839 = vmul.f32 %v370, %v1814
        %v1840 = vmul.f32 %v371, %v1814
        %v1841 = vmul.f32 %v372, %v1814
        %v1842 = vmul.f32 %v373, %v1814
        %v1843 = vmul.f32 %v374, %v1814
        %v1844 = vmul.f32 %v375, %v1814
        %v1845 = vmul.f32 %v376, %v1814
        %v1846 = vmul.f32 %v377, %v1814
        %v1847 = vmul.f32 %v378, %v1814
        %v1848 = vmul.f32 %v379, %v1814
        %v1849 = vmul.f32 %v380, %v1814
        %v1850 = vmul.f32 %v381, %v1814
        %v1851 = vmul.f32 %v382, %v1814
        %v1852 = vmul.f32 %v383, %v1814
        %v1853 = vmul.f32 %v384, %v1814
        %v1854 = vmul.f32 %v385, %v1814
        %v1855 = vmul.f32 %v386, %v1814
        %v1856 = vmul.f32 %v387, %v1814
        %v1857 = vmul.f32 %v388, %v1814
        %v1858 = vmul.f32 %v389, %v1814
        %v1859 = vmul.f32 %v390, %v1814
        %v1860 = vmul.f32 %v391, %v1814
        %v1861 = vmul.f32 %v392, %v1814
        %v1862 = vmul.f32 %v393, %v1814
        %v1863 = vmul.f32 %v394, %v1814
        %v1912 = vrot.slane %v1816, 2
        %v1913 = vrot.slane %v1817, 2
        %v1914 = vsel %vm805, %v1912, %v1913
        %v1915 = vrot.slane %v1818, 2
        %v1916 = vsel %vm805, %v1913, %v1915
        %v1917 = vrot.slane %v1819, 2
        %v1918 = vrot.slane %v1820, 2
        %v1919 = vsel %vm805, %v1917, %v1918
        %v1920 = vrot.slane %v1821, 2
        %v1921 = vsel %vm805, %v1918, %v1920
        %v1922 = vrot.slane %v1822, 2
        %v1923 = vrot.slane %v1823, 2
        %v1924 = vsel %vm805, %v1922, %v1923
        %v1925 = vrot.slane %v1824, 2
        %v1926 = vsel %vm805, %v1923, %v1925
        %v1927 = vrot.slane %v1825, 2
        %v1928 = vrot.slane %v1826, 2
        %v1929 = vsel %vm805, %v1927, %v1928
        %v1930 = vrot.slane %v1827, 2
        %v1931 = vsel %vm805, %v1928, %v1930
        %v1932 = vrot.slane %v1828, 2
        %v1933 = vrot.slane %v1829, 2
        %v1934 = vsel %vm805, %v1932, %v1933
        %v1935 = vrot.slane %v1830, 2
        %v1936 = vsel %vm805, %v1933, %v1935
        %v1937 = vrot.slane %v1831, 2
        %v1938 = vrot.slane %v1832, 2
        %v1939 = vsel %vm805, %v1937, %v1938
        %v1940 = vrot.slane %v1833, 2
        %v1941 = vsel %vm805, %v1938, %v1940
        %v1942 = vrot.slane %v1834, 2
        %v1943 = vrot.slane %v1835, 2
        %v1944 = vsel %vm805, %v1942, %v1943
        %v1945 = vrot.slane %v1836, 2
        %v1946 = vsel %vm805, %v1943, %v1945
        %v1947 = vrot.slane %v1837, 2
        %v1948 = vrot.slane %v1838, 2
        %v1949 = vsel %vm805, %v1947, %v1948
        %v1950 = vrot.slane %v1839, 2
        %v1951 = vsel %vm805, %v1948, %v1950
        %v1952 = vrot.slane %v1840, 2
        %v1953 = vrot.slane %v1841, 2
        %v1954 = vsel %vm805, %v1952, %v1953
        %v1955 = vrot.slane %v1842, 2
        %v1956 = vsel %vm805, %v1953, %v1955
        %v1957 = vrot.slane %v1843, 2
        %v1958 = vrot.slane %v1844, 2
        %v1959 = vsel %vm805, %v1957, %v1958
        %v1960 = vrot.slane %v1845, 2
        %v1961 = vsel %vm805, %v1958, %v1960
        %v1962 = vrot.slane %v1846, 2
        %v1963 = vrot.slane %v1847, 2
        %v1964 = vsel %vm805, %v1962, %v1963
        %v1965 = vrot.slane %v1848, 2
        %v1966 = vsel %vm805, %v1963, %v1965
        %v1967 = vrot.slane %v1849, 2
        %v1968 = vrot.slane %v1850, 2
        %v1969 = vsel %vm805, %v1967, %v1968
        %v1970 = vrot.slane %v1851, 2
        %v1971 = vsel %vm805, %v1968, %v1970
        %v1972 = vrot.slane %v1852, 2
        %v1973 = vrot.slane %v1853, 2
        %v1974 = vsel %vm805, %v1972, %v1973
        %v1975 = vrot.slane %v1854, 2
        %v1976 = vsel %vm805, %v1973, %v1975
        %v1977 = vrot.slane %v1855, 2
        %v1978 = vrot.slane %v1856, 2
        %v1979 = vsel %vm805, %v1977, %v1978
        %v1980 = vrot.slane %v1857, 2
        %v1981 = vsel %vm805, %v1978, %v1980
        %v1982 = vrot.slane %v1858, 2
        %v1983 = vrot.slane %v1859, 2
        %v1984 = vsel %vm805, %v1982, %v1983
        %v1985 = vrot.slane %v1860, 2
        %v1986 = vsel %vm805, %v1983, %v1985
        %v1987 = vrot.slane %v1861, 2
        %v1988 = vrot.slane %v1862, 2
        %v1989 = vsel %vm805, %v1987, %v1988
        %v1990 = vrot.slane %v1863, 2
        %v1991 = vsel %vm805, %v1988, %v1990
        %v2024 = vadd.f32 %v1781, %v1914
        %v2025 = vadd.f32 %v1782, %v1916
        %v2026 = vadd.f32 %v1783, %v1919
        %v2027 = vadd.f32 %v1784, %v1921
        %v2028 = vadd.f32 %v1785, %v1924
        %v2029 = vadd.f32 %v1786, %v1926
        %v2030 = vadd.f32 %v1787, %v1929
        %v2031 = vadd.f32 %v1788, %v1931
        %v2032 = vadd.f32 %v1789, %v1934
        %v2033 = vadd.f32 %v1790, %v1936
        %v2034 = vadd.f32 %v1791, %v1939
        %v2035 = vadd.f32 %v1792, %v1941
        %v2036 = vadd.f32 %v1793, %v1944
        %v2037 = vadd.f32 %v1794, %v1946
        %v2038 = vadd.f32 %v1795, %v1949
        %v2039 = vadd.f32 %v1796, %v1951
        %v2040 = vadd.f32 %v1797, %v1954
        %v2041 = vadd.f32 %v1798, %v1956
        %v2042 = vadd.f32 %v1799, %v1959
        %v2043 = vadd.f32 %v1800, %v1961
        %v2044 = vadd.f32 %v1801, %v1964
        %v2045 = vadd.f32 %v1802, %v1966
        %v2046 = vadd.f32 %v1803, %v1969
        %v2047 = vadd.f32 %v1804, %v1971
        %v2048 = vadd.f32 %v1805, %v1974
        %v2049 = vadd.f32 %v1806, %v1976
        %v2050 = vadd.f32 %v1807, %v1979
        %v2051 = vadd.f32 %v1808, %v1981
        %v2052 = vadd.f32 %v1809, %v1984
        %v2053 = vadd.f32 %v1810, %v1986
        %v2054 = vadd.f32 %v1811, %v1989
        %v2055 = vadd.f32 %v1812, %v1991
        %v2056 = vpack.c.bf16 %v2025, %v2024
        %v2057 = vpack.c.bf16 %v2027, %v2026
        %v2058 = vpack.c.bf16 %v2029, %v2028
        %v2059 = vpack.c.bf16 %v2031, %v2030
        %v2060 = vpack.c.bf16 %v2033, %v2032
        %v2061 = vpack.c.bf16 %v2035, %v2034
        %v2062 = vpack.c.bf16 %v2037, %v2036
        %v2063 = vpack.c.bf16 %v2039, %v2038
        %v2064 = vpack.c.bf16 %v2041, %v2040
        %v2065 = vpack.c.bf16 %v2043, %v2042
        %v2066 = vpack.c.bf16 %v2045, %v2044
        %v2067 = vpack.c.bf16 %v2047, %v2046
        %v2068 = vpack.c.bf16 %v2049, %v2048
        %v2069 = vpack.c.bf16 %v2051, %v2050
        %v2070 = vpack.c.bf16 %v2053, %v2052
        %v2071 = vpack.c.bf16 %v2055, %v2054
        %v2072 = vld [vmem:[%s2] sm:$0x3]
        %v2073 = vld [vmem:[%s3] sm:$0x1]
        %v2075 = vperm.slane %v2073, 0
        %vm2077 = vcmask 31744
        %v2079 = vsel %vm2077, %v2056, 0
        %v2082 = vsel %vm2077, %v2057, 0
        %v2085 = vsel %vm2077, %v2058, 0
        %v2088 = vsel %vm2077, %v2059, 0
        %v2091 = vsel %vm2077, %v2060, 0
        %v2094 = vsel %vm2077, %v2061, 0
        %v2097 = vsel %vm2077, %v2062, 0
        %v2100 = vsel %vm2077, %v2063, 0
        %v2103 = vsel %vm2077, %v2064, 0
        %v2106 = vsel %vm2077, %v2065, 0
        %v2109 = vsel %vm2077, %v2066, 0
        %v2112 = vsel %vm2077, %v2067, 0
        %v2115 = vsel %vm2077, %v2068, 0
        %v2118 = vsel %vm2077, %v2069, 0
        %v2121 = vsel %vm2077, %v2070, 0
        %v2124 = vsel %vm2077, %v2071, 0
        %vm2126 = vcmask 1041408
        %v2128 = vsel %vm2126, %v2072, 0
        %2130 = vmatpush.bf16.msra.mxu0 0
        %2131 = vmatpush.bf16.msra.mxu0 0
        %2132 = vmatpush.bf16.msra.mxu0 0
        %2133 = vmatpush.bf16.msra.mxu0 0
        %2134 = vmatpush.bf16.msra.mxu0 0
        %2135 = vmatpush.bf16.msra.mxu0 0
        %2136 = vmatpush.bf16.msra.mxu0 0
        %2137 = vmatpush.bf16.msra.mxu0 %v2128
        %2138 = vmatmul.bf16.gmra.mxu0 %v2079
        %v2139 = vpop.f32.mrf.mxu0
        %v2140 = vadd.f32 %v2075, %v2139
        %v2141 = vpop.f32.mrf.mxu0
        %v2142 = vadd.f32 %v2075, %v2141
        %2143 = vmatmul.bf16.gmra.mxu0 %v2082
        %v2144 = vpop.f32.mrf.mxu0
        %v2145 = vadd.f32 %v2075, %v2144
        %v2146 = vpop.f32.mrf.mxu0
        %v2147 = vadd.f32 %v2075, %v2146
        %2148 = vmatmul.bf16.gmra.mxu0 %v2085
        %v2149 = vpop.f32.mrf.mxu0
        %v2150 = vadd.f32 %v2075, %v2149
        %v2151 = vpop.f32.mrf.mxu0
        %v2152 = vadd.f32 %v2075, %v2151
        %2153 = vmatmul.bf16.gmra.mxu0 %v2088
        %v2154 = vpop.f32.mrf.mxu0
        %v2155 = vadd.f32 %v2075, %v2154
        %v2156 = vpop.f32.mrf.mxu0
        %v2157 = vadd.f32 %v2075, %v2156
        %2158 = vmatmul.bf16.gmra.mxu0 %v2091
        %v2159 = vpop.f32.mrf.mxu0
        %v2160 = vadd.f32 %v2075, %v2159
        %v2161 = vpop.f32.mrf.mxu0
        %v2162 = vadd.f32 %v2075, %v2161
        %2163 = vmatmul.bf16.gmra.mxu0 %v2094
        %v2164 = vpop.f32.mrf.mxu0
        %v2165 = vadd.f32 %v2075, %v2164
        %v2166 = vpop.f32.mrf.mxu0
        %v2167 = vadd.f32 %v2075, %v2166
        %2168 = vmatmul.bf16.gmra.mxu0 %v2097
        %v2169 = vpop.f32.mrf.mxu0
        %v2170 = vadd.f32 %v2075, %v2169
        %v2171 = vpop.f32.mrf.mxu0
        %v2172 = vadd.f32 %v2075, %v2171
        %2173 = vmatmul.bf16.gmra.mxu0 %v2100
        %v2174 = vpop.f32.mrf.mxu0
        %v2175 = vadd.f32 %v2075, %v2174
        %v2176 = vpop.f32.mrf.mxu0
        %v2177 = vadd.f32 %v2075, %v2176
        %2178 = vmatmul.bf16.gmra.mxu0 %v2103
        %v2179 = vpop.f32.mrf.mxu0
        %v2180 = vadd.f32 %v2075, %v2179
        %v2181 = vpop.f32.mrf.mxu0
        %v2182 = vadd.f32 %v2075, %v2181
        %2183 = vmatmul.bf16.gmra.mxu0 %v2106
        %v2184 = vpop.f32.mrf.mxu0
        %v2185 = vadd.f32 %v2075, %v2184
        %v2186 = vpop.f32.mrf.mxu0
        %v2187 = vadd.f32 %v2075, %v2186
        %2188 = vmatmul.bf16.gmra.mxu0 %v2109
        %v2189 = vpop.f32.mrf.mxu0
        %v2190 = vadd.f32 %v2075, %v2189
        %v2191 = vpop.f32.mrf.mxu0
        %v2192 = vadd.f32 %v2075, %v2191
        %2193 = vmatmul.bf16.gmra.mxu0 %v2112
        %v2194 = vpop.f32.mrf.mxu0
        %v2195 = vadd.f32 %v2075, %v2194
        %v2196 = vpop.f32.mrf.mxu0
        %v2197 = vadd.f32 %v2075, %v2196
        %2198 = vmatmul.bf16.gmra.mxu0 %v2115
        %v2199 = vpop.f32.mrf.mxu0
        %v2200 = vadd.f32 %v2075, %v2199
        %v2201 = vpop.f32.mrf.mxu0
        %v2202 = vadd.f32 %v2075, %v2201
        %2203 = vmatmul.bf16.gmra.mxu0 %v2118
        %v2204 = vpop.f32.mrf.mxu0
        %v2205 = vadd.f32 %v2075, %v2204
        %v2206 = vpop.f32.mrf.mxu0
        %v2207 = vadd.f32 %v2075, %v2206
        %2208 = vmatmul.bf16.gmra.mxu0 %v2121
        %v2209 = vpop.f32.mrf.mxu0
        %v2210 = vadd.f32 %v2075, %v2209
        %v2211 = vpop.f32.mrf.mxu0
        %v2212 = vadd.f32 %v2075, %v2211
        %2213 = vmatmul.bf16.gmra.mxu0 %v2124
        %v2214 = vpop.f32.mrf.mxu0
        %v2215 = vadd.f32 %v2075, %v2214
        %v2216 = vpop.f32.mrf.mxu0
        %v2217 = vadd.f32 %v2075, %v2216
        %2218 = vdwg.mxu0
        %v2219 = vmax.f32 %v2140, 0.0
        %v2220 = vmax.f32 %v2142, 0.0
        %v2221 = vmax.f32 %v2145, 0.0
        %v2222 = vmax.f32 %v2147, 0.0
        %v2223 = vmax.f32 %v2150, 0.0
        %v2224 = vmax.f32 %v2152, 0.0
        %v2225 = vmax.f32 %v2155, 0.0
        %v2226 = vmax.f32 %v2157, 0.0
        %v2227 = vmax.f32 %v2160, 0.0
        %v2228 = vmax.f32 %v2162, 0.0
        %v2229 = vmax.f32 %v2165, 0.0
        %v2230 = vmax.f32 %v2167, 0.0
        %v2231 = vmax.f32 %v2170, 0.0
        %v2232 = vmax.f32 %v2172, 0.0
        %v2233 = vmax.f32 %v2175, 0.0
        %v2234 = vmax.f32 %v2177, 0.0
        %v2235 = vmax.f32 %v2180, 0.0
        %v2236 = vmax.f32 %v2182, 0.0
        %v2237 = vmax.f32 %v2185, 0.0
        %v2238 = vmax.f32 %v2187, 0.0
        %v2239 = vmax.f32 %v2190, 0.0
        %v2240 = vmax.f32 %v2192, 0.0
        %v2241 = vmax.f32 %v2195, 0.0
        %v2242 = vmax.f32 %v2197, 0.0
        %v2243 = vmax.f32 %v2200, 0.0
        %v2244 = vmax.f32 %v2202, 0.0
        %v2245 = vmax.f32 %v2205, 0.0
        %v2246 = vmax.f32 %v2207, 0.0
        %v2247 = vmax.f32 %v2210, 0.0
        %v2248 = vmax.f32 %v2212, 0.0
        %v2249 = vmax.f32 %v2215, 0.0
        %v2250 = vmax.f32 %v2217, 0.0
        %2251 = vst.msk [vmem:[#allocation2] sm:$0xff] %vm2077, 0.0
        %2252 = vst.msk [vmem:[#allocation2 + $0x8] sm:$0xff] %vm2077, 0.0
        %vm2253 = vcmask 25600
        %2254 = vst.msk [vmem:[#allocation2 + $0x10] sm:$0x3] %vm2253, 0.0
        %s2255 = scalar_lea.vmem [#allocation2], 408
        %2256 = vst.msk [vmem:[%s2255] sm:$0xff] %vm2077, 0.0
        %2257 = vst.msk [vmem:[%s2255 + $0x8] sm:$0xff] %vm2077, 0.0
        %2258 = vst.msk [vmem:[%s2255 + $0x10] sm:$0x3] %vm2253, 0.0
        %vm2259 = vcmask 24576
        %2260 = vst.msk [vmem:[#allocation2] sm:$0x1] %vm2259, 0.0
        %2261 = vst.msk [vmem:[#allocation2 + $0x18] sm:$0x1] %vm2259, 0.0
        %2262 = vst.msk [vmem:[#allocation2 + $0x30] sm:$0x1] %vm2259, 0.0
        %2263 = vst.msk [vmem:[#allocation2 + $0x48] sm:$0x1] %vm2259, 0.0
        %2264 = vst.msk [vmem:[#allocation2 + $0x60] sm:$0x1] %vm2259, 0.0
        %2265 = vst.msk [vmem:[#allocation2 + $0x78] sm:$0x1] %vm2259, 0.0
        %2266 = vst.msk [vmem:[#allocation2 + $0x90] sm:$0x1] %vm2259, 0.0
        %2267 = vst.msk [vmem:[#allocation2 + $0xa8] sm:$0x1] %vm2259, 0.0
        %2268 = vst.msk [vmem:[#allocation2 + $0xc0] sm:$0x1] %vm2259, 0.0
        %2269 = vst.msk [vmem:[#allocation2 + $0xd8] sm:$0x1] %vm2259, 0.0
        %2270 = vst.msk [vmem:[#allocation2 + $0xf0] sm:$0x1] %vm2259, 0.0
        %2271 = vst.msk [vmem:[#allocation2 + $0x108] sm:$0x1] %vm2259, 0.0
        %2272 = vst.msk [vmem:[#allocation2 + $0x120] sm:$0x1] %vm2259, 0.0
        %2273 = vst.msk [vmem:[#allocation2 + $0x138] sm:$0x1] %vm2259, 0.0
        %2274 = vst.msk [vmem:[#allocation2 + $0x150] sm:$0x1] %vm2259, 0.0
        %2275 = vst.msk [vmem:[#allocation2 + $0x168] sm:$0x1] %vm2259, 0.0
        %2276 = vst.msk [vmem:[#allocation2 + $0x180] sm:$0x1] %vm2259, 0.0
        %2277 = vst.msk [vmem:[#allocation2 + $0x198] sm:$0x1] %vm2259, 0.0
        %2278 = vst.msk [vmem:[#allocation2 + $0x11] sm:$0x1] %vm2259, 0.0
        %2279 = vst.msk [vmem:[#allocation2 + $0x29] sm:$0x1] %vm2259, 0.0
        %2280 = vst.msk [vmem:[#allocation2 + $0x41] sm:$0x1] %vm2259, 0.0
        %2281 = vst.msk [vmem:[#allocation2 + $0x59] sm:$0x1] %vm2259, 0.0
        %2282 = vst.msk [vmem:[#allocation2 + $0x71] sm:$0x1] %vm2259, 0.0
        %2283 = vst.msk [vmem:[#allocation2 + $0x89] sm:$0x1] %vm2259, 0.0
        %2284 = vst.msk [vmem:[#allocation2 + $0xa1] sm:$0x1] %vm2259, 0.0
        %2285 = vst.msk [vmem:[#allocation2 + $0xb9] sm:$0x1] %vm2259, 0.0
        %2286 = vst.msk [vmem:[#allocation2 + $0xd1] sm:$0x1] %vm2259, 0.0
        %2287 = vst.msk [vmem:[#allocation2 + $0xe9] sm:$0x1] %vm2259, 0.0
        %2288 = vst.msk [vmem:[#allocation2 + $0x101] sm:$0x1] %vm2259, 0.0
        %2289 = vst.msk [vmem:[#allocation2 + $0x119] sm:$0x1] %vm2259, 0.0
        %2290 = vst.msk [vmem:[#allocation2 + $0x131] sm:$0x1] %vm2259, 0.0
        %2291 = vst.msk [vmem:[#allocation2 + $0x149] sm:$0x1] %vm2259, 0.0
        %2292 = vst.msk [vmem:[#allocation2 + $0x161] sm:$0x1] %vm2259, 0.0
        %2293 = vst.msk [vmem:[#allocation2 + $0x179] sm:$0x1] %vm2259, 0.0
        %2294 = vst.msk [vmem:[#allocation2 + $0x191] sm:$0x1] %vm2259, 0.0
        %2295 = vst.msk [vmem:[#allocation2 + $0x1a9] sm:$0x1] %vm2259, 0.0
        %s2296 = scalar_lea.vmem [#allocation2], 24
        %2297 = vst.msk [vmem:[%s2296 + $0x1] sm:$0xff] %vm2077, %v2219
        %2298 = vst.msk [vmem:[%s2296 + $0x9] sm:$0xff] %vm2077, %v2220
        %2299 = vst.msk [vmem:[%s2296 + $0x19] sm:$0xff] %vm2077, %v2221
        %2300 = vst.msk [vmem:[%s2296 + $0x21] sm:$0xff] %vm2077, %v2222
        %2301 = vst.msk [vmem:[%s2296 + $0x31] sm:$0xff] %vm2077, %v2223
        %2302 = vst.msk [vmem:[%s2296 + $0x39] sm:$0xff] %vm2077, %v2224
        %2303 = vst.msk [vmem:[%s2296 + $0x49] sm:$0xff] %vm2077, %v2225
        %2304 = vst.msk [vmem:[%s2296 + $0x51] sm:$0xff] %vm2077, %v2226
        %2305 = vst.msk [vmem:[%s2296 + $0x61] sm:$0xff] %vm2077, %v2227
        %2306 = vst.msk [vmem:[%s2296 + $0x69] sm:$0xff] %vm2077, %v2228
        %2307 = vst.msk [vmem:[%s2296 + $0x79] sm:$0xff] %vm2077, %v2229
        %2308 = vst.msk [vmem:[%s2296 + $0x81] sm:$0xff] %vm2077, %v2230
        %2309 = vst.msk [vmem:[%s2296 + $0x91] sm:$0xff] %vm2077, %v2231
        %2310 = vst.msk [vmem:[%s2296 + $0x99] sm:$0xff] %vm2077, %v2232
        %2311 = vst.msk [vmem:[%s2296 + $0xa9] sm:$0xff] %vm2077, %v2233
        %2312 = vst.msk [vmem:[%s2296 + $0xb1] sm:$0xff] %vm2077, %v2234
        %2313 = vst.msk [vmem:[%s2296 + $0xc1] sm:$0xff] %vm2077, %v2235
        %2314 = vst.msk [vmem:[%s2296 + $0xc9] sm:$0xff] %vm2077, %v2236
        %2315 = vst.msk [vmem:[%s2296 + $0xd9] sm:$0xff] %vm2077, %v2237
        %2316 = vst.msk [vmem:[%s2296 + $0xe1] sm:$0xff] %vm2077, %v2238
        %2317 = vst.msk [vmem:[%s2296 + $0xf1] sm:$0xff] %vm2077, %v2239
        %2318 = vst.msk [vmem:[%s2296 + $0xf9] sm:$0xff] %vm2077, %v2240
        %2319 = vst.msk [vmem:[%s2296 + $0x109] sm:$0xff] %vm2077, %v2241
        %2320 = vst.msk [vmem:[%s2296 + $0x111] sm:$0xff] %vm2077, %v2242
        %2321 = vst.msk [vmem:[%s2296 + $0x121] sm:$0xff] %vm2077, %v2243
        %2322 = vst.msk [vmem:[%s2296 + $0x129] sm:$0xff] %vm2077, %v2244
        %2323 = vst.msk [vmem:[%s2296 + $0x139] sm:$0xff] %vm2077, %v2245
        %2324 = vst.msk [vmem:[%s2296 + $0x141] sm:$0xff] %vm2077, %v2246
        %2325 = vst.msk [vmem:[%s2296 + $0x151] sm:$0xff] %vm2077, %v2247
        %2326 = vst.msk [vmem:[%s2296 + $0x159] sm:$0xff] %vm2077, %v2248
        %2327 = vst.msk [vmem:[%s2296 + $0x169] sm:$0xff] %vm2077, %v2249
        %2328 = vst.msk [vmem:[%s2296 + $0x171] sm:$0xff] %vm2077, %v2250
        %v2329 = vld [vmem:[#allocation2] sm:$0xff]
        %v2330 = vld [vmem:[#allocation2 + $0x8] sm:$0xff]
        %v2331 = vld [vmem:[#allocation2 + $0x10] sm:$0x3]
        %v2332 = vld [vmem:[#allocation2 + $0x18] sm:$0xff]
        %v2333 = vld [vmem:[#allocation2 + $0x20] sm:$0xff]
        %v2334 = vld [vmem:[#allocation2 + $0x28] sm:$0x3]
        %v2335 = vld [vmem:[#allocation2 + $0x30] sm:$0xff]
        %v2336 = vld [vmem:[#allocation2 + $0x38] sm:$0xff]
        %v2337 = vld [vmem:[#allocation2 + $0x40] sm:$0x3]
        %v2338 = vld [vmem:[#allocation2 + $0x48] sm:$0xff]
        %v2339 = vld [vmem:[#allocation2 + $0x50] sm:$0xff]
        %v2340 = vld [vmem:[#allocation2 + $0x58] sm:$0x3]
        %v2341 = vld [vmem:[#allocation2 + $0x60] sm:$0xff]
        %v2342 = vld [vmem:[#allocation2 + $0x68] sm:$0xff]
        %v2343 = vld [vmem:[#allocation2 + $0x70] sm:$0x3]
        %v2344 = vld [vmem:[#allocation2 + $0x78] sm:$0xff]
        %v2345 = vld [vmem:[#allocation2 + $0x80] sm:$0xff]
        %v2346 = vld [vmem:[#allocation2 + $0x88] sm:$0x3]
        %v2347 = vld [vmem:[#allocation2 + $0x90] sm:$0xff]
        %v2348 = vld [vmem:[#allocation2 + $0x98] sm:$0xff]
        %v2349 = vld [vmem:[#allocation2 + $0xa0] sm:$0x3]
        %v2350 = vld [vmem:[#allocation2 + $0xa8] sm:$0xff]
        %v2351 = vld [vmem:[#allocation2 + $0xb0] sm:$0xff]
        %v2352 = vld [vmem:[#allocation2 + $0xb8] sm:$0x3]
        %v2353 = vld [vmem:[#allocation2 + $0xc0] sm:$0xff]
        %v2354 = vld [vmem:[#allocation2 + $0xc8] sm:$0xff]
        %v2355 = vld [vmem:[#allocation2 + $0xd0] sm:$0x3]
        %v2356 = vld [vmem:[#allocation2 + $0xd8] sm:$0xff]
        %v2357 = vld [vmem:[#allocation2 + $0xe0] sm:$0xff]
        %v2358 = vld [vmem:[#allocation2 + $0xe8] sm:$0x3]
        %v2359 = vld [vmem:[#allocation2 + $0xf0] sm:$0xff]
        %v2360 = vld [vmem:[#allocation2 + $0xf8] sm:$0xff]
        %v2361 = vld [vmem:[#allocation2 + $0x100] sm:$0x3]
        %v2362 = vld [vmem:[#allocation2 + $0x108] sm:$0xff]
        %v2363 = vld [vmem:[#allocation2 + $0x110] sm:$0xff]
        %v2364 = vld [vmem:[#allocation2 + $0x118] sm:$0x3]
        %v2365 = vld [vmem:[#allocation2 + $0x120] sm:$0xff]
        %v2366 = vld [vmem:[#allocation2 + $0x128] sm:$0xff]
        %v2367 = vld [vmem:[#allocation2 + $0x130] sm:$0x3]
        %v2368 = vld [vmem:[#allocation2 + $0x138] sm:$0xff]
        %v2369 = vld [vmem:[#allocation2 + $0x140] sm:$0xff]
        %v2370 = vld [vmem:[#allocation2 + $0x148] sm:$0x3]
        %v2371 = vld [vmem:[#allocation2 + $0x150] sm:$0xff]
        %v2372 = vld [vmem:[#allocation2 + $0x158] sm:$0xff]
        %v2373 = vld [vmem:[#allocation2 + $0x160] sm:$0x3]
        %v2374 = vld [vmem:[#allocation2 + $0x168] sm:$0xff]
        %v2375 = vld [vmem:[#allocation2 + $0x170] sm:$0xff]
        %v2376 = vld [vmem:[#allocation2 + $0x178] sm:$0x3]
        %v2377 = vld [vmem:[#allocation2 + $0x180] sm:$0xff]
        %v2378 = vld [vmem:[#allocation2 + $0x188] sm:$0xff]
        %v2379 = vld [vmem:[#allocation2 + $0x190] sm:$0x3]
        %v2380 = vld [vmem:[#allocation2 + $0x198] sm:$0xff]
        %v2381 = vld [vmem:[#allocation2 + $0x1a0] sm:$0xff]
        %v2382 = vld [vmem:[#allocation2 + $0x1a8] sm:$0x3]
        %v2383 = vld [vmem:[%s4] sm:$0x1]
        %v2384 = vld [vmem:[%s4 + $0x1] sm:$0x1]
        %v2385 = vld [vmem:[%s4 + $0x2] sm:$0x1]
        %v2386 = vld [vmem:[%s4 + $0x3] sm:$0x1]
        %v2387 = vld [vmem:[%s4 + $0x4] sm:$0x1]
        %v2388 = vld [vmem:[%s4 + $0x5] sm:$0x1]
        %v2389 = vld [vmem:[%s4 + $0x6] sm:$0x1]
        %v2390 = vld [vmem:[%s4 + $0x7] sm:$0x1]
        %v2391 = vld [vmem:[%s4 + $0x8] sm:$0x1]
        %v2393 = vperm.slane %v2383, 0
        %v2395 = vmul.f32 %v2329, %v2393
        %v2396 = vmul.f32 %v2330, %v2393
        %v2397 = vmul.f32 %v2332, %v2393
        %v2398 = vmul.f32 %v2333, %v2393
        %v2399 = vmul.f32 %v2335, %v2393
        %v2400 = vmul.f32 %v2336, %v2393
        %v2401 = vmul.f32 %v2338, %v2393
        %v2402 = vmul.f32 %v2339, %v2393
        %v2403 = vmul.f32 %v2341, %v2393
        %v2404 = vmul.f32 %v2342, %v2393
        %v2405 = vmul.f32 %v2344, %v2393
        %v2406 = vmul.f32 %v2345, %v2393
        %v2407 = vmul.f32 %v2347, %v2393
        %v2408 = vmul.f32 %v2348, %v2393
        %v2409 = vmul.f32 %v2350, %v2393
        %v2410 = vmul.f32 %v2351, %v2393
        %v2411 = vmul.f32 %v2353, %v2393
        %v2412 = vmul.f32 %v2354, %v2393
        %v2413 = vmul.f32 %v2356, %v2393
        %v2414 = vmul.f32 %v2357, %v2393
        %v2415 = vmul.f32 %v2359, %v2393
        %v2416 = vmul.f32 %v2360, %v2393
        %v2417 = vmul.f32 %v2362, %v2393
        %v2418 = vmul.f32 %v2363, %v2393
        %v2419 = vmul.f32 %v2365, %v2393
        %v2420 = vmul.f32 %v2366, %v2393
        %v2421 = vmul.f32 %v2368, %v2393
        %v2422 = vmul.f32 %v2369, %v2393
        %v2423 = vmul.f32 %v2371, %v2393
        %v2424 = vmul.f32 %v2372, %v2393
        %v2425 = vmul.f32 %v2374, %v2393
        %v2426 = vmul.f32 %v2375, %v2393
        %v2427 = vadd.f32 %v2395, 0.0
        %v2428 = vadd.f32 %v2396, 0.0
        %v2429 = vadd.f32 %v2397, 0.0
        %v2430 = vadd.f32 %v2398, 0.0
        %v2431 = vadd.f32 %v2399, 0.0
        %v2432 = vadd.f32 %v2400, 0.0
        %v2433 = vadd.f32 %v2401, 0.0
        %v2434 = vadd.f32 %v2402, 0.0
        %v2435 = vadd.f32 %v2403, 0.0
        %v2436 = vadd.f32 %v2404, 0.0
        %v2437 = vadd.f32 %v2405, 0.0
        %v2438 = vadd.f32 %v2406, 0.0
        %v2439 = vadd.f32 %v2407, 0.0
        %v2440 = vadd.f32 %v2408, 0.0
        %v2441 = vadd.f32 %v2409, 0.0
        %v2442 = vadd.f32 %v2410, 0.0
        %v2443 = vadd.f32 %v2411, 0.0
        %v2444 = vadd.f32 %v2412, 0.0
        %v2445 = vadd.f32 %v2413, 0.0
        %v2446 = vadd.f32 %v2414, 0.0
        %v2447 = vadd.f32 %v2415, 0.0
        %v2448 = vadd.f32 %v2416, 0.0
        %v2449 = vadd.f32 %v2417, 0.0
        %v2450 = vadd.f32 %v2418, 0.0
        %v2451 = vadd.f32 %v2419, 0.0
        %v2452 = vadd.f32 %v2420, 0.0
        %v2453 = vadd.f32 %v2421, 0.0
        %v2454 = vadd.f32 %v2422, 0.0
        %v2455 = vadd.f32 %v2423, 0.0
        %v2456 = vadd.f32 %v2424, 0.0
        %v2457 = vadd.f32 %v2425, 0.0
        %v2458 = vadd.f32 %v2426, 0.0
        %v2460 = vperm.slane %v2384, 0
        %v2462 = vmul.f32 %v2329, %v2460
        %v2463 = vmul.f32 %v2330, %v2460
        %v2464 = vmul.f32 %v2331, %v2460
        %v2465 = vmul.f32 %v2332, %v2460
        %v2466 = vmul.f32 %v2333, %v2460
        %v2467 = vmul.f32 %v2334, %v2460
        %v2468 = vmul.f32 %v2335, %v2460
        %v2469 = vmul.f32 %v2336, %v2460
        %v2470 = vmul.f32 %v2337, %v2460
        %v2471 = vmul.f32 %v2338, %v2460
        %v2472 = vmul.f32 %v2339, %v2460
        %v2473 = vmul.f32 %v2340, %v2460
        %v2474 = vmul.f32 %v2341, %v2460
        %v2475 = vmul.f32 %v2342, %v2460
        %v2476 = vmul.f32 %v2343, %v2460
        %v2477 = vmul.f32 %v2344, %v2460
        %v2478 = vmul.f32 %v2345, %v2460
        %v2479 = vmul.f32 %v2346, %v2460
        %v2480 = vmul.f32 %v2347, %v2460
        %v2481 = vmul.f32 %v2348, %v2460
        %v2482 = vmul.f32 %v2349, %v2460
        %v2483 = vmul.f32 %v2350, %v2460
        %v2484 = vmul.f32 %v2351, %v2460
        %v2485 = vmul.f32 %v2352, %v2460
        %v2486 = vmul.f32 %v2353, %v2460
        %v2487 = vmul.f32 %v2354, %v2460
        %v2488 = vmul.f32 %v2355, %v2460
        %v2489 = vmul.f32 %v2356, %v2460
        %v2490 = vmul.f32 %v2357, %v2460
        %v2491 = vmul.f32 %v2358, %v2460
        %v2492 = vmul.f32 %v2359, %v2460
        %v2493 = vmul.f32 %v2360, %v2460
        %v2494 = vmul.f32 %v2361, %v2460
        %v2495 = vmul.f32 %v2362, %v2460
        %v2496 = vmul.f32 %v2363, %v2460
        %v2497 = vmul.f32 %v2364, %v2460
        %v2498 = vmul.f32 %v2365, %v2460
        %v2499 = vmul.f32 %v2366, %v2460
        %v2500 = vmul.f32 %v2367, %v2460
        %v2501 = vmul.f32 %v2368, %v2460
        %v2502 = vmul.f32 %v2369, %v2460
        %v2503 = vmul.f32 %v2370, %v2460
        %v2504 = vmul.f32 %v2371, %v2460
        %v2505 = vmul.f32 %v2372, %v2460
        %v2506 = vmul.f32 %v2373, %v2460
        %v2507 = vmul.f32 %v2374, %v2460
        %v2508 = vmul.f32 %v2375, %v2460
        %v2509 = vmul.f32 %v2376, %v2460
        %v2558 = vrot.slane %v2462, 1
        %v2559 = vrot.slane %v2463, 1
        %v2560 = vsel %vm561, %v2558, %v2559
        %v2561 = vrot.slane %v2464, 1
        %v2562 = vsel %vm561, %v2559, %v2561
        %v2563 = vrot.slane %v2465, 1
        %v2564 = vrot.slane %v2466, 1
        %v2565 = vsel %vm561, %v2563, %v2564
        %v2566 = vrot.slane %v2467, 1
        %v2567 = vsel %vm561, %v2564, %v2566
        %v2568 = vrot.slane %v2468, 1
        %v2569 = vrot.slane %v2469, 1
        %v2570 = vsel %vm561, %v2568, %v2569
        %v2571 = vrot.slane %v2470, 1
        %v2572 = vsel %vm561, %v2569, %v2571
        %v2573 = vrot.slane %v2471, 1
        %v2574 = vrot.slane %v2472, 1
        %v2575 = vsel %vm561, %v2573, %v2574
        %v2576 = vrot.slane %v2473, 1
        %v2577 = vsel %vm561, %v2574, %v2576
        %v2578 = vrot.slane %v2474, 1
        %v2579 = vrot.slane %v2475, 1
        %v2580 = vsel %vm561, %v2578, %v2579
        %v2581 = vrot.slane %v2476, 1
        %v2582 = vsel %vm561, %v2579, %v2581
        %v2583 = vrot.slane %v2477, 1
        %v2584 = vrot.slane %v2478, 1
        %v2585 = vsel %vm561, %v2583, %v2584
        %v2586 = vrot.slane %v2479, 1
        %v2587 = vsel %vm561, %v2584, %v2586
        %v2588 = vrot.slane %v2480, 1
        %v2589 = vrot.slane %v2481, 1
        %v2590 = vsel %vm561, %v2588, %v2589
        %v2591 = vrot.slane %v2482, 1
        %v2592 = vsel %vm561, %v2589, %v2591
        %v2593 = vrot.slane %v2483, 1
        %v2594 = vrot.slane %v2484, 1
        %v2595 = vsel %vm561, %v2593, %v2594
        %v2596 = vrot.slane %v2485, 1
        %v2597 = vsel %vm561, %v2594, %v2596
        %v2598 = vrot.slane %v2486, 1
        %v2599 = vrot.slane %v2487, 1
        %v2600 = vsel %vm561, %v2598, %v2599
        %v2601 = vrot.slane %v2488, 1
        %v2602 = vsel %vm561, %v2599, %v2601
        %v2603 = vrot.slane %v2489, 1
        %v2604 = vrot.slane %v2490, 1
        %v2605 = vsel %vm561, %v2603, %v2604
        %v2606 = vrot.slane %v2491, 1
        %v2607 = vsel %vm561, %v2604, %v2606
        %v2608 = vrot.slane %v2492, 1
        %v2609 = vrot.slane %v2493, 1
        %v2610 = vsel %vm561, %v2608, %v2609
        %v2611 = vrot.slane %v2494, 1
        %v2612 = vsel %vm561, %v2609, %v2611
        %v2613 = vrot.slane %v2495, 1
        %v2614 = vrot.slane %v2496, 1
        %v2615 = vsel %vm561, %v2613, %v2614
        %v2616 = vrot.slane %v2497, 1
        %v2617 = vsel %vm561, %v2614, %v2616
        %v2618 = vrot.slane %v2498, 1
        %v2619 = vrot.slane %v2499, 1
        %v2620 = vsel %vm561, %v2618, %v2619
        %v2621 = vrot.slane %v2500, 1
        %v2622 = vsel %vm561, %v2619, %v2621
        %v2623 = vrot.slane %v2501, 1
        %v2624 = vrot.slane %v2502, 1
        %v2625 = vsel %vm561, %v2623, %v2624
        %v2626 = vrot.slane %v2503, 1
        %v2627 = vsel %vm561, %v2624, %v2626
        %v2628 = vrot.slane %v2504, 1
        %v2629 = vrot.slane %v2505, 1
        %v2630 = vsel %vm561, %v2628, %v2629
        %v2631 = vrot.slane %v2506, 1
        %v2632 = vsel %vm561, %v2629, %v2631
        %v2633 = vrot.slane %v2507, 1
        %v2634 = vrot.slane %v2508, 1
        %v2635 = vsel %vm561, %v2633, %v2634
        %v2636 = vrot.slane %v2509, 1
        %v2637 = vsel %vm561, %v2634, %v2636
        %v2670 = vadd.f32 %v2427, %v2560
        %v2671 = vadd.f32 %v2428, %v2562
        %v2672 = vadd.f32 %v2429, %v2565
        %v2673 = vadd.f32 %v2430, %v2567
        %v2674 = vadd.f32 %v2431, %v2570
        %v2675 = vadd.f32 %v2432, %v2572
        %v2676 = vadd.f32 %v2433, %v2575
        %v2677 = vadd.f32 %v2434, %v2577
        %v2678 = vadd.f32 %v2435, %v2580
        %v2679 = vadd.f32 %v2436, %v2582
        %v2680 = vadd.f32 %v2437, %v2585
        %v2681 = vadd.f32 %v2438, %v2587
        %v2682 = vadd.f32 %v2439, %v2590
        %v2683 = vadd.f32 %v2440, %v2592
        %v2684 = vadd.f32 %v2441, %v2595
        %v2685 = vadd.f32 %v2442, %v2597
        %v2686 = vadd.f32 %v2443, %v2600
        %v2687 = vadd.f32 %v2444, %v2602
        %v2688 = vadd.f32 %v2445, %v2605
        %v2689 = vadd.f32 %v2446, %v2607
        %v2690 = vadd.f32 %v2447, %v2610
        %v2691 = vadd.f32 %v2448, %v2612
        %v2692 = vadd.f32 %v2449, %v2615
        %v2693 = vadd.f32 %v2450, %v2617
        %v2694 = vadd.f32 %v2451, %v2620
        %v2695 = vadd.f32 %v2452, %v2622
        %v2696 = vadd.f32 %v2453, %v2625
        %v2697 = vadd.f32 %v2454, %v2627
        %v2698 = vadd.f32 %v2455, %v2630
        %v2699 = vadd.f32 %v2456, %v2632
        %v2700 = vadd.f32 %v2457, %v2635
        %v2701 = vadd.f32 %v2458, %v2637
        %v2703 = vperm.slane %v2385, 0
        %v2705 = vmul.f32 %v2329, %v2703
        %v2706 = vmul.f32 %v2330, %v2703
        %v2707 = vmul.f32 %v2331, %v2703
        %v2708 = vmul.f32 %v2332, %v2703
        %v2709 = vmul.f32 %v2333, %v2703
        %v2710 = vmul.f32 %v2334, %v2703
        %v2711 = vmul.f32 %v2335, %v2703
        %v2712 = vmul.f32 %v2336, %v2703
        %v2713 = vmul.f32 %v2337, %v2703
        %v2714 = vmul.f32 %v2338, %v2703
        %v2715 = vmul.f32 %v2339, %v2703
        %v2716 = vmul.f32 %v2340, %v2703
        %v2717 = vmul.f32 %v2341, %v2703
        %v2718 = vmul.f32 %v2342, %v2703
        %v2719 = vmul.f32 %v2343, %v2703
        %v2720 = vmul.f32 %v2344, %v2703
        %v2721 = vmul.f32 %v2345, %v2703
        %v2722 = vmul.f32 %v2346, %v2703
        %v2723 = vmul.f32 %v2347, %v2703
        %v2724 = vmul.f32 %v2348, %v2703
        %v2725 = vmul.f32 %v2349, %v2703
        %v2726 = vmul.f32 %v2350, %v2703
        %v2727 = vmul.f32 %v2351, %v2703
        %v2728 = vmul.f32 %v2352, %v2703
        %v2729 = vmul.f32 %v2353, %v2703
        %v2730 = vmul.f32 %v2354, %v2703
        %v2731 = vmul.f32 %v2355, %v2703
        %v2732 = vmul.f32 %v2356, %v2703
        %v2733 = vmul.f32 %v2357, %v2703
        %v2734 = vmul.f32 %v2358, %v2703
        %v2735 = vmul.f32 %v2359, %v2703
        %v2736 = vmul.f32 %v2360, %v2703
        %v2737 = vmul.f32 %v2361, %v2703
        %v2738 = vmul.f32 %v2362, %v2703
        %v2739 = vmul.f32 %v2363, %v2703
        %v2740 = vmul.f32 %v2364, %v2703
        %v2741 = vmul.f32 %v2365, %v2703
        %v2742 = vmul.f32 %v2366, %v2703
        %v2743 = vmul.f32 %v2367, %v2703
        %v2744 = vmul.f32 %v2368, %v2703
        %v2745 = vmul.f32 %v2369, %v2703
        %v2746 = vmul.f32 %v2370, %v2703
        %v2747 = vmul.f32 %v2371, %v2703
        %v2748 = vmul.f32 %v2372, %v2703
        %v2749 = vmul.f32 %v2373, %v2703
        %v2750 = vmul.f32 %v2374, %v2703
        %v2751 = vmul.f32 %v2375, %v2703
        %v2752 = vmul.f32 %v2376, %v2703
        %v2801 = vrot.slane %v2705, 2
        %v2802 = vrot.slane %v2706, 2
        %v2803 = vsel %vm805, %v2801, %v2802
        %v2804 = vrot.slane %v2707, 2
        %v2805 = vsel %vm805, %v2802, %v2804
        %v2806 = vrot.slane %v2708, 2
        %v2807 = vrot.slane %v2709, 2
        %v2808 = vsel %vm805, %v2806, %v2807
        %v2809 = vrot.slane %v2710, 2
        %v2810 = vsel %vm805, %v2807, %v2809
        %v2811 = vrot.slane %v2711, 2
        %v2812 = vrot.slane %v2712, 2
        %v2813 = vsel %vm805, %v2811, %v2812
        %v2814 = vrot.slane %v2713, 2
        %v2815 = vsel %vm805, %v2812, %v2814
        %v2816 = vrot.slane %v2714, 2
        %v2817 = vrot.slane %v2715, 2
        %v2818 = vsel %vm805, %v2816, %v2817
        %v2819 = vrot.slane %v2716, 2
        %v2820 = vsel %vm805, %v2817, %v2819
        %v2821 = vrot.slane %v2717, 2
        %v2822 = vrot.slane %v2718, 2
        %v2823 = vsel %vm805, %v2821, %v2822
        %v2824 = vrot.slane %v2719, 2
        %v2825 = vsel %vm805, %v2822, %v2824
        %v2826 = vrot.slane %v2720, 2
        %v2827 = vrot.slane %v2721, 2
        %v2828 = vsel %vm805, %v2826, %v2827
        %v2829 = vrot.slane %v2722, 2
        %v2830 = vsel %vm805, %v2827, %v2829
        %v2831 = vrot.slane %v2723, 2
        %v2832 = vrot.slane %v2724, 2
        %v2833 = vsel %vm805, %v2831, %v2832
        %v2834 = vrot.slane %v2725, 2
        %v2835 = vsel %vm805, %v2832, %v2834
        %v2836 = vrot.slane %v2726, 2
        %v2837 = vrot.slane %v2727, 2
        %v2838 = vsel %vm805, %v2836, %v2837
        %v2839 = vrot.slane %v2728, 2
        %v2840 = vsel %vm805, %v2837, %v2839
        %v2841 = vrot.slane %v2729, 2
        %v2842 = vrot.slane %v2730, 2
        %v2843 = vsel %vm805, %v2841, %v2842
        %v2844 = vrot.slane %v2731, 2
        %v2845 = vsel %vm805, %v2842, %v2844
        %v2846 = vrot.slane %v2732, 2
        %v2847 = vrot.slane %v2733, 2
        %v2848 = vsel %vm805, %v2846, %v2847
        %v2849 = vrot.slane %v2734, 2
        %v2850 = vsel %vm805, %v2847, %v2849
        %v2851 = vrot.slane %v2735, 2
        %v2852 = vrot.slane %v2736, 2
        %v2853 = vsel %vm805, %v2851, %v2852
        %v2854 = vrot.slane %v2737, 2
        %v2855 = vsel %vm805, %v2852, %v2854
        %v2856 = vrot.slane %v2738, 2
        %v2857 = vrot.slane %v2739, 2
        %v2858 = vsel %vm805, %v2856, %v2857
        %v2859 = vrot.slane %v2740, 2
        %v2860 = vsel %vm805, %v2857, %v2859
        %v2861 = vrot.slane %v2741, 2
        %v2862 = vrot.slane %v2742, 2
        %v2863 = vsel %vm805, %v2861, %v2862
        %v2864 = vrot.slane %v2743, 2
        %v2865 = vsel %vm805, %v2862, %v2864
        %v2866 = vrot.slane %v2744, 2
        %v2867 = vrot.slane %v2745, 2
        %v2868 = vsel %vm805, %v2866, %v2867
        %v2869 = vrot.slane %v2746, 2
        %v2870 = vsel %vm805, %v2867, %v2869
        %v2871 = vrot.slane %v2747, 2
        %v2872 = vrot.slane %v2748, 2
        %v2873 = vsel %vm805, %v2871, %v2872
        %v2874 = vrot.slane %v2749, 2
        %v2875 = vsel %vm805, %v2872, %v2874
        %v2876 = vrot.slane %v2750, 2
        %v2877 = vrot.slane %v2751, 2
        %v2878 = vsel %vm805, %v2876, %v2877
        %v2879 = vrot.slane %v2752, 2
        %v2880 = vsel %vm805, %v2877, %v2879
        %v2913 = vadd.f32 %v2670, %v2803
        %v2914 = vadd.f32 %v2671, %v2805
        %v2915 = vadd.f32 %v2672, %v2808
        %v2916 = vadd.f32 %v2673, %v2810
        %v2917 = vadd.f32 %v2674, %v2813
        %v2918 = vadd.f32 %v2675, %v2815
        %v2919 = vadd.f32 %v2676, %v2818
        %v2920 = vadd.f32 %v2677, %v2820
        %v2921 = vadd.f32 %v2678, %v2823
        %v2922 = vadd.f32 %v2679, %v2825
        %v2923 = vadd.f32 %v2680, %v2828
        %v2924 = vadd.f32 %v2681, %v2830
        %v2925 = vadd.f32 %v2682, %v2833
        %v2926 = vadd.f32 %v2683, %v2835
        %v2927 = vadd.f32 %v2684, %v2838
        %v2928 = vadd.f32 %v2685, %v2840
        %v2929 = vadd.f32 %v2686, %v2843
        %v2930 = vadd.f32 %v2687, %v2845
        %v2931 = vadd.f32 %v2688, %v2848
        %v2932 = vadd.f32 %v2689, %v2850
        %v2933 = vadd.f32 %v2690, %v2853
        %v2934 = vadd.f32 %v2691, %v2855
        %v2935 = vadd.f32 %v2692, %v2858
        %v2936 = vadd.f32 %v2693, %v2860
        %v2937 = vadd.f32 %v2694, %v2863
        %v2938 = vadd.f32 %v2695, %v2865
        %v2939 = vadd.f32 %v2696, %v2868
        %v2940 = vadd.f32 %v2697, %v2870
        %v2941 = vadd.f32 %v2698, %v2873
        %v2942 = vadd.f32 %v2699, %v2875
        %v2943 = vadd.f32 %v2700, %v2878
        %v2944 = vadd.f32 %v2701, %v2880
        %v2946 = vperm.slane %v2386, 0
        %v2948 = vmul.f32 %v2332, %v2946
        %v2949 = vmul.f32 %v2333, %v2946
        %v2950 = vmul.f32 %v2335, %v2946
        %v2951 = vmul.f32 %v2336, %v2946
        %v2952 = vmul.f32 %v2338, %v2946
        %v2953 = vmul.f32 %v2339, %v2946
        %v2954 = vmul.f32 %v2341, %v2946
        %v2955 = vmul.f32 %v2342, %v2946
        %v2956 = vmul.f32 %v2344, %v2946
        %v2957 = vmul.f32 %v2345, %v2946
        %v2958 = vmul.f32 %v2347, %v2946
        %v2959 = vmul.f32 %v2348, %v2946
        %v2960 = vmul.f32 %v2350, %v2946
        %v2961 = vmul.f32 %v2351, %v2946
        %v2962 = vmul.f32 %v2353, %v2946
        %v2963 = vmul.f32 %v2354, %v2946
        %v2964 = vmul.f32 %v2356, %v2946
        %v2965 = vmul.f32 %v2357, %v2946
        %v2966 = vmul.f32 %v2359, %v2946
        %v2967 = vmul.f32 %v2360, %v2946
        %v2968 = vmul.f32 %v2362, %v2946
        %v2969 = vmul.f32 %v2363, %v2946
        %v2970 = vmul.f32 %v2365, %v2946
        %v2971 = vmul.f32 %v2366, %v2946
        %v2972 = vmul.f32 %v2368, %v2946
        %v2973 = vmul.f32 %v2369, %v2946
        %v2974 = vmul.f32 %v2371, %v2946
        %v2975 = vmul.f32 %v2372, %v2946
        %v2976 = vmul.f32 %v2374, %v2946
        %v2977 = vmul.f32 %v2375, %v2946
        %v2978 = vmul.f32 %v2377, %v2946
        %v2979 = vmul.f32 %v2378, %v2946
        %v2980 = vadd.f32 %v2913, %v2948
        %v2981 = vadd.f32 %v2914, %v2949
        %v2982 = vadd.f32 %v2915, %v2950
        %v2983 = vadd.f32 %v2916, %v2951
        %v2984 = vadd.f32 %v2917, %v2952
        %v2985 = vadd.f32 %v2918, %v2953
        %v2986 = vadd.f32 %v2919, %v2954
        %v2987 = vadd.f32 %v2920, %v2955
        %v2988 = vadd.f32 %v2921, %v2956
        %v2989 = vadd.f32 %v2922, %v2957
        %v2990 = vadd.f32 %v2923, %v2958
        %v2991 = vadd.f32 %v2924, %v2959
        %v2992 = vadd.f32 %v2925, %v2960
        %v2993 = vadd.f32 %v2926, %v2961
        %v2994 = vadd.f32 %v2927, %v2962
        %v2995 = vadd.f32 %v2928, %v2963
        %v2996 = vadd.f32 %v2929, %v2964
        %v2997 = vadd.f32 %v2930, %v2965
        %v2998 = vadd.f32 %v2931, %v2966
        %v2999 = vadd.f32 %v2932, %v2967
        %v3000 = vadd.f32 %v2933, %v2968
        %v3001 = vadd.f32 %v2934, %v2969
        %v3002 = vadd.f32 %v2935, %v2970
        %v3003 = vadd.f32 %v2936, %v2971
        %v3004 = vadd.f32 %v2937, %v2972
        %v3005 = vadd.f32 %v2938, %v2973
        %v3006 = vadd.f32 %v2939, %v2974
        %v3007 = vadd.f32 %v2940, %v2975
        %v3008 = vadd.f32 %v2941, %v2976
        %v3009 = vadd.f32 %v2942, %v2977
        %v3010 = vadd.f32 %v2943, %v2978
        %v3011 = vadd.f32 %v2944, %v2979
        %v3013 = vperm.slane %v2387, 0
        %v3015 = vmul.f32 %v2332, %v3013
        %v3016 = vmul.f32 %v2333, %v3013
        %v3017 = vmul.f32 %v2334, %v3013
        %v3018 = vmul.f32 %v2335, %v3013
        %v3019 = vmul.f32 %v2336, %v3013
        %v3020 = vmul.f32 %v2337, %v3013
        %v3021 = vmul.f32 %v2338, %v3013
        %v3022 = vmul.f32 %v2339, %v3013
        %v3023 = vmul.f32 %v2340, %v3013
        %v3024 = vmul.f32 %v2341, %v3013
        %v3025 = vmul.f32 %v2342, %v3013
        %v3026 = vmul.f32 %v2343, %v3013
        %v3027 = vmul.f32 %v2344, %v3013
        %v3028 = vmul.f32 %v2345, %v3013
        %v3029 = vmul.f32 %v2346, %v3013
        %v3030 = vmul.f32 %v2347, %v3013
        %v3031 = vmul.f32 %v2348, %v3013
        %v3032 = vmul.f32 %v2349, %v3013
        %v3033 = vmul.f32 %v2350, %v3013
        %v3034 = vmul.f32 %v2351, %v3013
        %v3035 = vmul.f32 %v2352, %v3013
        %v3036 = vmul.f32 %v2353, %v3013
        %v3037 = vmul.f32 %v2354, %v3013
        %v3038 = vmul.f32 %v2355, %v3013
        %v3039 = vmul.f32 %v2356, %v3013
        %v3040 = vmul.f32 %v2357, %v3013
        %v3041 = vmul.f32 %v2358, %v3013
        %v3042 = vmul.f32 %v2359, %v3013
        %v3043 = vmul.f32 %v2360, %v3013
        %v3044 = vmul.f32 %v2361, %v3013
        %v3045 = vmul.f32 %v2362, %v3013
        %v3046 = vmul.f32 %v2363, %v3013
        %v3047 = vmul.f32 %v2364, %v3013
        %v3048 = vmul.f32 %v2365, %v3013
        %v3049 = vmul.f32 %v2366, %v3013
        %v3050 = vmul.f32 %v2367, %v3013
        %v3051 = vmul.f32 %v2368, %v3013
        %v3052 = vmul.f32 %v2369, %v3013
        %v3053 = vmul.f32 %v2370, %v3013
        %v3054 = vmul.f32 %v2371, %v3013
        %v3055 = vmul.f32 %v2372, %v3013
        %v3056 = vmul.f32 %v2373, %v3013
        %v3057 = vmul.f32 %v2374, %v3013
        %v3058 = vmul.f32 %v2375, %v3013
        %v3059 = vmul.f32 %v2376, %v3013
        %v3060 = vmul.f32 %v2377, %v3013
        %v3061 = vmul.f32 %v2378, %v3013
        %v3062 = vmul.f32 %v2379, %v3013
        %v3111 = vrot.slane %v3015, 1
        %v3112 = vrot.slane %v3016, 1
        %v3113 = vsel %vm561, %v3111, %v3112
        %v3114 = vrot.slane %v3017, 1
        %v3115 = vsel %vm561, %v3112, %v3114
        %v3116 = vrot.slane %v3018, 1
        %v3117 = vrot.slane %v3019, 1
        %v3118 = vsel %vm561, %v3116, %v3117
        %v3119 = vrot.slane %v3020, 1
        %v3120 = vsel %vm561, %v3117, %v3119
        %v3121 = vrot.slane %v3021, 1
        %v3122 = vrot.slane %v3022, 1
        %v3123 = vsel %vm561, %v3121, %v3122
        %v3124 = vrot.slane %v3023, 1
        %v3125 = vsel %vm561, %v3122, %v3124
        %v3126 = vrot.slane %v3024, 1
        %v3127 = vrot.slane %v3025, 1
        %v3128 = vsel %vm561, %v3126, %v3127
        %v3129 = vrot.slane %v3026, 1
        %v3130 = vsel %vm561, %v3127, %v3129
        %v3131 = vrot.slane %v3027, 1
        %v3132 = vrot.slane %v3028, 1
        %v3133 = vsel %vm561, %v3131, %v3132
        %v3134 = vrot.slane %v3029, 1
        %v3135 = vsel %vm561, %v3132, %v3134
        %v3136 = vrot.slane %v3030, 1
        %v3137 = vrot.slane %v3031, 1
        %v3138 = vsel %vm561, %v3136, %v3137
        %v3139 = vrot.slane %v3032, 1
        %v3140 = vsel %vm561, %v3137, %v3139
        %v3141 = vrot.slane %v3033, 1
        %v3142 = vrot.slane %v3034, 1
        %v3143 = vsel %vm561, %v3141, %v3142
        %v3144 = vrot.slane %v3035, 1
        %v3145 = vsel %vm561, %v3142, %v3144
        %v3146 = vrot.slane %v3036, 1
        %v3147 = vrot.slane %v3037, 1
        %v3148 = vsel %vm561, %v3146, %v3147
        %v3149 = vrot.slane %v3038, 1
        %v3150 = vsel %vm561, %v3147, %v3149
        %v3151 = vrot.slane %v3039, 1
        %v3152 = vrot.slane %v3040, 1
        %v3153 = vsel %vm561, %v3151, %v3152
        %v3154 = vrot.slane %v3041, 1
        %v3155 = vsel %vm561, %v3152, %v3154
        %v3156 = vrot.slane %v3042, 1
        %v3157 = vrot.slane %v3043, 1
        %v3158 = vsel %vm561, %v3156, %v3157
        %v3159 = vrot.slane %v3044, 1
        %v3160 = vsel %vm561, %v3157, %v3159
        %v3161 = vrot.slane %v3045, 1
        %v3162 = vrot.slane %v3046, 1
        %v3163 = vsel %vm561, %v3161, %v3162
        %v3164 = vrot.slane %v3047, 1
        %v3165 = vsel %vm561, %v3162, %v3164
        %v3166 = vrot.slane %v3048, 1
        %v3167 = vrot.slane %v3049, 1
        %v3168 = vsel %vm561, %v3166, %v3167
        %v3169 = vrot.slane %v3050, 1
        %v3170 = vsel %vm561, %v3167, %v3169
        %v3171 = vrot.slane %v3051, 1
        %v3172 = vrot.slane %v3052, 1
        %v3173 = vsel %vm561, %v3171, %v3172
        %v3174 = vrot.slane %v3053, 1
        %v3175 = vsel %vm561, %v3172, %v3174
        %v3176 = vrot.slane %v3054, 1
        %v3177 = vrot.slane %v3055, 1
        %v3178 = vsel %vm561, %v3176, %v3177
        %v3179 = vrot.slane %v3056, 1
        %v3180 = vsel %vm561, %v3177, %v3179
        %v3181 = vrot.slane %v3057, 1
        %v3182 = vrot.slane %v3058, 1
        %v3183 = vsel %vm561, %v3181, %v3182
        %v3184 = vrot.slane %v3059, 1
        %v3185 = vsel %vm561, %v3182, %v3184
        %v3186 = vrot.slane %v3060, 1
        %v3187 = vrot.slane %v3061, 1
        %v3188 = vsel %vm561, %v3186, %v3187
        %v3189 = vrot.slane %v3062, 1
        %v3190 = vsel %vm561, %v3187, %v3189
        %v3223 = vadd.f32 %v2980, %v3113
        %v3224 = vadd.f32 %v2981, %v3115
        %v3225 = vadd.f32 %v2982, %v3118
        %v3226 = vadd.f32 %v2983, %v3120
        %v3227 = vadd.f32 %v2984, %v3123
        %v3228 = vadd.f32 %v2985, %v3125
        %v3229 = vadd.f32 %v2986, %v3128
        %v3230 = vadd.f32 %v2987, %v3130
        %v3231 = vadd.f32 %v2988, %v3133
        %v3232 = vadd.f32 %v2989, %v3135
        %v3233 = vadd.f32 %v2990, %v3138
        %v3234 = vadd.f32 %v2991, %v3140
        %v3235 = vadd.f32 %v2992, %v3143
        %v3236 = vadd.f32 %v2993, %v3145
        %v3237 = vadd.f32 %v2994, %v3148
        %v3238 = vadd.f32 %v2995, %v3150
        %v3239 = vadd.f32 %v2996, %v3153
        %v3240 = vadd.f32 %v2997, %v3155
        %v3241 = vadd.f32 %v2998, %v3158
        %v3242 = vadd.f32 %v2999, %v3160
        %v3243 = vadd.f32 %v3000, %v3163
        %v3244 = vadd.f32 %v3001, %v3165
        %v3245 = vadd.f32 %v3002, %v3168
        %v3246 = vadd.f32 %v3003, %v3170
        %v3247 = vadd.f32 %v3004, %v3173
        %v3248 = vadd.f32 %v3005, %v3175
        %v3249 = vadd.f32 %v3006, %v3178
        %v3250 = vadd.f32 %v3007, %v3180
        %v3251 = vadd.f32 %v3008, %v3183
        %v3252 = vadd.f32 %v3009, %v3185
        %v3253 = vadd.f32 %v3010, %v3188
        %v3254 = vadd.f32 %v3011, %v3190
        %v3256 = vperm.slane %v2388, 0
        %v3258 = vmul.f32 %v2332, %v3256
        %v3259 = vmul.f32 %v2333, %v3256
        %v3260 = vmul.f32 %v2334, %v3256
        %v3261 = vmul.f32 %v2335, %v3256
        %v3262 = vmul.f32 %v2336, %v3256
        %v3263 = vmul.f32 %v2337, %v3256
        %v3264 = vmul.f32 %v2338, %v3256
        %v3265 = vmul.f32 %v2339, %v3256
        %v3266 = vmul.f32 %v2340, %v3256
        %v3267 = vmul.f32 %v2341, %v3256
        %v3268 = vmul.f32 %v2342, %v3256
        %v3269 = vmul.f32 %v2343, %v3256
        %v3270 = vmul.f32 %v2344, %v3256
        %v3271 = vmul.f32 %v2345, %v3256
        %v3272 = vmul.f32 %v2346, %v3256
        %v3273 = vmul.f32 %v2347, %v3256
        %v3274 = vmul.f32 %v2348, %v3256
        %v3275 = vmul.f32 %v2349, %v3256
        %v3276 = vmul.f32 %v2350, %v3256
        %v3277 = vmul.f32 %v2351, %v3256
        %v3278 = vmul.f32 %v2352, %v3256
        %v3279 = vmul.f32 %v2353, %v3256
        %v3280 = vmul.f32 %v2354, %v3256
        %v3281 = vmul.f32 %v2355, %v3256
        %v3282 = vmul.f32 %v2356, %v3256
        %v3283 = vmul.f32 %v2357, %v3256
        %v3284 = vmul.f32 %v2358, %v3256
        %v3285 = vmul.f32 %v2359, %v3256
        %v3286 = vmul.f32 %v2360, %v3256
        %v3287 = vmul.f32 %v2361, %v3256
        %v3288 = vmul.f32 %v2362, %v3256
        %v3289 = vmul.f32 %v2363, %v3256
        %v3290 = vmul.f32 %v2364, %v3256
        %v3291 = vmul.f32 %v2365, %v3256
        %v3292 = vmul.f32 %v2366, %v3256
        %v3293 = vmul.f32 %v2367, %v3256
        %v3294 = vmul.f32 %v2368, %v3256
        %v3295 = vmul.f32 %v2369, %v3256
        %v3296 = vmul.f32 %v2370, %v3256
        %v3297 = vmul.f32 %v2371, %v3256
        %v3298 = vmul.f32 %v2372, %v3256
        %v3299 = vmul.f32 %v2373, %v3256
        %v3300 = vmul.f32 %v2374, %v3256
        %v3301 = vmul.f32 %v2375, %v3256
        %v3302 = vmul.f32 %v2376, %v3256
        %v3303 = vmul.f32 %v2377, %v3256
        %v3304 = vmul.f32 %v2378, %v3256
        %v3305 = vmul.f32 %v2379, %v3256
        %v3354 = vrot.slane %v3258, 2
        %v3355 = vrot.slane %v3259, 2
        %v3356 = vsel %vm805, %v3354, %v3355
        %v3357 = vrot.slane %v3260, 2
        %v3358 = vsel %vm805, %v3355, %v3357
        %v3359 = vrot.slane %v3261, 2
        %v3360 = vrot.slane %v3262, 2
        %v3361 = vsel %vm805, %v3359, %v3360
        %v3362 = vrot.slane %v3263, 2
        %v3363 = vsel %vm805, %v3360, %v3362
        %v3364 = vrot.slane %v3264, 2
        %v3365 = vrot.slane %v3265, 2
        %v3366 = vsel %vm805, %v3364, %v3365
        %v3367 = vrot.slane %v3266, 2
        %v3368 = vsel %vm805, %v3365, %v3367
        %v3369 = vrot.slane %v3267, 2
        %v3370 = vrot.slane %v3268, 2
        %v3371 = vsel %vm805, %v3369, %v3370
        %v3372 = vrot.slane %v3269, 2
        %v3373 = vsel %vm805, %v3370, %v3372
        %v3374 = vrot.slane %v3270, 2
        %v3375 = vrot.slane %v3271, 2
        %v3376 = vsel %vm805, %v3374, %v3375
        %v3377 = vrot.slane %v3272, 2
        %v3378 = vsel %vm805, %v3375, %v3377
        %v3379 = vrot.slane %v3273, 2
        %v3380 = vrot.slane %v3274, 2
        %v3381 = vsel %vm805, %v3379, %v3380
        %v3382 = vrot.slane %v3275, 2
        %v3383 = vsel %vm805, %v3380, %v3382
        %v3384 = vrot.slane %v3276, 2
        %v3385 = vrot.slane %v3277, 2
        %v3386 = vsel %vm805, %v3384, %v3385
        %v3387 = vrot.slane %v3278, 2
        %v3388 = vsel %vm805, %v3385, %v3387
        %v3389 = vrot.slane %v3279, 2
        %v3390 = vrot.slane %v3280, 2
        %v3391 = vsel %vm805, %v3389, %v3390
        %v3392 = vrot.slane %v3281, 2
        %v3393 = vsel %vm805, %v3390, %v3392
        %v3394 = vrot.slane %v3282, 2
        %v3395 = vrot.slane %v3283, 2
        %v3396 = vsel %vm805, %v3394, %v3395
        %v3397 = vrot.slane %v3284, 2
        %v3398 = vsel %vm805, %v3395, %v3397
        %v3399 = vrot.slane %v3285, 2
        %v3400 = vrot.slane %v3286, 2
        %v3401 = vsel %vm805, %v3399, %v3400
        %v3402 = vrot.slane %v3287, 2
        %v3403 = vsel %vm805, %v3400, %v3402
        %v3404 = vrot.slane %v3288, 2
        %v3405 = vrot.slane %v3289, 2
        %v3406 = vsel %vm805, %v3404, %v3405
        %v3407 = vrot.slane %v3290, 2
        %v3408 = vsel %vm805, %v3405, %v3407
        %v3409 = vrot.slane %v3291, 2
        %v3410 = vrot.slane %v3292, 2
        %v3411 = vsel %vm805, %v3409, %v3410
        %v3412 = vrot.slane %v3293, 2
        %v3413 = vsel %vm805, %v3410, %v3412
        %v3414 = vrot.slane %v3294, 2
        %v3415 = vrot.slane %v3295, 2
        %v3416 = vsel %vm805, %v3414, %v3415
        %v3417 = vrot.slane %v3296, 2
        %v3418 = vsel %vm805, %v3415, %v3417
        %v3419 = vrot.slane %v3297, 2
        %v3420 = vrot.slane %v3298, 2
        %v3421 = vsel %vm805, %v3419, %v3420
        %v3422 = vrot.slane %v3299, 2
        %v3423 = vsel %vm805, %v3420, %v3422
        %v3424 = vrot.slane %v3300, 2
        %v3425 = vrot.slane %v3301, 2
        %v3426 = vsel %vm805, %v3424, %v3425
        %v3427 = vrot.slane %v3302, 2
        %v3428 = vsel %vm805, %v3425, %v3427
        %v3429 = vrot.slane %v3303, 2
        %v3430 = vrot.slane %v3304, 2
        %v3431 = vsel %vm805, %v3429, %v3430
        %v3432 = vrot.slane %v3305, 2
        %v3433 = vsel %vm805, %v3430, %v3432
        %v3466 = vadd.f32 %v3223, %v3356
        %v3467 = vadd.f32 %v3224, %v3358
        %v3468 = vadd.f32 %v3225, %v3361
        %v3469 = vadd.f32 %v3226, %v3363
        %v3470 = vadd.f32 %v3227, %v3366
        %v3471 = vadd.f32 %v3228, %v3368
        %v3472 = vadd.f32 %v3229, %v3371
        %v3473 = vadd.f32 %v3230, %v3373
        %v3474 = vadd.f32 %v3231, %v3376
        %v3475 = vadd.f32 %v3232, %v3378
        %v3476 = vadd.f32 %v3233, %v3381
        %v3477 = vadd.f32 %v3234, %v3383
        %v3478 = vadd.f32 %v3235, %v3386
        %v3479 = vadd.f32 %v3236, %v3388
        %v3480 = vadd.f32 %v3237, %v3391
        %v3481 = vadd.f32 %v3238, %v3393
        %v3482 = vadd.f32 %v3239, %v3396
        %v3483 = vadd.f32 %v3240, %v3398
        %v3484 = vadd.f32 %v3241, %v3401
        %v3485 = vadd.f32 %v3242, %v3403
        %v3486 = vadd.f32 %v3243, %v3406
        %v3487 = vadd.f32 %v3244, %v3408
        %v3488 = vadd.f32 %v3245, %v3411
        %v3489 = vadd.f32 %v3246, %v3413
        %v3490 = vadd.f32 %v3247, %v3416
        %v3491 = vadd.f32 %v3248, %v3418
        %v3492 = vadd.f32 %v3249, %v3421
        %v3493 = vadd.f32 %v3250, %v3423
        %v3494 = vadd.f32 %v3251, %v3426
        %v3495 = vadd.f32 %v3252, %v3428
        %v3496 = vadd.f32 %v3253, %v3431
        %v3497 = vadd.f32 %v3254, %v3433
        %v3499 = vperm.slane %v2389, 0
        %v3501 = vmul.f32 %v2335, %v3499
        %v3502 = vmul.f32 %v2336, %v3499
        %v3503 = vmul.f32 %v2338, %v3499
        %v3504 = vmul.f32 %v2339, %v3499
        %v3505 = vmul.f32 %v2341, %v3499
        %v3506 = vmul.f32 %v2342, %v3499
        %v3507 = vmul.f32 %v2344, %v3499
        %v3508 = vmul.f32 %v2345, %v3499
        %v3509 = vmul.f32 %v2347, %v3499
        %v3510 = vmul.f32 %v2348, %v3499
        %v3511 = vmul.f32 %v2350, %v3499
        %v3512 = vmul.f32 %v2351, %v3499
        %v3513 = vmul.f32 %v2353, %v3499
        %v3514 = vmul.f32 %v2354, %v3499
        %v3515 = vmul.f32 %v2356, %v3499
        %v3516 = vmul.f32 %v2357, %v3499
        %v3517 = vmul.f32 %v2359, %v3499
        %v3518 = vmul.f32 %v2360, %v3499
        %v3519 = vmul.f32 %v2362, %v3499
        %v3520 = vmul.f32 %v2363, %v3499
        %v3521 = vmul.f32 %v2365, %v3499
        %v3522 = vmul.f32 %v2366, %v3499
        %v3523 = vmul.f32 %v2368, %v3499
        %v3524 = vmul.f32 %v2369, %v3499
        %v3525 = vmul.f32 %v2371, %v3499
        %v3526 = vmul.f32 %v2372, %v3499
        %v3527 = vmul.f32 %v2374, %v3499
        %v3528 = vmul.f32 %v2375, %v3499
        %v3529 = vmul.f32 %v2377, %v3499
        %v3530 = vmul.f32 %v2378, %v3499
        %v3531 = vmul.f32 %v2380, %v3499
        %v3532 = vmul.f32 %v2381, %v3499
        %v3533 = vadd.f32 %v3466, %v3501
        %v3534 = vadd.f32 %v3467, %v3502
        %v3535 = vadd.f32 %v3468, %v3503
        %v3536 = vadd.f32 %v3469, %v3504
        %v3537 = vadd.f32 %v3470, %v3505
        %v3538 = vadd.f32 %v3471, %v3506
        %v3539 = vadd.f32 %v3472, %v3507
        %v3540 = vadd.f32 %v3473, %v3508
        %v3541 = vadd.f32 %v3474, %v3509
        %v3542 = vadd.f32 %v3475, %v3510
        %v3543 = vadd.f32 %v3476, %v3511
        %v3544 = vadd.f32 %v3477, %v3512
        %v3545 = vadd.f32 %v3478, %v3513
        %v3546 = vadd.f32 %v3479, %v3514
        %v3547 = vadd.f32 %v3480, %v3515
        %v3548 = vadd.f32 %v3481, %v3516
        %v3549 = vadd.f32 %v3482, %v3517
        %v3550 = vadd.f32 %v3483, %v3518
        %v3551 = vadd.f32 %v3484, %v3519
        %v3552 = vadd.f32 %v3485, %v3520
        %v3553 = vadd.f32 %v3486, %v3521
        %v3554 = vadd.f32 %v3487, %v3522
        %v3555 = vadd.f32 %v3488, %v3523
        %v3556 = vadd.f32 %v3489, %v3524
        %v3557 = vadd.f32 %v3490, %v3525
        %v3558 = vadd.f32 %v3491, %v3526
        %v3559 = vadd.f32 %v3492, %v3527
        %v3560 = vadd.f32 %v3493, %v3528
        %v3561 = vadd.f32 %v3494, %v3529
        %v3562 = vadd.f32 %v3495, %v3530
        %v3563 = vadd.f32 %v3496, %v3531
        %v3564 = vadd.f32 %v3497, %v3532
        %v3566 = vperm.slane %v2390, 0
        %v3568 = vmul.f32 %v2335, %v3566
        %v3569 = vmul.f32 %v2336, %v3566
        %v3570 = vmul.f32 %v2337, %v3566
        %v3571 = vmul.f32 %v2338, %v3566
        %v3572 = vmul.f32 %v2339, %v3566
        %v3573 = vmul.f32 %v2340, %v3566
        %v3574 = vmul.f32 %v2341, %v3566
        %v3575 = vmul.f32 %v2342, %v3566
        %v3576 = vmul.f32 %v2343, %v3566
        %v3577 = vmul.f32 %v2344, %v3566
        %v3578 = vmul.f32 %v2345, %v3566
        %v3579 = vmul.f32 %v2346, %v3566
        %v3580 = vmul.f32 %v2347, %v3566
        %v3581 = vmul.f32 %v2348, %v3566
        %v3582 = vmul.f32 %v2349, %v3566
        %v3583 = vmul.f32 %v2350, %v3566
        %v3584 = vmul.f32 %v2351, %v3566
        %v3585 = vmul.f32 %v2352, %v3566
        %v3586 = vmul.f32 %v2353, %v3566
        %v3587 = vmul.f32 %v2354, %v3566
        %v3588 = vmul.f32 %v2355, %v3566
        %v3589 = vmul.f32 %v2356, %v3566
        %v3590 = vmul.f32 %v2357, %v3566
        %v3591 = vmul.f32 %v2358, %v3566
        %v3592 = vmul.f32 %v2359, %v3566
        %v3593 = vmul.f32 %v2360, %v3566
        %v3594 = vmul.f32 %v2361, %v3566
        %v3595 = vmul.f32 %v2362, %v3566
        %v3596 = vmul.f32 %v2363, %v3566
        %v3597 = vmul.f32 %v2364, %v3566
        %v3598 = vmul.f32 %v2365, %v3566
        %v3599 = vmul.f32 %v2366, %v3566
        %v3600 = vmul.f32 %v2367, %v3566
        %v3601 = vmul.f32 %v2368, %v3566
        %v3602 = vmul.f32 %v2369, %v3566
        %v3603 = vmul.f32 %v2370, %v3566
        %v3604 = vmul.f32 %v2371, %v3566
        %v3605 = vmul.f32 %v2372, %v3566
        %v3606 = vmul.f32 %v2373, %v3566
        %v3607 = vmul.f32 %v2374, %v3566
        %v3608 = vmul.f32 %v2375, %v3566
        %v3609 = vmul.f32 %v2376, %v3566
        %v3610 = vmul.f32 %v2377, %v3566
        %v3611 = vmul.f32 %v2378, %v3566
        %v3612 = vmul.f32 %v2379, %v3566
        %v3613 = vmul.f32 %v2380, %v3566
        %v3614 = vmul.f32 %v2381, %v3566
        %v3615 = vmul.f32 %v2382, %v3566
        %v3664 = vrot.slane %v3568, 1
        %v3665 = vrot.slane %v3569, 1
        %v3666 = vsel %vm561, %v3664, %v3665
        %v3667 = vrot.slane %v3570, 1
        %v3668 = vsel %vm561, %v3665, %v3667
        %v3669 = vrot.slane %v3571, 1
        %v3670 = vrot.slane %v3572, 1
        %v3671 = vsel %vm561, %v3669, %v3670
        %v3672 = vrot.slane %v3573, 1
        %v3673 = vsel %vm561, %v3670, %v3672
        %v3674 = vrot.slane %v3574, 1
        %v3675 = vrot.slane %v3575, 1
        %v3676 = vsel %vm561, %v3674, %v3675
        %v3677 = vrot.slane %v3576, 1
        %v3678 = vsel %vm561, %v3675, %v3677
        %v3679 = vrot.slane %v3577, 1
        %v3680 = vrot.slane %v3578, 1
        %v3681 = vsel %vm561, %v3679, %v3680
        %v3682 = vrot.slane %v3579, 1
        %v3683 = vsel %vm561, %v3680, %v3682
        %v3684 = vrot.slane %v3580, 1
        %v3685 = vrot.slane %v3581, 1
        %v3686 = vsel %vm561, %v3684, %v3685
        %v3687 = vrot.slane %v3582, 1
        %v3688 = vsel %vm561, %v3685, %v3687
        %v3689 = vrot.slane %v3583, 1
        %v3690 = vrot.slane %v3584, 1
        %v3691 = vsel %vm561, %v3689, %v3690
        %v3692 = vrot.slane %v3585, 1
        %v3693 = vsel %vm561, %v3690, %v3692
        %v3694 = vrot.slane %v3586, 1
        %v3695 = vrot.slane %v3587, 1
        %v3696 = vsel %vm561, %v3694, %v3695
        %v3697 = vrot.slane %v3588, 1
        %v3698 = vsel %vm561, %v3695, %v3697
        %v3699 = vrot.slane %v3589, 1
        %v3700 = vrot.slane %v3590, 1
        %v3701 = vsel %vm561, %v3699, %v3700
        %v3702 = vrot.slane %v3591, 1
        %v3703 = vsel %vm561, %v3700, %v3702
        %v3704 = vrot.slane %v3592, 1
        %v3705 = vrot.slane %v3593, 1
        %v3706 = vsel %vm561, %v3704, %v3705
        %v3707 = vrot.slane %v3594, 1
        %v3708 = vsel %vm561, %v3705, %v3707
        %v3709 = vrot.slane %v3595, 1
        %v3710 = vrot.slane %v3596, 1
        %v3711 = vsel %vm561, %v3709, %v3710
        %v3712 = vrot.slane %v3597, 1
        %v3713 = vsel %vm561, %v3710, %v3712
        %v3714 = vrot.slane %v3598, 1
        %v3715 = vrot.slane %v3599, 1
        %v3716 = vsel %vm561, %v3714, %v3715
        %v3717 = vrot.slane %v3600, 1
        %v3718 = vsel %vm561, %v3715, %v3717
        %v3719 = vrot.slane %v3601, 1
        %v3720 = vrot.slane %v3602, 1
        %v3721 = vsel %vm561, %v3719, %v3720
        %v3722 = vrot.slane %v3603, 1
        %v3723 = vsel %vm561, %v3720, %v3722
        %v3724 = vrot.slane %v3604, 1
        %v3725 = vrot.slane %v3605, 1
        %v3726 = vsel %vm561, %v3724, %v3725
        %v3727 = vrot.slane %v3606, 1
        %v3728 = vsel %vm561, %v3725, %v3727
        %v3729 = vrot.slane %v3607, 1
        %v3730 = vrot.slane %v3608, 1
        %v3731 = vsel %vm561, %v3729, %v3730
        %v3732 = vrot.slane %v3609, 1
        %v3733 = vsel %vm561, %v3730, %v3732
        %v3734 = vrot.slane %v3610, 1
        %v3735 = vrot.slane %v3611, 1
        %v3736 = vsel %vm561, %v3734, %v3735
        %v3737 = vrot.slane %v3612, 1
        %v3738 = vsel %vm561, %v3735, %v3737
        %v3739 = vrot.slane %v3613, 1
        %v3740 = vrot.slane %v3614, 1
        %v3741 = vsel %vm561, %v3739, %v3740
        %v3742 = vrot.slane %v3615, 1
        %v3743 = vsel %vm561, %v3740, %v3742
        %v3776 = vadd.f32 %v3533, %v3666
        %v3777 = vadd.f32 %v3534, %v3668
        %v3778 = vadd.f32 %v3535, %v3671
        %v3779 = vadd.f32 %v3536, %v3673
        %v3780 = vadd.f32 %v3537, %v3676
        %v3781 = vadd.f32 %v3538, %v3678
        %v3782 = vadd.f32 %v3539, %v3681
        %v3783 = vadd.f32 %v3540, %v3683
        %v3784 = vadd.f32 %v3541, %v3686
        %v3785 = vadd.f32 %v3542, %v3688
        %v3786 = vadd.f32 %v3543, %v3691
        %v3787 = vadd.f32 %v3544, %v3693
        %v3788 = vadd.f32 %v3545, %v3696
        %v3789 = vadd.f32 %v3546, %v3698
        %v3790 = vadd.f32 %v3547, %v3701
        %v3791 = vadd.f32 %v3548, %v3703
        %v3792 = vadd.f32 %v3549, %v3706
        %v3793 = vadd.f32 %v3550, %v3708
        %v3794 = vadd.f32 %v3551, %v3711
        %v3795 = vadd.f32 %v3552, %v3713
        %v3796 = vadd.f32 %v3553, %v3716
        %v3797 = vadd.f32 %v3554, %v3718
        %v3798 = vadd.f32 %v3555, %v3721
        %v3799 = vadd.f32 %v3556, %v3723
        %v3800 = vadd.f32 %v3557, %v3726
        %v3801 = vadd.f32 %v3558, %v3728
        %v3802 = vadd.f32 %v3559, %v3731
        %v3803 = vadd.f32 %v3560, %v3733
        %v3804 = vadd.f32 %v3561, %v3736
        %v3805 = vadd.f32 %v3562, %v3738
        %v3806 = vadd.f32 %v3563, %v3741
        %v3807 = vadd.f32 %v3564, %v3743
        %v3809 = vperm.slane %v2391, 0
        %v3811 = vmul.f32 %v2335, %v3809
        %v3812 = vmul.f32 %v2336, %v3809
        %v3813 = vmul.f32 %v2337, %v3809
        %v3814 = vmul.f32 %v2338, %v3809
        %v3815 = vmul.f32 %v2339, %v3809
        %v3816 = vmul.f32 %v2340, %v3809
        %v3817 = vmul.f32 %v2341, %v3809
        %v3818 = vmul.f32 %v2342, %v3809
        %v3819 = vmul.f32 %v2343, %v3809
        %v3820 = vmul.f32 %v2344, %v3809
        %v3821 = vmul.f32 %v2345, %v3809
        %v3822 = vmul.f32 %v2346, %v3809
        %v3823 = vmul.f32 %v2347, %v3809
        %v3824 = vmul.f32 %v2348, %v3809
        %v3825 = vmul.f32 %v2349, %v3809
        %v3826 = vmul.f32 %v2350, %v3809
        %v3827 = vmul.f32 %v2351, %v3809
        %v3828 = vmul.f32 %v2352, %v3809
        %v3829 = vmul.f32 %v2353, %v3809
        %v3830 = vmul.f32 %v2354, %v3809
        %v3831 = vmul.f32 %v2355, %v3809
        %v3832 = vmul.f32 %v2356, %v3809
        %v3833 = vmul.f32 %v2357, %v3809
        %v3834 = vmul.f32 %v2358, %v3809
        %v3835 = vmul.f32 %v2359, %v3809
        %v3836 = vmul.f32 %v2360, %v3809
        %v3837 = vmul.f32 %v2361, %v3809
        %v3838 = vmul.f32 %v2362, %v3809
        %v3839 = vmul.f32 %v2363, %v3809
        %v3840 = vmul.f32 %v2364, %v3809
        %v3841 = vmul.f32 %v2365, %v3809
        %v3842 = vmul.f32 %v2366, %v3809
        %v3843 = vmul.f32 %v2367, %v3809
        %v3844 = vmul.f32 %v2368, %v3809
        %v3845 = vmul.f32 %v2369, %v3809
        %v3846 = vmul.f32 %v2370, %v3809
        %v3847 = vmul.f32 %v2371, %v3809
        %v3848 = vmul.f32 %v2372, %v3809
        %v3849 = vmul.f32 %v2373, %v3809
        %v3850 = vmul.f32 %v2374, %v3809
        %v3851 = vmul.f32 %v2375, %v3809
        %v3852 = vmul.f32 %v2376, %v3809
        %v3853 = vmul.f32 %v2377, %v3809
        %v3854 = vmul.f32 %v2378, %v3809
        %v3855 = vmul.f32 %v2379, %v3809
        %v3856 = vmul.f32 %v2380, %v3809
        %v3857 = vmul.f32 %v2381, %v3809
        %v3858 = vmul.f32 %v2382, %v3809
        %v3907 = vrot.slane %v3811, 2
        %v3908 = vrot.slane %v3812, 2
        %v3909 = vsel %vm805, %v3907, %v3908
        %v3910 = vrot.slane %v3813, 2
        %v3911 = vsel %vm805, %v3908, %v3910
        %v3912 = vrot.slane %v3814, 2
        %v3913 = vrot.slane %v3815, 2
        %v3914 = vsel %vm805, %v3912, %v3913
        %v3915 = vrot.slane %v3816, 2
        %v3916 = vsel %vm805, %v3913, %v3915
        %v3917 = vrot.slane %v3817, 2
        %v3918 = vrot.slane %v3818, 2
        %v3919 = vsel %vm805, %v3917, %v3918
        %v3920 = vrot.slane %v3819, 2
        %v3921 = vsel %vm805, %v3918, %v3920
        %v3922 = vrot.slane %v3820, 2
        %v3923 = vrot.slane %v3821, 2
        %v3924 = vsel %vm805, %v3922, %v3923
        %v3925 = vrot.slane %v3822, 2
        %v3926 = vsel %vm805, %v3923, %v3925
        %v3927 = vrot.slane %v3823, 2
        %v3928 = vrot.slane %v3824, 2
        %v3929 = vsel %vm805, %v3927, %v3928
        %v3930 = vrot.slane %v3825, 2
        %v3931 = vsel %vm805, %v3928, %v3930
        %v3932 = vrot.slane %v3826, 2
        %v3933 = vrot.slane %v3827, 2
        %v3934 = vsel %vm805, %v3932, %v3933
        %v3935 = vrot.slane %v3828, 2
        %v3936 = vsel %vm805, %v3933, %v3935
        %v3937 = vrot.slane %v3829, 2
        %v3938 = vrot.slane %v3830, 2
        %v3939 = vsel %vm805, %v3937, %v3938
        %v3940 = vrot.slane %v3831, 2
        %v3941 = vsel %vm805, %v3938, %v3940
        %v3942 = vrot.slane %v3832, 2
        %v3943 = vrot.slane %v3833, 2
        %v3944 = vsel %vm805, %v3942, %v3943
        %v3945 = vrot.slane %v3834, 2
        %v3946 = vsel %vm805, %v3943, %v3945
        %v3947 = vrot.slane %v3835, 2
        %v3948 = vrot.slane %v3836, 2
        %v3949 = vsel %vm805, %v3947, %v3948
        %v3950 = vrot.slane %v3837, 2
        %v3951 = vsel %vm805, %v3948, %v3950
        %v3952 = vrot.slane %v3838, 2
        %v3953 = vrot.slane %v3839, 2
        %v3954 = vsel %vm805, %v3952, %v3953
        %v3955 = vrot.slane %v3840, 2
        %v3956 = vsel %vm805, %v3953, %v3955
        %v3957 = vrot.slane %v3841, 2
        %v3958 = vrot.slane %v3842, 2
        %v3959 = vsel %vm805, %v3957, %v3958
        %v3960 = vrot.slane %v3843, 2
        %v3961 = vsel %vm805, %v3958, %v3960
        %v3962 = vrot.slane %v3844, 2
        %v3963 = vrot.slane %v3845, 2
        %v3964 = vsel %vm805, %v3962, %v3963
        %v3965 = vrot.slane %v3846, 2
        %v3966 = vsel %vm805, %v3963, %v3965
        %v3967 = vrot.slane %v3847, 2
        %v3968 = vrot.slane %v3848, 2
        %v3969 = vsel %vm805, %v3967, %v3968
        %v3970 = vrot.slane %v3849, 2
        %v3971 = vsel %vm805, %v3968, %v3970
        %v3972 = vrot.slane %v3850, 2
        %v3973 = vrot.slane %v3851, 2
        %v3974 = vsel %vm805, %v3972, %v3973
        %v3975 = vrot.slane %v3852, 2
        %v3976 = vsel %vm805, %v3973, %v3975
        %v3977 = vrot.slane %v3853, 2
        %v3978 = vrot.slane %v3854, 2
        %v3979 = vsel %vm805, %v3977, %v3978
        %v3980 = vrot.slane %v3855, 2
        %v3981 = vsel %vm805, %v3978, %v3980
        %v3982 = vrot.slane %v3856, 2
        %v3983 = vrot.slane %v3857, 2
        %v3984 = vsel %vm805, %v3982, %v3983
        %v3985 = vrot.slane %v3858, 2
        %v3986 = vsel %vm805, %v3983, %v3985
        %v4019 = vadd.f32 %v3776, %v3909
        %v4020 = vadd.f32 %v3777, %v3911
        %v4021 = vadd.f32 %v3778, %v3914
        %v4022 = vadd.f32 %v3779, %v3916
        %v4023 = vadd.f32 %v3780, %v3919
        %v4024 = vadd.f32 %v3781, %v3921
        %v4025 = vadd.f32 %v3782, %v3924
        %v4026 = vadd.f32 %v3783, %v3926
        %v4027 = vadd.f32 %v3784, %v3929
        %v4028 = vadd.f32 %v3785, %v3931
        %v4029 = vadd.f32 %v3786, %v3934
        %v4030 = vadd.f32 %v3787, %v3936
        %v4031 = vadd.f32 %v3788, %v3939
        %v4032 = vadd.f32 %v3789, %v3941
        %v4033 = vadd.f32 %v3790, %v3944
        %v4034 = vadd.f32 %v3791, %v3946
        %v4035 = vadd.f32 %v3792, %v3949
        %v4036 = vadd.f32 %v3793, %v3951
        %v4037 = vadd.f32 %v3794, %v3954
        %v4038 = vadd.f32 %v3795, %v3956
        %v4039 = vadd.f32 %v3796, %v3959
        %v4040 = vadd.f32 %v3797, %v3961
        %v4041 = vadd.f32 %v3798, %v3964
        %v4042 = vadd.f32 %v3799, %v3966
        %v4043 = vadd.f32 %v3800, %v3969
        %v4044 = vadd.f32 %v3801, %v3971
        %v4045 = vadd.f32 %v3802, %v3974
        %v4046 = vadd.f32 %v3803, %v3976
        %v4047 = vadd.f32 %v3804, %v3979
        %v4048 = vadd.f32 %v3805, %v3981
        %v4049 = vadd.f32 %v3806, %v3984
        %v4050 = vadd.f32 %v3807, %v3986
        %v4051 = vpack.c.bf16 %v4020, %v4019
        %v4052 = vpack.c.bf16 %v4022, %v4021
        %v4053 = vpack.c.bf16 %v4024, %v4023
        %v4054 = vpack.c.bf16 %v4026, %v4025
        %v4055 = vpack.c.bf16 %v4028, %v4027
        %v4056 = vpack.c.bf16 %v4030, %v4029
        %v4057 = vpack.c.bf16 %v4032, %v4031
        %v4058 = vpack.c.bf16 %v4034, %v4033
        %v4059 = vpack.c.bf16 %v4036, %v4035
        %v4060 = vpack.c.bf16 %v4038, %v4037
        %v4061 = vpack.c.bf16 %v4040, %v4039
        %v4062 = vpack.c.bf16 %v4042, %v4041
        %v4063 = vpack.c.bf16 %v4044, %v4043
        %v4064 = vpack.c.bf16 %v4046, %v4045
        %v4065 = vpack.c.bf16 %v4048, %v4047
        %v4066 = vpack.c.bf16 %v4050, %v4049
        %v4067 = vld [vmem:[%s5] sm:$0xf]
        %v4068 = vld [vmem:[%s6] sm:$0xff]
        %4070 = vset.pattern.permute.xlu0 0
        %4071 = vperm.xlu0 %4070, %v4068
        %v4072 = vpop.permute.xlu0 %4071
        %v4075 = vsel %vm2077, %v4067, 0
        %v4078 = vsel %vm2077, %v4051, 0
        %v4081 = vsel %vm2077, %v4052, 0
        %v4084 = vsel %vm2077, %v4053, 0
        %v4087 = vsel %vm2077, %v4054, 0
        %v4090 = vsel %vm2077, %v4055, 0
        %v4093 = vsel %vm2077, %v4056, 0
        %v4096 = vsel %vm2077, %v4057, 0
        %v4099 = vsel %vm2077, %v4058, 0
        %v4102 = vsel %vm2077, %v4059, 0
        %v4105 = vsel %vm2077, %v4060, 0
        %v4108 = vsel %vm2077, %v4061, 0
        %v4111 = vsel %vm2077, %v4062, 0
        %v4114 = vsel %vm2077, %v4063, 0
        %v4117 = vsel %vm2077, %v4064, 0
        %v4120 = vsel %vm2077, %v4065, 0
        %v4123 = vsel %vm2077, %v4066, 0
        %4125 = vmatpush.bf16.xpose.msra.mxu0 %v4099
        %4126 = vmatpush.bf16.xpose.msra.mxu0 %v4096
        %4127 = vmatpush.bf16.xpose.msra.mxu0 %v4093
        %4128 = vmatpush.bf16.xpose.msra.mxu0 %v4090
        %4129 = vmatpush.bf16.xpose.msra.mxu0 %v4087
        %4130 = vmatpush.bf16.xpose.msra.mxu0 %v4084
        %4131 = vmatpush.bf16.xpose.msra.mxu0 %v4081
        %4132 = vmatpush.bf16.xpose.msra.mxu0 %v4078
        %4133 = vmatmul.bf16.gmra.mxu0 %v4075
        %v4134 = vpop.f32.mrf.mxu0
        %v4135 = vadd.f32 %v4072, %v4134
        %v4136 = vpop.f32.mrf.mxu0
        %4137 = vdwg.mxu0
        %4138 = vmatpush.bf16.xpose.msra.mxu0 %v4123
        %4139 = vmatpush.bf16.xpose.msra.mxu0 %v4120
        %4140 = vmatpush.bf16.xpose.msra.mxu0 %v4117
        %4141 = vmatpush.bf16.xpose.msra.mxu0 %v4114
        %4142 = vmatpush.bf16.xpose.msra.mxu0 %v4111
        %4143 = vmatpush.bf16.xpose.msra.mxu0 %v4108
        %4144 = vmatpush.bf16.xpose.msra.mxu0 %v4105
        %4145 = vmatpush.bf16.xpose.msra.mxu0 %v4102
        %4146 = vmatmul.bf16.gmra.mxu0 %v4075
        %v4147 = vpop.f32.mrf.mxu0
        %v4148 = vadd.f32 %v4072, %v4147
        %v4149 = vpop.f32.mrf.mxu0
        %4150 = vdwg.mxu0
        %4151 = vst [vmem:[%s271] sm:$0xff] %v4135
        %4152 = vst [vmem:[%s271 + $0x8] sm:$0xff] %v4148
        %s4153 = sand.u32 %s181, 1
        %s4154 = scalar_lea.sflag [#allocation4], %s4153
        %s4155 = sand.u32 %s181, 1
        %s4156 = smul.addr %s4155, 16
        %s4157 = scalar_lea.vmem [#allocation3], %s4156
        // Predicated region
        $region49: #{tpu_custom_call.1} parent=47 // pred_check
          %p4158 = pneg %p191
        $region50: #{tpu_custom_call.1} parent=47 // pred_check_branch
          %4160 = sbr.rel (%p4158) target = $region52
        $region51: #{tpu_custom_call.1} parent=47 // pred_region
          %4162 = vsyncadd %s4154, 0
          %s4163 = smul.addr %s21, 2
          %s4164 = smul.addr %s4163, 8
          %s4165 = scalar_lea.hbm %s7, %s4164
          %s4167 = sshll.u32 %s4157, 4
          %s4168 = int_to_ptr.vmem [resolvable:$true] %s4167
          %s4169 = sshll.u32 %s4165, 4
          %s4170 = int_to_ptr.hbm [resolvable:$true] %s4169
          %4172 = dma.vmem_to_hbm [thread:$0]  %s4168, 256, %s4170, %s4154
        $region52: #{tpu_custom_call.1} parent=47 // pred_fallthru
          _
      $region48: #{tpu_custom_call.1} parent=5 // pred_fallthru
        _
      %p4173 = scmp.le.s32.totalorder 2, %s16
      // Predicated region
      $region53: #{tpu_custom_call.1} parent=5 // pred_check
        %p4174 = pneg %p4173
      $region54: #{tpu_custom_call.1} parent=5 // pred_check_branch
        %4176 = sbr.rel (%p4174) target = $region56
      $region55: #{tpu_custom_call.1} parent=5 // pred_region
        %s4177 = ssub.s32 %s16, 2
        // Predicated region
        $region57: #{tpu_custom_call.1} parent=55 // pred_check
          %p4178 = pneg %p197
        $region58: #{tpu_custom_call.1} parent=55 // pred_check_branch
          %4180 = sbr.rel (%p4178) target = $region60
        $region59: #{tpu_custom_call.1} parent=55 // pred_region
          %s4181 = sand.u32 %s182, 1
          %s4182 = scalar_lea.sflag [#allocation4], %s4181
          %s4183 = sand.u32 %s182, 1
          %s4184 = smul.addr %s4183, 16
          %s4185 = scalar_lea.vmem [#allocation3], %s4184
          %4187 = dma.done %s4182, 256
        $region60: #{tpu_custom_call.1} parent=55 // pred_fallthru
          _
      $region56: #{tpu_custom_call.1} parent=5 // pred_fallthru
        _
    $region6: #{tpu_custom_call.1} parent=1 // loop_footer
      %s20 = sadd.s32 1, %s16
    $region7: #{tpu_custom_call.1} parent=1 // loop_footer_branch
      %15 = sbr.rel target = $region3
    $region8: #{tpu_custom_call.1} parent=1 // loop_exit
      _
    %4188 = vsyncpa [#allocation4], 1
    %s4189 = scalar_lea.sflag [#allocation4], 1
    %4190 = vsyncpa %s4189, 1

</llo_original>
